<compile_context>
chip_gen: v7x
topology: tpu7x:2x2x1
jax: 0.10.0
libtpu: 0.0.40
codegen_flags: <defaults>
</compile_context>

<pallas_src>
import math

import jax
import jax.numpy as jnp
from jax import lax
from jax.experimental import pallas as pl

# Small synthetic shapes consistent with the module.
B, S, D, H, DFF = 2, 8, 32, 4, 64
DK = D // H
LN_EPS = 1e-6
GROUP_SCALE = 256.0   # hard-coded `self.d_model = 256.` in the original GroupAttention
NEG_INF = -1e9


# ----------------------------------------------------------------------------- helpers

def _layer_norm(x, gamma, beta):
    # Annotated-transformer LayerNorm: a_2 * (x - mean) / (std + eps) + b_2,
    # with torch.std's unbiased (ddof=1) estimator.
    mean = jnp.mean(x, axis=-1, keepdims=True)
    var = jnp.sum((x - mean) ** 2, axis=-1, keepdims=True) / (x.shape[-1] - 1)
    return gamma * (x - mean) / (jnp.sqrt(var) + LN_EPS) + beta


def _softmax_lastdim(s):
    m = jnp.max(s, axis=-1, keepdims=True)
    e = jnp.exp(s - m)
    return e * pl.reciprocal(jnp.sum(e, axis=-1, keepdims=True), approx=True)


# ----------------------------------------------------------------------------- kernel

def encoder_layer_kernel(
    x_ref, mask_ref, prior_ref,
    ga_ln_g_ref, ga_ln_b_ref, ga_wkq_ref, ga_bkq_ref,
    sa_ln_g_ref, sa_ln_b_ref, sa_wqkv_ref, sa_bqkv_ref, wo_ref, bo_ref,
    ff_ln_g_ref, ff_ln_b_ref, w1_ref, b1_ref, w2_ref, b2_ref,
    out_ref, gattn_ref, break_ref,
):
    f32 = jnp.float32
    x3 = x_ref[...]                                   # (B, S, D)
    x2 = x3.reshape(B * S, D)                         # batch folded onto sublanes
    col_valid = mask_ref[...][:, None, :] > 0.0       # (B, 1, S)  1.0 = valid token
    prior = prior_ref[...]                            # (B, S, S)

    # Structural (constant) matrices.
    row = lax.broadcasted_iota(jnp.int32, (S, S), 0)
    col = lax.broadcasted_iota(jnp.int32, (S, S), 1)
    a_mat = (col == row + 1)[None, :, :]              # super-diagonal
    c_mat = (col == row - 1)[None, :, :]              # sub-diagonal
    b_mat = (col == row)[None, :, :]                  # diagonal
    upper = (col > row)[None, :, :]                   # strictly upper
    tri = jnp.broadcast_to((col >= row).astype(f32), (B, S, S))   # upper tri incl. diag

    # ---------------- 1) GroupAttention -> (g_attn, break_prob) ----------------
    xn = _layer_norm(x2, ga_ln_g_ref[...], ga_ln_b_ref[...])
    kq = jnp.dot(xn, ga_wkq_ref[...], preferred_element_type=f32) + ga_bkq_ref[...]
    key = kq[:, :D].reshape(B, S, D)
    qry = kq[:, D:].reshape(B, S, D)
    scores = jnp.einsum("bqd,bkd->bqk", qry, key,
                        preferred_element_type=f32) * (1.0 / GROUP_SCALE)

    nb_mask = (a_mat | c_mat) & col_valid             # neighbors that are valid tokens
    scores = jnp.where(nb_mask, scores, NEG_INF)
    nb = _softmax_lastdim(scores)                     # (B, S, S)
    nb = jnp.sqrt(nb * jnp.swapaxes(nb, 1, 2) + 1e-9)
    nb = prior + (1.0 - prior) * nb                   # break_prob

    t = jnp.where(a_mat, jnp.log(nb + 1e-9), 0.0)
    t = jnp.einsum("bij,bjk->bik", t, tri, preferred_element_type=f32)       # t @ tri
    g = jnp.exp(jnp.einsum("bij,bjk->bik", tri, t, preferred_element_type=f32))  # tri @ t
    g = jnp.where(upper, g, 0.0)
    g_attn = g + jnp.swapaxes(g, 1, 2) + jnp.where(b_mat, nb, 1e-9)

    gattn_ref[...] = g_attn
    break_ref[...] = nb

    # ---------------- 2) sublayer[0]: x + self_attn(norm(x), g_attn, mask) -----
    xn = _layer_norm(x2, sa_ln_g_ref[...], sa_ln_b_ref[...])
    qkv = jnp.dot(xn, sa_wqkv_ref[...], preferred_element_type=f32) + sa_bqkv_ref[...]
    qkv3 = qkv.reshape(B, S, 3 * D)
    q3 = qkv3[:, :, 0 * D:1 * D]
    k3 = qkv3[:, :, 1 * D:2 * D]
    v3 = qkv3[:, :, 2 * D:3 * D]

    scale = 1.0 / math.sqrt(DK)
    heads = []
    for h in range(H):                                # static unroll (H = 4)
        sl = slice(h * DK, (h + 1) * DK)
        s = jnp.einsum("bqd,bkd->bqk", q3[:, :, sl], k3[:, :, sl],
                       preferred_element_type=f32) * scale
        s = jnp.where(col_valid, s, NEG_INF)
        p = _softmax_lastdim(s) * g_attn              # group prob shared by all heads
        heads.append(jnp.einsum("bqk,bkd->bqd", p, v3[:, :, sl],
                                preferred_element_type=f32))
    cat = jnp.concatenate(heads, axis=-1).reshape(B * S, D)   # concat(heads)
    attn = jnp.dot(cat, wo_ref[...], preferred_element_type=f32) + bo_ref[...]
    x2 = x2 + attn                                    # residual connection

    # ---------------- 3) sublayer[1]: x + feed_forward(norm(x)) ----------------
    xn = _layer_norm(x2, ff_ln_g_ref[...], ff_ln_b_ref[...])
    h1 = jnp.maximum(jnp.dot(xn, w1_ref[...], preferred_element_type=f32)
                     + b1_ref[...], 0.0)
    y = jnp.dot(h1, w2_ref[...], preferred_element_type=f32) + b2_ref[...]
    out_ref[...] = (x2 + y).reshape(B, S, D)          # residual connection


# ----------------------------------------------------------------------------- wrapper

def pack_params(p):
    """One-time packing: fuse K/Q and Q/K/V projection weights into wide matmuls."""
    return dict(
        ga_ln_g=p["ga_ln_g"], ga_ln_b=p["ga_ln_b"],
        ga_wkq=jnp.concatenate([p["ga_wk"], p["ga_wq"]], axis=1),   # (D, 2D)
        ga_bkq=jnp.concatenate([p["ga_bk"], p["ga_bq"]], axis=1),   # (1, 2D)
        sa_ln_g=p["sa_ln_g"], sa_ln_b=p["sa_ln_b"],
        sa_wqkv=jnp.concatenate([p["wq"], p["wk"], p["wv"]], axis=1),   # (D, 3D)
        sa_bqkv=jnp.concatenate([p["bq"], p["bk"], p["bv"]], axis=1),   # (1, 3D)
        wo=p["wo"], bo=p["bo"],
        ff_ln_g=p["ff_ln_g"], ff_ln_b=p["ff_ln_b"],
        w1=p["w1"], b1=p["b1"], w2=p["w2"], b2=p["b2"],
    )


@jax.jit
def encoder_layer_forward(x, mask, group_prob, pk):
    mask2 = mask.reshape(B, S)          # (B, 1, S) -> (B, S)
    x_out, g_attn, break_prob = pl.pallas_call(
        encoder_layer_kernel,
        out_shape=(
            jax.ShapeDtypeStruct((B, S, D), jnp.float32),
            jax.ShapeDtypeStruct((B, S, S), jnp.float32),
            jax.ShapeDtypeStruct((B, S, S), jnp.float32),
        ),
    )(x, mask2, group_prob,
      pk["ga_ln_g"], pk["ga_ln_b"], pk["ga_wkq"], pk["ga_bkq"],
      pk["sa_ln_g"], pk["sa_ln_b"], pk["sa_wqkv"], pk["sa_bqkv"],
      pk["wo"], pk["bo"],
      pk["ff_ln_g"], pk["ff_ln_b"], pk["w1"], pk["b1"], pk["w2"], pk["b2"])
    return x_out, g_attn, break_prob


# ----------------------------------------------------------------------------- params

def init_params(key):
    ks = jax.random.split(key, 12)

    def lin(k, din, dout):
        return jax.random.normal(k, (din, dout), jnp.float32) / math.sqrt(din)

    def bias(k, dout):
        return jax.random.normal(k, (1, dout), jnp.float32) * 0.01

    p = {}
    # GroupAttention: LayerNorm + key/query linears
    p["ga_ln_g"] = jnp.ones((1, D), jnp.float32)
    p["ga_ln_b"] = jnp.zeros((1, D), jnp.float32)
    p["ga_wk"], p["ga_bk"] = lin(ks[0], D, D), bias(ks[1], D)
    p["ga_wq"], p["ga_bq"] = lin(ks[2], D, D), bias(ks[3], D)
    # SublayerConnection[0] norm + MultiHeadedAttention linears (q, k, v, out)
    p["sa_ln_g"] = jnp.ones((1, D), jnp.float32)
    p["sa_ln_b"] = jnp.zeros((1, D), jnp.float32)
    p["wq"], p["bq"] = lin(ks[4], D, D), bias(ks[5], D)
    p["wk"], p["bk"] = lin(ks[6], D, D), bias(ks[7], D)
    p["wv"], p["bv"] = lin(ks[8], D, D), bias(ks[9], D)
    p["wo"], p["bo"] = lin(ks[10], D, D), jnp.zeros((1, D), jnp.float32)
    # SublayerConnection[1] norm + PositionwiseFeedForward
    p["ff_ln_g"] = jnp.ones((1, D), jnp.float32)
    p["ff_ln_b"] = jnp.zeros((1, D), jnp.float32)
    p["w1"], p["b1"] = lin(ks[11], D, DFF), jnp.zeros((1, DFF), jnp.float32)
    p["w2"], p["b2"] = lin(ks[0], DFF, D), jnp.zeros((1, D), jnp.float32)
    return p


# ----------------------------------------------------------------------------- main

if __name__ == "__main__":
    key = jax.random.PRNGKey(0)
    kx, kp = jax.random.split(key)

    x = jax.random.normal(kx, (B, S, D), jnp.float32)
    mask = jnp.ones((B, 1, S), jnp.float32)
    mask = mask.at[1, 0, 6:].set(0.0)               # last 2 tokens of batch 1 are padding
    group_prob = jnp.zeros((B, S, S), jnp.float32)  # prior = 0 for the first layer

    params = init_params(kp)
    packed = pack_params(params)

    out, g_attn, break_prob = encoder_layer_forward(x, mask, group_prob, packed)
    jax.block_until_ready((out, g_attn, break_prob))

    assert out.shape == (B, S, D)
    assert g_attn.shape == (B, S, S)
    assert break_prob.shape == (B, S, S)
    assert bool(jnp.all(jnp.isfinite(out)))
    assert bool(jnp.all(jnp.isfinite(g_attn)))
    assert bool(jnp.all(jnp.isfinite(break_prob)))
    print("KERNEL_OK")
</pallas_src>

<mosaic_0001>
module attributes {stable_mosaic.version = 11 : i64} {
  func.func @encoder_layer_kernel(%arg0: memref<2x8x32xf32, #tpu.memory_space<vmem>>, %arg1: memref<2x8xf32, #tpu.memory_space<vmem>>, %arg2: memref<2x8x8xf32, #tpu.memory_space<vmem>>, %arg3: memref<1x32xf32, #tpu.memory_space<vmem>>, %arg4: memref<1x32xf32, #tpu.memory_space<vmem>>, %arg5: memref<32x64xf32, #tpu.memory_space<vmem>>, %arg6: memref<1x64xf32, #tpu.memory_space<vmem>>, %arg7: memref<1x32xf32, #tpu.memory_space<vmem>>, %arg8: memref<1x32xf32, #tpu.memory_space<vmem>>, %arg9: memref<32x96xf32, #tpu.memory_space<vmem>>, %arg10: memref<1x96xf32, #tpu.memory_space<vmem>>, %arg11: memref<32x32xf32, #tpu.memory_space<vmem>>, %arg12: memref<1x32xf32, #tpu.memory_space<vmem>>, %arg13: memref<1x32xf32, #tpu.memory_space<vmem>>, %arg14: memref<1x32xf32, #tpu.memory_space<vmem>>, %arg15: memref<32x64xf32, #tpu.memory_space<vmem>>, %arg16: memref<1x64xf32, #tpu.memory_space<vmem>>, %arg17: memref<64x32xf32, #tpu.memory_space<vmem>>, %arg18: memref<1x32xf32, #tpu.memory_space<vmem>>, %arg19: memref<2x8x32xf32, #tpu.memory_space<vmem>>, %arg20: memref<2x8x8xf32, #tpu.memory_space<vmem>>, %arg21: memref<2x8x8xf32, #tpu.memory_space<vmem>>) attributes {dimension_semantics = [], scalar_prefetch = 0 : i64, scratch_operands = 0 : i64, tpu.core_type = #tpu.core_type<tc>} {
    %c0 = arith.constant 0 : index
    %c0_0 = arith.constant 0 : index
    %c0_1 = arith.constant 0 : index
    %0 = vector.load %arg0[%c0, %c0_0, %c0_1] : memref<2x8x32xf32, #tpu.memory_space<vmem>>, vector<2x8x32xf32>
    %1 = vector.shape_cast %0 : vector<2x8x32xf32> to vector<16x32xf32>
    %c0_2 = arith.constant 0 : index
    %c0_3 = arith.constant 0 : index
    %2 = vector.load %arg1[%c0_2, %c0_3] : memref<2x8xf32, #tpu.memory_space<vmem>>, vector<2x8xf32>
    %3 = vector.shape_cast %2 : vector<2x8xf32> to vector<2x1x8xf32>
    %cst = arith.constant 0.000000e+00 : f32
    %4 = vector.broadcast %cst : f32 to vector<2x1x8xf32>
    %5 = arith.cmpf ogt, %3, %4 : vector<2x1x8xf32>
    %c0_4 = arith.constant 0 : index
    %c0_5 = arith.constant 0 : index
    %c0_6 = arith.constant 0 : index
    %6 = vector.load %arg2[%c0_4, %c0_5, %c0_6] : memref<2x8x8xf32, #tpu.memory_space<vmem>>, vector<2x8x8xf32>
    %7 = tpu.iota {dimensions = array<i32: 0>} : vector<8x8xi32>
    %8 = tpu.iota {dimensions = array<i32: 1>} : vector<8x8xi32>
    %c1_i32 = arith.constant 1 : i32
    %9 = vector.broadcast %c1_i32 : i32 to vector<8x8xi32>
    %10 = arith.addi %7, %9 : vector<8x8xi32>
    %11 = arith.cmpi eq, %8, %10 : vector<8x8xi32>
    %12 = vector.shape_cast %11 : vector<8x8xi1> to vector<1x8x8xi1>
    %c1_i32_7 = arith.constant 1 : i32
    %13 = vector.broadcast %c1_i32_7 : i32 to vector<8x8xi32>
    %14 = arith.subi %7, %13 : vector<8x8xi32>
    %15 = arith.cmpi eq, %8, %14 : vector<8x8xi32>
    %16 = vector.shape_cast %15 : vector<8x8xi1> to vector<1x8x8xi1>
    %17 = arith.cmpi eq, %8, %7 : vector<8x8xi32>
    %18 = vector.shape_cast %17 : vector<8x8xi1> to vector<1x8x8xi1>
    %19 = arith.cmpi sgt, %8, %7 : vector<8x8xi32>
    %20 = vector.shape_cast %19 : vector<8x8xi1> to vector<1x8x8xi1>
    %21 = arith.cmpi sge, %8, %7 : vector<8x8xi32>
    %22 = arith.extui %21 : vector<8x8xi1> to vector<8x8xi32>
    %23 = arith.sitofp %22 : vector<8x8xi32> to vector<8x8xf32>
    %24 = vector.shape_cast %23 : vector<8x8xf32> to vector<1x8x8xf32>
    %25 = vector.broadcast %24 : vector<1x8x8xf32> to vector<2x8x8xf32>
    %c0_8 = arith.constant 0 : index
    %c0_9 = arith.constant 0 : index
    %26 = vector.load %arg3[%c0_8, %c0_9] : memref<1x32xf32, #tpu.memory_space<vmem>>, vector<1x32xf32>
    %c0_10 = arith.constant 0 : index
    %c0_11 = arith.constant 0 : index
    %27 = vector.load %arg4[%c0_10, %c0_11] : memref<1x32xf32, #tpu.memory_space<vmem>>, vector<1x32xf32>
    %cst_12 = arith.constant dense<0.000000e+00> : vector<16xf32>
    %28 = vector.multi_reduction <add>, %1, %cst_12 [1] : vector<16x32xf32> to vector<16xf32>
    %29 = vector.shape_cast %28 : vector<16xf32> to vector<16x1xf32>
    %cst_13 = arith.constant 3.200000e+01 : f32
    %30 = vector.broadcast %cst_13 : f32 to vector<16x1xf32>
    %31 = arith.divf %29, %30 : vector<16x1xf32>
    %32 = vector.broadcast %31 : vector<16x1xf32> to vector<16x32xf32>
    %33 = arith.subf %1, %32 : vector<16x32xf32>
    %34 = arith.mulf %33, %33 : vector<16x32xf32>
    %cst_14 = arith.constant dense<0.000000e+00> : vector<16xf32>
    %35 = vector.multi_reduction <add>, %34, %cst_14 [1] : vector<16x32xf32> to vector<16xf32>
    %36 = vector.shape_cast %35 : vector<16xf32> to vector<16x1xf32>
    %cst_15 = arith.constant 3.100000e+01 : f32
    %37 = vector.broadcast %cst_15 : f32 to vector<16x1xf32>
    %38 = arith.divf %36, %37 : vector<16x1xf32>
    %39 = vector.broadcast %31 : vector<16x1xf32> to vector<16x32xf32>
    %40 = arith.subf %1, %39 : vector<16x32xf32>
    %41 = vector.broadcast %26 : vector<1x32xf32> to vector<16x32xf32>
    %42 = arith.mulf %41, %40 : vector<16x32xf32>
    %43 = math.sqrt %38 : vector<16x1xf32>
    %cst_16 = arith.constant 9.99999997E-7 : f32
    %44 = vector.broadcast %cst_16 : f32 to vector<16x1xf32>
    %45 = arith.addf %43, %44 : vector<16x1xf32>
    %46 = vector.broadcast %45 : vector<16x1xf32> to vector<16x32xf32>
    %47 = arith.divf %42, %46 : vector<16x32xf32>
    %48 = vector.broadcast %27 : vector<1x32xf32> to vector<16x32xf32>
    %49 = arith.addf %47, %48 : vector<16x32xf32>
    %c0_17 = arith.constant 0 : index
    %c0_18 = arith.constant 0 : index
    %50 = vector.load %arg5[%c0_17, %c0_18] : memref<32x64xf32, #tpu.memory_space<vmem>>, vector<32x64xf32>
    %cst_19 = arith.constant dense<0.000000e+00> : vector<16x64xf32>
    %51 = tpu.matmul %49, %50, %cst_19 {dimension_numbers = #tpu.dot_dimension_numbers<[1], [0], [0], [1], [0, 0, 1, 1], [], []>} : vector<16x32xf32>, vector<32x64xf32>, vector<16x64xf32> -> vector<16x64xf32>
    %c0_20 = arith.constant 0 : index
    %c0_21 = arith.constant 0 : index
    %52 = vector.load %arg6[%c0_20, %c0_21] : memref<1x64xf32, #tpu.memory_space<vmem>>, vector<1x64xf32>
    %53 = vector.broadcast %52 : vector<1x64xf32> to vector<16x64xf32>
    %54 = arith.addf %51, %53 : vector<16x64xf32>
    %55 = vector.extract_strided_slice %54 {offsets = [0, 0], sizes = [16, 32], strides = [1, 1]} : vector<16x64xf32> to vector<16x32xf32>
    %56 = vector.shape_cast %55 : vector<16x32xf32> to vector<2x8x32xf32>
    %57 = vector.extract_strided_slice %54 {offsets = [0, 32], sizes = [16, 32], strides = [1, 1]} : vector<16x64xf32> to vector<16x32xf32>
    %58 = vector.shape_cast %57 : vector<16x32xf32> to vector<2x8x32xf32>
    "tpu.trace_start"() <{level = 10 : i32, message = "bqd,bkd->bqk"}> : () -> ()
    %cst_22 = arith.constant dense<0.000000e+00> : vector<2x8x8xf32>
    %59 = tpu.matmul %58, %56, %cst_22 {dimension_numbers = #tpu.dot_dimension_numbers<[2], [2], [1], [1], [0, 0, 0, 1, 1, 1], [0], [0]>} : vector<2x8x32xf32>, vector<2x8x32xf32>, vector<2x8x8xf32> -> vector<2x8x8xf32>
    "tpu.trace_stop"() : () -> ()
    %cst_23 = arith.constant 3.906250e-03 : f32
    %60 = vector.broadcast %cst_23 : f32 to vector<2x8x8xf32>
    %61 = arith.mulf %59, %60 : vector<2x8x8xf32>
    %62 = arith.ori %12, %16 : vector<1x8x8xi1>
    %63 = vector.broadcast %62 : vector<1x8x8xi1> to vector<2x8x8xi1>
    %64 = vector.broadcast %5 : vector<2x1x8xi1> to vector<2x8x8xi1>
    %65 = arith.andi %63, %64 : vector<2x8x8xi1>
    %cst_24 = arith.constant -1.000000e+09 : f32
    %66 = vector.broadcast %cst_24 : f32 to vector<2x8x8xf32>
    %67 = arith.select %65, %61, %66 : vector<2x8x8xi1>, vector<2x8x8xf32>
    %cst_25 = arith.constant dense<0xFF800000> : vector<2x8xf32>
    %68 = vector.multi_reduction <maximumf>, %67, %cst_25 [2] : vector<2x8x8xf32> to vector<2x8xf32>
    %69 = vector.shape_cast %68 : vector<2x8xf32> to vector<2x8x1xf32>
    %70 = vector.broadcast %69 : vector<2x8x1xf32> to vector<2x8x8xf32>
    %71 = arith.subf %67, %70 : vector<2x8x8xf32>
    %72 = math.exp %71 : vector<2x8x8xf32>
    %cst_26 = arith.constant dense<0.000000e+00> : vector<2x8xf32>
    %73 = vector.multi_reduction <add>, %72, %cst_26 [2] : vector<2x8x8xf32> to vector<2x8xf32>
    %74 = vector.shape_cast %73 : vector<2x8xf32> to vector<2x8x1xf32>
    %75 = tpu.reciprocal %74 {approx = true} : vector<2x8x1xf32> -> vector<2x8x1xf32>
    %76 = vector.broadcast %75 : vector<2x8x1xf32> to vector<2x8x8xf32>
    %77 = arith.mulf %72, %76 : vector<2x8x8xf32>
    %78 = tpu.transpose %77, [0, 2, 1] : vector<2x8x8xf32> -> vector<2x8x8xf32>
    %79 = arith.mulf %77, %78 : vector<2x8x8xf32>
    %cst_27 = arith.constant 9.99999971E-10 : f32
    %80 = vector.broadcast %cst_27 : f32 to vector<2x8x8xf32>
    %81 = arith.addf %79, %80 : vector<2x8x8xf32>
    %82 = math.sqrt %81 : vector<2x8x8xf32>
    %cst_28 = arith.constant 1.000000e+00 : f32
    %83 = vector.broadcast %cst_28 : f32 to vector<2x8x8xf32>
    %84 = arith.subf %83, %6 : vector<2x8x8xf32>
    %85 = arith.mulf %84, %82 : vector<2x8x8xf32>
    %86 = arith.addf %6, %85 : vector<2x8x8xf32>
    %cst_29 = arith.constant 9.99999971E-10 : f32
    %87 = vector.broadcast %cst_29 : f32 to vector<2x8x8xf32>
    %88 = arith.addf %86, %87 : vector<2x8x8xf32>
    %89 = math.log %88 : vector<2x8x8xf32>
    %cst_30 = arith.constant 0.000000e+00 : f32
    %90 = vector.shape_cast %12 : vector<1x8x8xi1> to vector<1x8x8xi1>
    %91 = vector.broadcast %90 : vector<1x8x8xi1> to vector<2x8x8xi1>
    %92 = vector.broadcast %cst_30 : f32 to vector<2x8x8xf32>
    %93 = arith.select %91, %89, %92 : vector<2x8x8xi1>, vector<2x8x8xf32>
    "tpu.trace_start"() <{level = 10 : i32, message = "bij,bjk->bik"}> : () -> ()
    %cst_31 = arith.constant dense<0.000000e+00> : vector<2x8x8xf32>
    %94 = tpu.matmul %93, %25, %cst_31 {dimension_numbers = #tpu.dot_dimension_numbers<[2], [1], [1], [2], [0, 0, 0, 1, 1, 2], [0], [0]>} : vector<2x8x8xf32>, vector<2x8x8xf32>, vector<2x8x8xf32> -> vector<2x8x8xf32>
    %cst_32 = arith.constant dense<0.000000e+00> : vector<2x8x8xf32>
    %95 = tpu.matmul %25, %94, %cst_32 {dimension_numbers = #tpu.dot_dimension_numbers<[2], [1], [1], [2], [0, 0, 0, 1, 1, 2], [0], [0]>} : vector<2x8x8xf32>, vector<2x8x8xf32>, vector<2x8x8xf32> -> vector<2x8x8xf32>
    "tpu.trace_stop"() : () -> ()
    %96 = math.exp %95 : vector<2x8x8xf32>
    %cst_33 = arith.constant 0.000000e+00 : f32
    %97 = vector.shape_cast %20 : vector<1x8x8xi1> to vector<1x8x8xi1>
    %98 = vector.broadcast %97 : vector<1x8x8xi1> to vector<2x8x8xi1>
    %99 = vector.broadcast %cst_33 : f32 to vector<2x8x8xf32>
    %100 = arith.select %98, %96, %99 : vector<2x8x8xi1>, vector<2x8x8xf32>
    %101 = tpu.transpose %100, [0, 2, 1] : vector<2x8x8xf32> -> vector<2x8x8xf32>
    %102 = arith.addf %100, %101 : vector<2x8x8xf32>
    %cst_34 = arith.constant 9.99999971E-10 : f32
    %103 = vector.shape_cast %18 : vector<1x8x8xi1> to vector<1x8x8xi1>
    %104 = vector.broadcast %103 : vector<1x8x8xi1> to vector<2x8x8xi1>
    %105 = vector.broadcast %cst_34 : f32 to vector<2x8x8xf32>
    %106 = arith.select %104, %86, %105 : vector<2x8x8xi1>, vector<2x8x8xf32>
    %107 = arith.addf %102, %106 : vector<2x8x8xf32>
    %c0_35 = arith.constant 0 : index
    %c0_36 = arith.constant 0 : index
    %c0_37 = arith.constant 0 : index
    %108 = vector.load %arg20[%c0_35, %c0_36, %c0_37] : memref<2x8x8xf32, #tpu.memory_space<vmem>>, vector<2x8x8xf32>
    tpu.vector_store %arg20[%c0_35, %c0_36, %c0_37], %107 {strides = array<i32>} : memref<2x8x8xf32, #tpu.memory_space<vmem>>, vector<2x8x8xf32>,
    %c0_38 = arith.constant 0 : index
    %c0_39 = arith.constant 0 : index
    %c0_40 = arith.constant 0 : index
    %109 = vector.load %arg21[%c0_38, %c0_39, %c0_40] : memref<2x8x8xf32, #tpu.memory_space<vmem>>, vector<2x8x8xf32>
    tpu.vector_store %arg21[%c0_38, %c0_39, %c0_40], %86 {strides = array<i32>} : memref<2x8x8xf32, #tpu.memory_space<vmem>>, vector<2x8x8xf32>,
    %c0_41 = arith.constant 0 : index
    %c0_42 = arith.constant 0 : index
    %110 = vector.load %arg7[%c0_41, %c0_42] : memref<1x32xf32, #tpu.memory_space<vmem>>, vector<1x32xf32>
    %c0_43 = arith.constant 0 : index
    %c0_44 = arith.constant 0 : index
    %111 = vector.load %arg8[%c0_43, %c0_44] : memref<1x32xf32, #tpu.memory_space<vmem>>, vector<1x32xf32>
    %cst_45 = arith.constant dense<0.000000e+00> : vector<16xf32>
    %112 = vector.multi_reduction <add>, %1, %cst_45 [1] : vector<16x32xf32> to vector<16xf32>
    %113 = vector.shape_cast %112 : vector<16xf32> to vector<16x1xf32>
    %cst_46 = arith.constant 3.200000e+01 : f32
    %114 = vector.broadcast %cst_46 : f32 to vector<16x1xf32>
    %115 = arith.divf %113, %114 : vector<16x1xf32>
    %116 = vector.broadcast %115 : vector<16x1xf32> to vector<16x32xf32>
    %117 = arith.subf %1, %116 : vector<16x32xf32>
    %118 = arith.mulf %117, %117 : vector<16x32xf32>
    %cst_47 = arith.constant dense<0.000000e+00> : vector<16xf32>
    %119 = vector.multi_reduction <add>, %118, %cst_47 [1] : vector<16x32xf32> to vector<16xf32>
    %120 = vector.shape_cast %119 : vector<16xf32> to vector<16x1xf32>
    %cst_48 = arith.constant 3.100000e+01 : f32
    %121 = vector.broadcast %cst_48 : f32 to vector<16x1xf32>
    %122 = arith.divf %120, %121 : vector<16x1xf32>
    %123 = vector.broadcast %115 : vector<16x1xf32> to vector<16x32xf32>
    %124 = arith.subf %1, %123 : vector<16x32xf32>
    %125 = vector.broadcast %110 : vector<1x32xf32> to vector<16x32xf32>
    %126 = arith.mulf %125, %124 : vector<16x32xf32>
    %127 = math.sqrt %122 : vector<16x1xf32>
    %cst_49 = arith.constant 9.99999997E-7 : f32
    %128 = vector.broadcast %cst_49 : f32 to vector<16x1xf32>
    %129 = arith.addf %127, %128 : vector<16x1xf32>
    %130 = vector.broadcast %129 : vector<16x1xf32> to vector<16x32xf32>
    %131 = arith.divf %126, %130 : vector<16x32xf32>
    %132 = vector.broadcast %111 : vector<1x32xf32> to vector<16x32xf32>
    %133 = arith.addf %131, %132 : vector<16x32xf32>
    %c0_50 = arith.constant 0 : index
    %c0_51 = arith.constant 0 : index
    %134 = vector.load %arg9[%c0_50, %c0_51] : memref<32x96xf32, #tpu.memory_space<vmem>>, vector<32x96xf32>
    %cst_52 = arith.constant dense<0.000000e+00> : vector<16x96xf32>
    %135 = tpu.matmul %133, %134, %cst_52 {dimension_numbers = #tpu.dot_dimension_numbers<[1], [0], [0], [1], [0, 0, 1, 1], [], []>} : vector<16x32xf32>, vector<32x96xf32>, vector<16x96xf32> -> vector<16x96xf32>
    %c0_53 = arith.constant 0 : index
    %c0_54 = arith.constant 0 : index
    %136 = vector.load %arg10[%c0_53, %c0_54] : memref<1x96xf32, #tpu.memory_space<vmem>>, vector<1x96xf32>
    %137 = vector.broadcast %136 : vector<1x96xf32> to vector<16x96xf32>
    %138 = arith.addf %135, %137 : vector<16x96xf32>
    %139 = vector.shape_cast %138 : vector<16x96xf32> to vector<2x8x96xf32>
    %140 = vector.extract_strided_slice %139 {offsets = [0, 0, 0], sizes = [2, 8, 32], strides = [1, 1, 1]} : vector<2x8x96xf32> to vector<2x8x32xf32>
    %141 = vector.extract_strided_slice %139 {offsets = [0, 0, 32], sizes = [2, 8, 32], strides = [1, 1, 1]} : vector<2x8x96xf32> to vector<2x8x32xf32>
    %142 = vector.extract_strided_slice %139 {offsets = [0, 0, 64], sizes = [2, 8, 32], strides = [1, 1, 1]} : vector<2x8x96xf32> to vector<2x8x32xf32>
    %143 = vector.extract_strided_slice %140 {offsets = [0, 0, 0], sizes = [2, 8, 8], strides = [1, 1, 1]} : vector<2x8x32xf32> to vector<2x8x8xf32>
    %144 = vector.extract_strided_slice %141 {offsets = [0, 0, 0], sizes = [2, 8, 8], strides = [1, 1, 1]} : vector<2x8x32xf32> to vector<2x8x8xf32>
    "tpu.trace_start"() <{level = 10 : i32, message = "bqd,bkd->bqk"}> : () -> ()
    %cst_55 = arith.constant dense<0.000000e+00> : vector<2x8x8xf32>
    %145 = tpu.matmul %143, %144, %cst_55 {dimension_numbers = #tpu.dot_dimension_numbers<[2], [2], [1], [1], [0, 0, 0, 1, 1, 1], [0], [0]>} : vector<2x8x8xf32>, vector<2x8x8xf32>, vector<2x8x8xf32> -> vector<2x8x8xf32>
    "tpu.trace_stop"() : () -> ()
    %cst_56 = arith.constant 0.353553385 : f32
    %146 = vector.broadcast %cst_56 : f32 to vector<2x8x8xf32>
    %147 = arith.mulf %145, %146 : vector<2x8x8xf32>
    %cst_57 = arith.constant -1.000000e+09 : f32
    %148 = vector.shape_cast %5 : vector<2x1x8xi1> to vector<2x1x8xi1>
    %149 = vector.broadcast %148 : vector<2x1x8xi1> to vector<2x8x8xi1>
    %150 = vector.broadcast %cst_57 : f32 to vector<2x8x8xf32>
    %151 = arith.select %149, %147, %150 : vector<2x8x8xi1>, vector<2x8x8xf32>
    %cst_58 = arith.constant dense<0xFF800000> : vector<2x8xf32>
    %152 = vector.multi_reduction <maximumf>, %151, %cst_58 [2] : vector<2x8x8xf32> to vector<2x8xf32>
    %153 = vector.shape_cast %152 : vector<2x8xf32> to vector<2x8x1xf32>
    %154 = vector.broadcast %153 : vector<2x8x1xf32> to vector<2x8x8xf32>
    %155 = arith.subf %151, %154 : vector<2x8x8xf32>
    %156 = math.exp %155 : vector<2x8x8xf32>
    %cst_59 = arith.constant dense<0.000000e+00> : vector<2x8xf32>
    %157 = vector.multi_reduction <add>, %156, %cst_59 [2] : vector<2x8x8xf32> to vector<2x8xf32>
    %158 = vector.shape_cast %157 : vector<2x8xf32> to vector<2x8x1xf32>
    %159 = tpu.reciprocal %158 {approx = true} : vector<2x8x1xf32> -> vector<2x8x1xf32>
    %160 = vector.broadcast %159 : vector<2x8x1xf32> to vector<2x8x8xf32>
    %161 = arith.mulf %156, %160 : vector<2x8x8xf32>
    %162 = arith.mulf %161, %107 : vector<2x8x8xf32>
    %163 = vector.extract_strided_slice %142 {offsets = [0, 0, 0], sizes = [2, 8, 8], strides = [1, 1, 1]} : vector<2x8x32xf32> to vector<2x8x8xf32>
    "tpu.trace_start"() <{level = 10 : i32, message = "bqk,bkd->bqd"}> : () -> ()
    %cst_60 = arith.constant dense<0.000000e+00> : vector<2x8x8xf32>
    %164 = tpu.matmul %162, %163, %cst_60 {dimension_numbers = #tpu.dot_dimension_numbers<[2], [1], [1], [2], [0, 0, 0, 1, 1, 2], [0], [0]>} : vector<2x8x8xf32>, vector<2x8x8xf32>, vector<2x8x8xf32> -> vector<2x8x8xf32>
    "tpu.trace_stop"() : () -> ()
    %165 = vector.extract_strided_slice %140 {offsets = [0, 0, 8], sizes = [2, 8, 8], strides = [1, 1, 1]} : vector<2x8x32xf32> to vector<2x8x8xf32>
    %166 = vector.extract_strided_slice %141 {offsets = [0, 0, 8], sizes = [2, 8, 8], strides = [1, 1, 1]} : vector<2x8x32xf32> to vector<2x8x8xf32>
    "tpu.trace_start"() <{level = 10 : i32, message = "bqd,bkd->bqk"}> : () -> ()
    %cst_61 = arith.constant dense<0.000000e+00> : vector<2x8x8xf32>
    %167 = tpu.matmul %165, %166, %cst_61 {dimension_numbers = #tpu.dot_dimension_numbers<[2], [2], [1], [1], [0, 0, 0, 1, 1, 1], [0], [0]>} : vector<2x8x8xf32>, vector<2x8x8xf32>, vector<2x8x8xf32> -> vector<2x8x8xf32>
    "tpu.trace_stop"() : () -> ()
    %cst_62 = arith.constant 0.353553385 : f32
    %168 = vector.broadcast %cst_62 : f32 to vector<2x8x8xf32>
    %169 = arith.mulf %167, %168 : vector<2x8x8xf32>
    %cst_63 = arith.constant -1.000000e+09 : f32
    %170 = vector.shape_cast %5 : vector<2x1x8xi1> to vector<2x1x8xi1>
    %171 = vector.broadcast %170 : vector<2x1x8xi1> to vector<2x8x8xi1>
    %172 = vector.broadcast %cst_63 : f32 to vector<2x8x8xf32>
    %173 = arith.select %171, %169, %172 : vector<2x8x8xi1>, vector<2x8x8xf32>
    %cst_64 = arith.constant dense<0xFF800000> : vector<2x8xf32>
    %174 = vector.multi_reduction <maximumf>, %173, %cst_64 [2] : vector<2x8x8xf32> to vector<2x8xf32>
    %175 = vector.shape_cast %174 : vector<2x8xf32> to vector<2x8x1xf32>
    %176 = vector.broadcast %175 : vector<2x8x1xf32> to vector<2x8x8xf32>
    %177 = arith.subf %173, %176 : vector<2x8x8xf32>
    %178 = math.exp %177 : vector<2x8x8xf32>
    %cst_65 = arith.constant dense<0.000000e+00> : vector<2x8xf32>
    %179 = vector.multi_reduction <add>, %178, %cst_65 [2] : vector<2x8x8xf32> to vector<2x8xf32>
    %180 = vector.shape_cast %179 : vector<2x8xf32> to vector<2x8x1xf32>
    %181 = tpu.reciprocal %180 {approx = true} : vector<2x8x1xf32> -> vector<2x8x1xf32>
    %182 = vector.broadcast %181 : vector<2x8x1xf32> to vector<2x8x8xf32>
    %183 = arith.mulf %178, %182 : vector<2x8x8xf32>
    %184 = arith.mulf %183, %107 : vector<2x8x8xf32>
    %185 = vector.extract_strided_slice %142 {offsets = [0, 0, 8], sizes = [2, 8, 8], strides = [1, 1, 1]} : vector<2x8x32xf32> to vector<2x8x8xf32>
    "tpu.trace_start"() <{level = 10 : i32, message = "bqk,bkd->bqd"}> : () -> ()
    %cst_66 = arith.constant dense<0.000000e+00> : vector<2x8x8xf32>
    %186 = tpu.matmul %184, %185, %cst_66 {dimension_numbers = #tpu.dot_dimension_numbers<[2], [1], [1], [2], [0, 0, 0, 1, 1, 2], [0], [0]>} : vector<2x8x8xf32>, vector<2x8x8xf32>, vector<2x8x8xf32> -> vector<2x8x8xf32>
    "tpu.trace_stop"() : () -> ()
    %187 = vector.extract_strided_slice %140 {offsets = [0, 0, 16], sizes = [2, 8, 8], strides = [1, 1, 1]} : vector<2x8x32xf32> to vector<2x8x8xf32>
    %188 = vector.extract_strided_slice %141 {offsets = [0, 0, 16], sizes = [2, 8, 8], strides = [1, 1, 1]} : vector<2x8x32xf32> to vector<2x8x8xf32>
    "tpu.trace_start"() <{level = 10 : i32, message = "bqd,bkd->bqk"}> : () -> ()
    %cst_67 = arith.constant dense<0.000000e+00> : vector<2x8x8xf32>
    %189 = tpu.matmul %187, %188, %cst_67 {dimension_numbers = #tpu.dot_dimension_numbers<[2], [2], [1], [1], [0, 0, 0, 1, 1, 1], [0], [0]>} : vector<2x8x8xf32>, vector<2x8x8xf32>, vector<2x8x8xf32> -> vector<2x8x8xf32>
    "tpu.trace_stop"() : () -> ()
    %cst_68 = arith.constant 0.353553385 : f32
    %190 = vector.broadcast %cst_68 : f32 to vector<2x8x8xf32>
    %191 = arith.mulf %189, %190 : vector<2x8x8xf32>
    %cst_69 = arith.constant -1.000000e+09 : f32
    %192 = vector.shape_cast %5 : vector<2x1x8xi1> to vector<2x1x8xi1>
    %193 = vector.broadcast %192 : vector<2x1x8xi1> to vector<2x8x8xi1>
    %194 = vector.broadcast %cst_69 : f32 to vector<2x8x8xf32>
    %195 = arith.select %193, %191, %194 : vector<2x8x8xi1>, vector<2x8x8xf32>
    %cst_70 = arith.constant dense<0xFF800000> : vector<2x8xf32>
    %196 = vector.multi_reduction <maximumf>, %195, %cst_70 [2] : vector<2x8x8xf32> to vector<2x8xf32>
    %197 = vector.shape_cast %196 : vector<2x8xf32> to vector<2x8x1xf32>
    %198 = vector.broadcast %197 : vector<2x8x1xf32> to vector<2x8x8xf32>
    %199 = arith.subf %195, %198 : vector<2x8x8xf32>
    %200 = math.exp %199 : vector<2x8x8xf32>
    %cst_71 = arith.constant dense<0.000000e+00> : vector<2x8xf32>
    %201 = vector.multi_reduction <add>, %200, %cst_71 [2] : vector<2x8x8xf32> to vector<2x8xf32>
    %202 = vector.shape_cast %201 : vector<2x8xf32> to vector<2x8x1xf32>
    %203 = tpu.reciprocal %202 {approx = true} : vector<2x8x1xf32> -> vector<2x8x1xf32>
    %204 = vector.broadcast %203 : vector<2x8x1xf32> to vector<2x8x8xf32>
    %205 = arith.mulf %200, %204 : vector<2x8x8xf32>
    %206 = arith.mulf %205, %107 : vector<2x8x8xf32>
    %207 = vector.extract_strided_slice %142 {offsets = [0, 0, 16], sizes = [2, 8, 8], strides = [1, 1, 1]} : vector<2x8x32xf32> to vector<2x8x8xf32>
    "tpu.trace_start"() <{level = 10 : i32, message = "bqk,bkd->bqd"}> : () -> ()
    %cst_72 = arith.constant dense<0.000000e+00> : vector<2x8x8xf32>
    %208 = tpu.matmul %206, %207, %cst_72 {dimension_numbers = #tpu.dot_dimension_numbers<[2], [1], [1], [2], [0, 0, 0, 1, 1, 2], [0], [0]>} : vector<2x8x8xf32>, vector<2x8x8xf32>, vector<2x8x8xf32> -> vector<2x8x8xf32>
    "tpu.trace_stop"() : () -> ()
    %209 = vector.extract_strided_slice %140 {offsets = [0, 0, 24], sizes = [2, 8, 8], strides = [1, 1, 1]} : vector<2x8x32xf32> to vector<2x8x8xf32>
    %210 = vector.extract_strided_slice %141 {offsets = [0, 0, 24], sizes = [2, 8, 8], strides = [1, 1, 1]} : vector<2x8x32xf32> to vector<2x8x8xf32>
    "tpu.trace_start"() <{level = 10 : i32, message = "bqd,bkd->bqk"}> : () -> ()
    %cst_73 = arith.constant dense<0.000000e+00> : vector<2x8x8xf32>
    %211 = tpu.matmul %209, %210, %cst_73 {dimension_numbers = #tpu.dot_dimension_numbers<[2], [2], [1], [1], [0, 0, 0, 1, 1, 1], [0], [0]>} : vector<2x8x8xf32>, vector<2x8x8xf32>, vector<2x8x8xf32> -> vector<2x8x8xf32>
    "tpu.trace_stop"() : () -> ()
    %cst_74 = arith.constant 0.353553385 : f32
    %212 = vector.broadcast %cst_74 : f32 to vector<2x8x8xf32>
    %213 = arith.mulf %211, %212 : vector<2x8x8xf32>
    %cst_75 = arith.constant -1.000000e+09 : f32
    %214 = vector.shape_cast %5 : vector<2x1x8xi1> to vector<2x1x8xi1>
    %215 = vector.broadcast %214 : vector<2x1x8xi1> to vector<2x8x8xi1>
    %216 = vector.broadcast %cst_75 : f32 to vector<2x8x8xf32>
    %217 = arith.select %215, %213, %216 : vector<2x8x8xi1>, vector<2x8x8xf32>
    %cst_76 = arith.constant dense<0xFF800000> : vector<2x8xf32>
    %218 = vector.multi_reduction <maximumf>, %217, %cst_76 [2] : vector<2x8x8xf32> to vector<2x8xf32>
    %219 = vector.shape_cast %218 : vector<2x8xf32> to vector<2x8x1xf32>
    %220 = vector.broadcast %219 : vector<2x8x1xf32> to vector<2x8x8xf32>
    %221 = arith.subf %217, %220 : vector<2x8x8xf32>
    %222 = math.exp %221 : vector<2x8x8xf32>
    %cst_77 = arith.constant dense<0.000000e+00> : vector<2x8xf32>
    %223 = vector.multi_reduction <add>, %222, %cst_77 [2] : vector<2x8x8xf32> to vector<2x8xf32>
    %224 = vector.shape_cast %223 : vector<2x8xf32> to vector<2x8x1xf32>
    %225 = tpu.reciprocal %224 {approx = true} : vector<2x8x1xf32> -> vector<2x8x1xf32>
    %226 = vector.broadcast %225 : vector<2x8x1xf32> to vector<2x8x8xf32>
    %227 = arith.mulf %222, %226 : vector<2x8x8xf32>
    %228 = arith.mulf %227, %107 : vector<2x8x8xf32>
    %229 = vector.extract_strided_slice %142 {offsets = [0, 0, 24], sizes = [2, 8, 8], strides = [1, 1, 1]} : vector<2x8x32xf32> to vector<2x8x8xf32>
    "tpu.trace_start"() <{level = 10 : i32, message = "bqk,bkd->bqd"}> : () -> ()
    %cst_78 = arith.constant dense<0.000000e+00> : vector<2x8x8xf32>
    %230 = tpu.matmul %228, %229, %cst_78 {dimension_numbers = #tpu.dot_dimension_numbers<[2], [1], [1], [2], [0, 0, 0, 1, 1, 2], [0], [0]>} : vector<2x8x8xf32>, vector<2x8x8xf32>, vector<2x8x8xf32> -> vector<2x8x8xf32>
    "tpu.trace_stop"() : () -> ()
    %231 = tpu.concatenate %164, %186, %208, %230 in 2 : vector<2x8x8xf32>, vector<2x8x8xf32>, vector<2x8x8xf32>, vector<2x8x8xf32> -> vector<2x8x32xf32>
    %232 = vector.shape_cast %231 : vector<2x8x32xf32> to vector<16x32xf32>
    %c0_79 = arith.constant 0 : index
    %c0_80 = arith.constant 0 : index
    %233 = vector.load %arg11[%c0_79, %c0_80] : memref<32x32xf32, #tpu.memory_space<vmem>>, vector<32x32xf32>
    %cst_81 = arith.constant dense<0.000000e+00> : vector<16x32xf32>
    %234 = tpu.matmul %232, %233, %cst_81 {dimension_numbers = #tpu.dot_dimension_numbers<[1], [0], [0], [1], [0, 0, 1, 1], [], []>} : vector<16x32xf32>, vector<32x32xf32>, vector<16x32xf32> -> vector<16x32xf32>
    %c0_82 = arith.constant 0 : index
    %c0_83 = arith.constant 0 : index
    %235 = vector.load %arg12[%c0_82, %c0_83] : memref<1x32xf32, #tpu.memory_space<vmem>>, vector<1x32xf32>
    %236 = vector.broadcast %235 : vector<1x32xf32> to vector<16x32xf32>
    %237 = arith.addf %234, %236 : vector<16x32xf32>
    %238 = arith.addf %1, %237 : vector<16x32xf32>
    %c0_84 = arith.constant 0 : index
    %c0_85 = arith.constant 0 : index
    %239 = vector.load %arg13[%c0_84, %c0_85] : memref<1x32xf32, #tpu.memory_space<vmem>>, vector<1x32xf32>
    %c0_86 = arith.constant 0 : index
    %c0_87 = arith.constant 0 : index
    %240 = vector.load %arg14[%c0_86, %c0_87] : memref<1x32xf32, #tpu.memory_space<vmem>>, vector<1x32xf32>
    %cst_88 = arith.constant dense<0.000000e+00> : vector<16xf32>
    %241 = vector.multi_reduction <add>, %238, %cst_88 [1] : vector<16x32xf32> to vector<16xf32>
    %242 = vector.shape_cast %241 : vector<16xf32> to vector<16x1xf32>
    %cst_89 = arith.constant 3.200000e+01 : f32
    %243 = vector.broadcast %cst_89 : f32 to vector<16x1xf32>
    %244 = arith.divf %242, %243 : vector<16x1xf32>
    %245 = vector.broadcast %244 : vector<16x1xf32> to vector<16x32xf32>
    %246 = arith.subf %238, %245 : vector<16x32xf32>
    %247 = arith.mulf %246, %246 : vector<16x32xf32>
    %cst_90 = arith.constant dense<0.000000e+00> : vector<16xf32>
    %248 = vector.multi_reduction <add>, %247, %cst_90 [1] : vector<16x32xf32> to vector<16xf32>
    %249 = vector.shape_cast %248 : vector<16xf32> to vector<16x1xf32>
    %cst_91 = arith.constant 3.100000e+01 : f32
    %250 = vector.broadcast %cst_91 : f32 to vector<16x1xf32>
    %251 = arith.divf %249, %250 : vector<16x1xf32>
    %252 = vector.broadcast %244 : vector<16x1xf32> to vector<16x32xf32>
    %253 = arith.subf %238, %252 : vector<16x32xf32>
    %254 = vector.broadcast %239 : vector<1x32xf32> to vector<16x32xf32>
    %255 = arith.mulf %254, %253 : vector<16x32xf32>
    %256 = math.sqrt %251 : vector<16x1xf32>
    %cst_92 = arith.constant 9.99999997E-7 : f32
    %257 = vector.broadcast %cst_92 : f32 to vector<16x1xf32>
    %258 = arith.addf %256, %257 : vector<16x1xf32>
    %259 = vector.broadcast %258 : vector<16x1xf32> to vector<16x32xf32>
    %260 = arith.divf %255, %259 : vector<16x32xf32>
    %261 = vector.broadcast %240 : vector<1x32xf32> to vector<16x32xf32>
    %262 = arith.addf %260, %261 : vector<16x32xf32>
    %c0_93 = arith.constant 0 : index
    %c0_94 = arith.constant 0 : index
    %263 = vector.load %arg15[%c0_93, %c0_94] : memref<32x64xf32, #tpu.memory_space<vmem>>, vector<32x64xf32>
    %cst_95 = arith.constant dense<0.000000e+00> : vector<16x64xf32>
    %264 = tpu.matmul %262, %263, %cst_95 {dimension_numbers = #tpu.dot_dimension_numbers<[1], [0], [0], [1], [0, 0, 1, 1], [], []>} : vector<16x32xf32>, vector<32x64xf32>, vector<16x64xf32> -> vector<16x64xf32>
    %c0_96 = arith.constant 0 : index
    %c0_97 = arith.constant 0 : index
    %265 = vector.load %arg16[%c0_96, %c0_97] : memref<1x64xf32, #tpu.memory_space<vmem>>, vector<1x64xf32>
    %266 = vector.broadcast %265 : vector<1x64xf32> to vector<16x64xf32>
    %267 = arith.addf %264, %266 : vector<16x64xf32>
    %cst_98 = arith.constant 0.000000e+00 : f32
    %268 = vector.broadcast %cst_98 : f32 to vector<16x64xf32>
    %269 = arith.maximumf %267, %268 : vector<16x64xf32>
    %c0_99 = arith.constant 0 : index
    %c0_100 = arith.constant 0 : index
    %270 = vector.load %arg17[%c0_99, %c0_100] : memref<64x32xf32, #tpu.memory_space<vmem>>, vector<64x32xf32>
    %cst_101 = arith.constant dense<0.000000e+00> : vector<16x32xf32>
    %271 = tpu.matmul %269, %270, %cst_101 {dimension_numbers = #tpu.dot_dimension_numbers<[1], [0], [0], [1], [0, 0, 1, 1], [], []>} : vector<16x64xf32>, vector<64x32xf32>, vector<16x32xf32> -> vector<16x32xf32>
    %c0_102 = arith.constant 0 : index
    %c0_103 = arith.constant 0 : index
    %272 = vector.load %arg18[%c0_102, %c0_103] : memref<1x32xf32, #tpu.memory_space<vmem>>, vector<1x32xf32>
    %273 = vector.broadcast %272 : vector<1x32xf32> to vector<16x32xf32>
    %274 = arith.addf %271, %273 : vector<16x32xf32>
    %275 = arith.addf %238, %274 : vector<16x32xf32>
    %276 = vector.shape_cast %275 : vector<16x32xf32> to vector<2x8x32xf32>
    %c0_104 = arith.constant 0 : index
    %c0_105 = arith.constant 0 : index
    %c0_106 = arith.constant 0 : index
    %277 = vector.load %arg19[%c0_104, %c0_105, %c0_106] : memref<2x8x32xf32, #tpu.memory_space<vmem>>, vector<2x8x32xf32>
    tpu.vector_store %arg19[%c0_104, %c0_105, %c0_106], %276 {strides = array<i32>} : memref<2x8x32xf32, #tpu.memory_space<vmem>>, vector<2x8x32xf32>,
    return
  }
}

</mosaic_0001>

<llo_original>
// kernel: encoder_layer_forward.1
$region0: #{encoder_layer_forward.1}
  #allocation0 [shape = 'u32[]', space=smem, size = 0x4, offset = 0x4, fixed_abs, tag = 'smem constant byte address 0x4 - core index']
  #allocation1 [shape = 'u32[144,128]{1,0:T(1,128)}', space=vmem, size = 0x12000, scoped, tag = 'internal scratch']
  %s0 = inlined_call_operand.hbm [shape: f32[2,8,32], index: 0, kind: input, shape index: {}]
  %s1 = inlined_call_operand.hbm [shape: f32[2,8], index: 1, kind: input, shape index: {}]
  %s2 = inlined_call_operand.hbm [shape: f32[2,8,8], index: 2, kind: input, shape index: {}]
  %s3 = inlined_call_operand.hbm [shape: f32[1,32], index: 3, kind: input, shape index: {}]
  %s4 = inlined_call_operand.hbm [shape: f32[1,32], index: 4, kind: input, shape index: {}]
  %s5 = inlined_call_operand.vmem [shape: f32[32,64], index: 5, kind: input, shape index: {}]
  %s6 = inlined_call_operand.hbm [shape: f32[1,64], index: 6, kind: input, shape index: {}]
  %s7 = inlined_call_operand.hbm [shape: f32[1,32], index: 7, kind: input, shape index: {}]
  %s8 = inlined_call_operand.hbm [shape: f32[1,32], index: 8, kind: input, shape index: {}]
  %s9 = inlined_call_operand.vmem [shape: f32[32,96], index: 9, kind: input, shape index: {}]
  %s10 = inlined_call_operand.hbm [shape: f32[1,96], index: 10, kind: input, shape index: {}]
  %s11 = inlined_call_operand.vmem [shape: f32[32,32], index: 11, kind: input, shape index: {}]
  %s12 = inlined_call_operand.hbm [shape: f32[1,32], index: 12, kind: input, shape index: {}]
  %s13 = inlined_call_operand.hbm [shape: f32[1,32], index: 13, kind: input, shape index: {}]
  %s14 = inlined_call_operand.hbm [shape: f32[1,32], index: 14, kind: input, shape index: {}]
  %s15 = inlined_call_operand.vmem [shape: f32[32,64], index: 15, kind: input, shape index: {}]
  %s16 = inlined_call_operand.hbm [shape: f32[1,64], index: 16, kind: input, shape index: {}]
  %s17 = inlined_call_operand.vmem [shape: f32[64,32], index: 17, kind: input, shape index: {}]
  %s18 = inlined_call_operand.hbm [shape: f32[1,32], index: 18, kind: input, shape index: {}]
  %s19 = inlined_call_operand.hbm [shape: f32[2,8,32], index: 19, kind: output, shape index: {0}]
  %s20 = inlined_call_operand.hbm [shape: f32[2,8,8], index: 20, kind: output, shape index: {1}]
  %s21 = inlined_call_operand.hbm [shape: f32[2,8,8], index: 21, kind: output, shape index: {2}]
  %22 = xla_tuple %s19, %s20, %s21
  %s23 = sld [smem:[#allocation0]]
  $region158: #{encoder_layer_forward.1} parent=0
    _
  %s25 = ssub.s32 1, %s23
  %s26 = scalar_select 0, %s25, %s23
  $region1: #{encoder_layer_forward.1} parent=0
    #allocation2 [shape = 'u8[8192]{0}', space=vmem, size = 0x2000, scoped, tag = 'input window, operand 0, single buffered']
    #allocation3 [shape = 's32[1]{0}', space=sflag, size = 0x4, scoped, tag = 'scoped memory for encoder_layer_forward.1']
    #allocation4 [shape = 's32[1]{0}', space=sflag, size = 0x4, scoped, tag = 'scoped memory for encoder_layer_forward.1']
    #allocation5 [shape = 'u8[1024]{0}', space=vmem, size = 0x400, scoped, tag = 'input window, operand 1, single buffered']
    #allocation6 [shape = 's32[1]{0}', space=sflag, size = 0x4, scoped, tag = 'scoped memory for encoder_layer_forward.1']
    #allocation7 [shape = 'u8[8192]{0}', space=vmem, size = 0x2000, scoped, tag = 'input window, operand 2, single buffered']
    #allocation8 [shape = 'u8[512]{0}', space=vmem, size = 0x400, scoped, tag = 'input window, operand 3, single buffered']
    #allocation9 [shape = 's32[1]{0}', space=sflag, size = 0x4, scoped, tag = 'scoped memory for encoder_layer_forward.1']
    #allocation10 [shape = 'u8[512]{0}', space=vmem, size = 0x400, scoped, tag = 'input window, operand 4, single buffered']
    #allocation11 [shape = 'u8[512]{0}', space=vmem, size = 0x400, scoped, tag = 'input window, operand 6, single buffered']
    #allocation12 [shape = 's32[1]{0}', space=sflag, size = 0x4, scoped, tag = 'scoped memory for encoder_layer_forward.1']
    #allocation13 [shape = 'u8[512]{0}', space=vmem, size = 0x400, scoped, tag = 'input window, operand 7, single buffered']
    #allocation14 [shape = 'u8[512]{0}', space=vmem, size = 0x400, scoped, tag = 'input window, operand 8, single buffered']
    #allocation15 [shape = 's32[1]{0}', space=sflag, size = 0x4, scoped, tag = 'scoped memory for encoder_layer_forward.1']
    #allocation16 [shape = 'u8[512]{0}', space=vmem, size = 0x400, scoped, tag = 'input window, operand 10, single buffered']
    #allocation17 [shape = 'u8[512]{0}', space=vmem, size = 0x400, scoped, tag = 'input window, operand 12, single buffered']
    #allocation18 [shape = 's32[1]{0}', space=sflag, size = 0x4, scoped, tag = 'scoped memory for encoder_layer_forward.1']
    #allocation19 [shape = 'u8[512]{0}', space=vmem, size = 0x400, scoped, tag = 'input window, operand 13, single buffered']
    #allocation20 [shape = 'u8[512]{0}', space=vmem, size = 0x400, scoped, tag = 'input window, operand 14, single buffered']
    #allocation21 [shape = 's32[1]{0}', space=sflag, size = 0x4, scoped, tag = 'scoped memory for encoder_layer_forward.1']
    #allocation22 [shape = 'u8[512]{0}', space=vmem, size = 0x400, scoped, tag = 'input window, operand 16, single buffered']
    #allocation23 [shape = 'u8[512]{0}', space=vmem, size = 0x400, scoped, tag = 'input window, operand 18, single buffered']
    #allocation24 [shape = 's32[1]{0}', space=sflag, size = 0x4, scoped, tag = 'scoped memory for encoder_layer_forward.1']
    #allocation25 [shape = 'u8[8192]{0}', space=vmem, size = 0x2000, scoped, tag = 'output window, operand 0, single buffered']
    #allocation26 [shape = 'u8[8192]{0}', space=vmem, size = 0x2000, scoped, tag = 'output window, operand 1, single buffered']
    #allocation27 [shape = 's32[1]{0}', space=sflag, size = 0x4, scoped, tag = 'scoped memory for encoder_layer_forward.1']
    #allocation28 [shape = 'u8[8192]{0}', space=vmem, size = 0x2000, scoped, tag = 'output window, operand 2, single buffered']
    %27 = vsyncpa [#allocation3], 0
    %28 = vsyncpa [#allocation6], 0
    %29 = vsyncpa [#allocation9], 0
    %30 = vsyncpa [#allocation12], 0
    %31 = vsyncpa [#allocation15], 0
    %32 = vsyncpa [#allocation18], 0
    %33 = vsyncpa [#allocation21], 0
    %34 = vsyncpa [#allocation24], 0
    %35 = vsyncpa [#allocation4], 0
    %36 = vsyncpa [#allocation27], 0
    // Predicated region
    $region2: #{encoder_layer_forward.1} parent=1 // pred_check
      _
    $region3: #{encoder_layer_forward.1} parent=1 // pred_check_branch
      %38 = sbr.rel (0) target = $region5
    $region4: #{encoder_layer_forward.1} parent=1 // pred_region
      %s40 = ssub.s32 256, 256
      %41 = vsyncadd [#allocation3], %s40
      %s42 = sshll.u32 [#allocation2], 4
      %s43 = int_to_ptr.vmem [resolvable:$true] %s42
      %48 = dma.hbm_to_vmem [thread:$0]  %s0, 256, %s43, [#allocation3], 128, 128, 8
    $region5: #{encoder_layer_forward.1} parent=1 // pred_fallthru
      _
    // Predicated region
    $region6: #{encoder_layer_forward.1} parent=1 // pred_check
      _
    $region7: #{encoder_layer_forward.1} parent=1 // pred_check_branch
      %50 = sbr.rel (0) target = $region9
    $region8: #{encoder_layer_forward.1} parent=1 // pred_region
      %s52 = ssub.s32 32, 32
      %53 = vsyncadd [#allocation6], %s52
      %s55 = sshll.u32 [#allocation5], 4
      %s56 = int_to_ptr.vmem [resolvable:$true] %s55
      %58 = dma.hbm_to_vmem [thread:$0]  %s1, 32, %s56, [#allocation6]
    $region9: #{encoder_layer_forward.1} parent=1 // pred_fallthru
      _
    // Predicated region
    $region10: #{encoder_layer_forward.1} parent=1 // pred_check
      _
    $region11: #{encoder_layer_forward.1} parent=1 // pred_check_branch
      %60 = sbr.rel (0) target = $region13
    $region12: #{encoder_layer_forward.1} parent=1 // pred_region
      %s62 = ssub.s32 256, 256
      %63 = vsyncadd [#allocation6], %s62
      %s64 = sshll.u32 [#allocation7], 4
      %s65 = int_to_ptr.vmem [resolvable:$true] %s64
      %70 = dma.hbm_to_vmem [thread:$0]  %s2, 256, %s65, [#allocation6], 128, 128, 8
    $region13: #{encoder_layer_forward.1} parent=1 // pred_fallthru
      _
    // Predicated region
    $region14: #{encoder_layer_forward.1} parent=1 // pred_check
      _
    $region15: #{encoder_layer_forward.1} parent=1 // pred_check_branch
      %72 = sbr.rel (0) target = $region17
    $region16: #{encoder_layer_forward.1} parent=1 // pred_region
      %s74 = ssub.s32 16, 16
      %75 = vsyncadd [#allocation9], %s74
      %s77 = sshll.u32 [#allocation8], 4
      %s78 = int_to_ptr.vmem [resolvable:$true] %s77
      %80 = dma.hbm_to_vmem [thread:$0]  %s3, 16, %s78, [#allocation9]
    $region17: #{encoder_layer_forward.1} parent=1 // pred_fallthru
      _
    // Predicated region
    $region18: #{encoder_layer_forward.1} parent=1 // pred_check
      _
    $region19: #{encoder_layer_forward.1} parent=1 // pred_check_branch
      %82 = sbr.rel (0) target = $region21
    $region20: #{encoder_layer_forward.1} parent=1 // pred_region
      %s84 = ssub.s32 16, 16
      %85 = vsyncadd [#allocation9], %s84
      %s87 = sshll.u32 [#allocation10], 4
      %s88 = int_to_ptr.vmem [resolvable:$true] %s87
      %90 = dma.hbm_to_vmem [thread:$0]  %s4, 16, %s88, [#allocation9]
    $region21: #{encoder_layer_forward.1} parent=1 // pred_fallthru
      _
    // Predicated region
    $region22: #{encoder_layer_forward.1} parent=1 // pred_check
      _
    $region23: #{encoder_layer_forward.1} parent=1 // pred_check_branch
      %92 = sbr.rel (0) target = $region25
    $region24: #{encoder_layer_forward.1} parent=1 // pred_region
      _
    $region25: #{encoder_layer_forward.1} parent=1 // pred_fallthru
      _
    // Predicated region
    $region26: #{encoder_layer_forward.1} parent=1 // pred_check
      _
    $region27: #{encoder_layer_forward.1} parent=1 // pred_check_branch
      %94 = sbr.rel (0) target = $region29
    $region28: #{encoder_layer_forward.1} parent=1 // pred_region
      %s96 = ssub.s32 16, 16
      %97 = vsyncadd [#allocation12], %s96
      %s99 = sshll.u32 [#allocation11], 4
      %s100 = int_to_ptr.vmem [resolvable:$true] %s99
      %102 = dma.hbm_to_vmem [thread:$0]  %s6, 16, %s100, [#allocation12]
    $region29: #{encoder_layer_forward.1} parent=1 // pred_fallthru
      _
    // Predicated region
    $region30: #{encoder_layer_forward.1} parent=1 // pred_check
      _
    $region31: #{encoder_layer_forward.1} parent=1 // pred_check_branch
      %104 = sbr.rel (0) target = $region33
    $region32: #{encoder_layer_forward.1} parent=1 // pred_region
      %s106 = ssub.s32 16, 16
      %107 = vsyncadd [#allocation12], %s106
      %s109 = sshll.u32 [#allocation13], 4
      %s110 = int_to_ptr.vmem [resolvable:$true] %s109
      %112 = dma.hbm_to_vmem [thread:$0]  %s7, 16, %s110, [#allocation12]
    $region33: #{encoder_layer_forward.1} parent=1 // pred_fallthru
      _
    // Predicated region
    $region34: #{encoder_layer_forward.1} parent=1 // pred_check
      _
    $region35: #{encoder_layer_forward.1} parent=1 // pred_check_branch
      %114 = sbr.rel (0) target = $region37
    $region36: #{encoder_layer_forward.1} parent=1 // pred_region
      %s116 = ssub.s32 16, 16
      %117 = vsyncadd [#allocation15], %s116
      %s119 = sshll.u32 [#allocation14], 4
      %s120 = int_to_ptr.vmem [resolvable:$true] %s119
      %122 = dma.hbm_to_vmem [thread:$0]  %s8, 16, %s120, [#allocation15]
    $region37: #{encoder_layer_forward.1} parent=1 // pred_fallthru
      _
    // Predicated region
    $region38: #{encoder_layer_forward.1} parent=1 // pred_check
      _
    $region39: #{encoder_layer_forward.1} parent=1 // pred_check_branch
      %124 = sbr.rel (0) target = $region41
    $region40: #{encoder_layer_forward.1} parent=1 // pred_region
      _
    $region41: #{encoder_layer_forward.1} parent=1 // pred_fallthru
      _
    // Predicated region
    $region42: #{encoder_layer_forward.1} parent=1 // pred_check
      _
    $region43: #{encoder_layer_forward.1} parent=1 // pred_check_branch
      %126 = sbr.rel (0) target = $region45
    $region44: #{encoder_layer_forward.1} parent=1 // pred_region
      %s128 = ssub.s32 16, 16
      %129 = vsyncadd [#allocation15], %s128
      %s131 = sshll.u32 [#allocation16], 4
      %s132 = int_to_ptr.vmem [resolvable:$true] %s131
      %134 = dma.hbm_to_vmem [thread:$0]  %s10, 16, %s132, [#allocation15]
    $region45: #{encoder_layer_forward.1} parent=1 // pred_fallthru
      _
    // Predicated region
    $region46: #{encoder_layer_forward.1} parent=1 // pred_check
      _
    $region47: #{encoder_layer_forward.1} parent=1 // pred_check_branch
      %136 = sbr.rel (0) target = $region49
    $region48: #{encoder_layer_forward.1} parent=1 // pred_region
      _
    $region49: #{encoder_layer_forward.1} parent=1 // pred_fallthru
      _
    // Predicated region
    $region50: #{encoder_layer_forward.1} parent=1 // pred_check
      _
    $region51: #{encoder_layer_forward.1} parent=1 // pred_check_branch
      %138 = sbr.rel (0) target = $region53
    $region52: #{encoder_layer_forward.1} parent=1 // pred_region
      %s140 = ssub.s32 16, 16
      %141 = vsyncadd [#allocation18], %s140
      %s143 = sshll.u32 [#allocation17], 4
      %s144 = int_to_ptr.vmem [resolvable:$true] %s143
      %146 = dma.hbm_to_vmem [thread:$0]  %s12, 16, %s144, [#allocation18]
    $region53: #{encoder_layer_forward.1} parent=1 // pred_fallthru
      _
    // Predicated region
    $region54: #{encoder_layer_forward.1} parent=1 // pred_check
      _
    $region55: #{encoder_layer_forward.1} parent=1 // pred_check_branch
      %148 = sbr.rel (0) target = $region57
    $region56: #{encoder_layer_forward.1} parent=1 // pred_region
      %s150 = ssub.s32 16, 16
      %151 = vsyncadd [#allocation18], %s150
      %s153 = sshll.u32 [#allocation19], 4
      %s154 = int_to_ptr.vmem [resolvable:$true] %s153
      %156 = dma.hbm_to_vmem [thread:$0]  %s13, 16, %s154, [#allocation18]
    $region57: #{encoder_layer_forward.1} parent=1 // pred_fallthru
      _
    // Predicated region
    $region58: #{encoder_layer_forward.1} parent=1 // pred_check
      _
    $region59: #{encoder_layer_forward.1} parent=1 // pred_check_branch
      %158 = sbr.rel (0) target = $region61
    $region60: #{encoder_layer_forward.1} parent=1 // pred_region
      %s160 = ssub.s32 16, 16
      %161 = vsyncadd [#allocation21], %s160
      %s163 = sshll.u32 [#allocation20], 4
      %s164 = int_to_ptr.vmem [resolvable:$true] %s163
      %166 = dma.hbm_to_vmem [thread:$0]  %s14, 16, %s164, [#allocation21]
    $region61: #{encoder_layer_forward.1} parent=1 // pred_fallthru
      _
    // Predicated region
    $region62: #{encoder_layer_forward.1} parent=1 // pred_check
      _
    $region63: #{encoder_layer_forward.1} parent=1 // pred_check_branch
      %168 = sbr.rel (0) target = $region65
    $region64: #{encoder_layer_forward.1} parent=1 // pred_region
      _
    $region65: #{encoder_layer_forward.1} parent=1 // pred_fallthru
      _
    // Predicated region
    $region66: #{encoder_layer_forward.1} parent=1 // pred_check
      _
    $region67: #{encoder_layer_forward.1} parent=1 // pred_check_branch
      %170 = sbr.rel (0) target = $region69
    $region68: #{encoder_layer_forward.1} parent=1 // pred_region
      %s172 = ssub.s32 16, 16
      %173 = vsyncadd [#allocation21], %s172
      %s175 = sshll.u32 [#allocation22], 4
      %s176 = int_to_ptr.vmem [resolvable:$true] %s175
      %178 = dma.hbm_to_vmem [thread:$0]  %s16, 16, %s176, [#allocation21]
    $region69: #{encoder_layer_forward.1} parent=1 // pred_fallthru
      _
    // Predicated region
    $region70: #{encoder_layer_forward.1} parent=1 // pred_check
      _
    $region71: #{encoder_layer_forward.1} parent=1 // pred_check_branch
      %180 = sbr.rel (0) target = $region73
    $region72: #{encoder_layer_forward.1} parent=1 // pred_region
      _
    $region73: #{encoder_layer_forward.1} parent=1 // pred_fallthru
      _
    // Predicated region
    $region74: #{encoder_layer_forward.1} parent=1 // pred_check
      _
    $region75: #{encoder_layer_forward.1} parent=1 // pred_check_branch
      %182 = sbr.rel (0) target = $region77
    $region76: #{encoder_layer_forward.1} parent=1 // pred_region
      %s184 = ssub.s32 16, 16
      %185 = vsyncadd [#allocation24], %s184
      %s187 = sshll.u32 [#allocation23], 4
      %s188 = int_to_ptr.vmem [resolvable:$true] %s187
      %190 = dma.hbm_to_vmem [thread:$0]  %s18, 16, %s188, [#allocation24]
    $region77: #{encoder_layer_forward.1} parent=1 // pred_fallthru
      _
    // Predicated region
    $region78: #{encoder_layer_forward.1} parent=1 // pred_check
      _
    $region79: #{encoder_layer_forward.1} parent=1 // pred_check_branch
      %192 = sbr.rel (0) target = $region81
    $region80: #{encoder_layer_forward.1} parent=1 // pred_region
      %193 = dma.done [#allocation3], 256
    $region81: #{encoder_layer_forward.1} parent=1 // pred_fallthru
      _
    // Predicated region
    $region82: #{encoder_layer_forward.1} parent=1 // pred_check
      _
    $region83: #{encoder_layer_forward.1} parent=1 // pred_check_branch
      %195 = sbr.rel (0) target = $region85
    $region84: #{encoder_layer_forward.1} parent=1 // pred_region
      %196 = dma.done [#allocation6], 32
    $region85: #{encoder_layer_forward.1} parent=1 // pred_fallthru
      _
    // Predicated region
    $region86: #{encoder_layer_forward.1} parent=1 // pred_check
      _
    $region87: #{encoder_layer_forward.1} parent=1 // pred_check_branch
      %198 = sbr.rel (0) target = $region89
    $region88: #{encoder_layer_forward.1} parent=1 // pred_region
      %199 = dma.done [#allocation6], 256
    $region89: #{encoder_layer_forward.1} parent=1 // pred_fallthru
      _
    // Predicated region
    $region90: #{encoder_layer_forward.1} parent=1 // pred_check
      _
    $region91: #{encoder_layer_forward.1} parent=1 // pred_check_branch
      %201 = sbr.rel (0) target = $region93
    $region92: #{encoder_layer_forward.1} parent=1 // pred_region
      %202 = dma.done [#allocation9], 16
    $region93: #{encoder_layer_forward.1} parent=1 // pred_fallthru
      _
    // Predicated region
    $region94: #{encoder_layer_forward.1} parent=1 // pred_check
      _
    $region95: #{encoder_layer_forward.1} parent=1 // pred_check_branch
      %204 = sbr.rel (0) target = $region97
    $region96: #{encoder_layer_forward.1} parent=1 // pred_region
      %205 = dma.done [#allocation9], 16
    $region97: #{encoder_layer_forward.1} parent=1 // pred_fallthru
      _
    // Predicated region
    $region98: #{encoder_layer_forward.1} parent=1 // pred_check
      _
    $region99: #{encoder_layer_forward.1} parent=1 // pred_check_branch
      %207 = sbr.rel (0) target = $region101
    $region100: #{encoder_layer_forward.1} parent=1 // pred_region
      %208 = dma.done [#allocation12], 16
    $region101: #{encoder_layer_forward.1} parent=1 // pred_fallthru
      _
    // Predicated region
    $region102: #{encoder_layer_forward.1} parent=1 // pred_check
      _
    $region103: #{encoder_layer_forward.1} parent=1 // pred_check_branch
      %210 = sbr.rel (0) target = $region105
    $region104: #{encoder_layer_forward.1} parent=1 // pred_region
      %211 = dma.done [#allocation12], 16
    $region105: #{encoder_layer_forward.1} parent=1 // pred_fallthru
      _
    // Predicated region
    $region106: #{encoder_layer_forward.1} parent=1 // pred_check
      _
    $region107: #{encoder_layer_forward.1} parent=1 // pred_check_branch
      %213 = sbr.rel (0) target = $region109
    $region108: #{encoder_layer_forward.1} parent=1 // pred_region
      %214 = dma.done [#allocation15], 16
    $region109: #{encoder_layer_forward.1} parent=1 // pred_fallthru
      _
    // Predicated region
    $region110: #{encoder_layer_forward.1} parent=1 // pred_check
      _
    $region111: #{encoder_layer_forward.1} parent=1 // pred_check_branch
      %216 = sbr.rel (0) target = $region113
    $region112: #{encoder_layer_forward.1} parent=1 // pred_region
      %217 = dma.done [#allocation15], 16
    $region113: #{encoder_layer_forward.1} parent=1 // pred_fallthru
      _
    // Predicated region
    $region114: #{encoder_layer_forward.1} parent=1 // pred_check
      _
    $region115: #{encoder_layer_forward.1} parent=1 // pred_check_branch
      %219 = sbr.rel (0) target = $region117
    $region116: #{encoder_layer_forward.1} parent=1 // pred_region
      %220 = dma.done [#allocation18], 16
    $region117: #{encoder_layer_forward.1} parent=1 // pred_fallthru
      _
    // Predicated region
    $region118: #{encoder_layer_forward.1} parent=1 // pred_check
      _
    $region119: #{encoder_layer_forward.1} parent=1 // pred_check_branch
      %222 = sbr.rel (0) target = $region121
    $region120: #{encoder_layer_forward.1} parent=1 // pred_region
      %223 = dma.done [#allocation18], 16
    $region121: #{encoder_layer_forward.1} parent=1 // pred_fallthru
      _
    // Predicated region
    $region122: #{encoder_layer_forward.1} parent=1 // pred_check
      _
    $region123: #{encoder_layer_forward.1} parent=1 // pred_check_branch
      %225 = sbr.rel (0) target = $region125
    $region124: #{encoder_layer_forward.1} parent=1 // pred_region
      %226 = dma.done [#allocation21], 16
    $region125: #{encoder_layer_forward.1} parent=1 // pred_fallthru
      _
    // Predicated region
    $region126: #{encoder_layer_forward.1} parent=1 // pred_check
      _
    $region127: #{encoder_layer_forward.1} parent=1 // pred_check_branch
      %228 = sbr.rel (0) target = $region129
    $region128: #{encoder_layer_forward.1} parent=1 // pred_region
      %229 = dma.done [#allocation21], 16
    $region129: #{encoder_layer_forward.1} parent=1 // pred_fallthru
      _
    // Predicated region
    $region130: #{encoder_layer_forward.1} parent=1 // pred_check
      _
    $region131: #{encoder_layer_forward.1} parent=1 // pred_check_branch
      %231 = sbr.rel (0) target = $region133
    $region132: #{encoder_layer_forward.1} parent=1 // pred_region
      %232 = dma.done [#allocation24], 16
    $region133: #{encoder_layer_forward.1} parent=1 // pred_fallthru
      _
    %v233 = vld [vmem:[#allocation2] sm:$0xff]
    %v234 = vld [vmem:[#allocation2 + $0x8] sm:$0xff]
    %v235 = vld [vmem:[#allocation5] sm:$0x3]
    %v238 = vunpack.c.l.s4 1966171168
    %v239 = vunpack.c.0.s8 %v238
    %v240 = vlaneseq
    %v241 = vshrl.u32 %v240, 7
    %v242 = vsub.s32 %v239, %v241
    %v243 = vrot.slane %v235, %v242
    %v244 = vcombine.high %v243, %v243
    %v246 = vunpack.c.l.s4 1966171168
    %v247 = vunpack.c.0.s8 %v246
    %v248 = vlaneseq
    %v249 = vshrl.u32 %v248, 7
    %v250 = vsub.s32 %v247, %v249
    %v251 = vrot.slane %v243, %v250
    %v253 = vunpack.c.l.s4 1966171168
    %v254 = vunpack.c.0.s8 %v253
    %v255 = vlaneseq
    %v256 = vshrl.u32 %v255, 7
    %v257 = vsub.s32 %v254, %v256
    %v258 = vrot.slane %v244, %v257
    %vm261 = vcmp.gt.f32.partialorder %v251, 0.0
    %vm262 = vcmp.gt.f32.partialorder %v258, 0.0
    %v263 = vld [vmem:[#allocation7] sm:$0xff]
    %v264 = vld [vmem:[#allocation7 + $0x8] sm:$0xff]
    %v265 = vlaneseq
    %v266 = vshrl.u32 %v265, 7
    %v267 = vlaneseq
    %v268 = vand.u32 %v267, 127
    %v269 = vadd.s32 %v266, 1
    %vm270 = vcmp.eq.s32.totalorder %v268, %v269
    %v271 = vsub.s32 %v266, 1
    %vm272 = vcmp.eq.s32.totalorder %v268, %v271
    %vm273 = vcmp.eq.s32.totalorder %v268, %v266
    %vm274 = vcmp.gt.s32.totalorder %v268, %v266
    %vm275 = vcmp.ge.s32.totalorder %v268, %v266
    %v276 = vsel %vm275, 1, 0
    %v277 = vcvt.s32.f32 %v276
    %v278 = vld [vmem:[#allocation8] sm:$0x1]
    %v279 = vld [vmem:[#allocation10] sm:$0x1]
    %vm280 = vcmask 261120
    %v281 = vsel %vm280, %v233, 0.0
    %282 = vadd.xlane.f32.xlu0 %v281
    %v283 = vpop.xlane.xlu0 %282
    %v284 = vsel %vm280, %v234, 0.0
    %285 = vadd.xlane.f32.xlu0 %v284
    %v286 = vpop.xlane.xlu0 %285
    %v287 = vrcp.pop 32.0
    %v288 = vmul.f32 %v283, %v287
    %v289 = vmul.f32 %v286, %v287
    %v290 = vsub.f32 %v233, %v288
    %v291 = vsub.f32 %v234, %v289
    %v292 = vmul.f32 %v290, %v290
    %v293 = vmul.f32 %v291, %v291
    %v294 = vsel %vm280, %v292, 0.0
    %295 = vadd.xlane.f32.xlu0 %v294
    %v296 = vpop.xlane.xlu0 %295
    %v297 = vsel %vm280, %v293, 0.0
    %298 = vadd.xlane.f32.xlu0 %v297
    %v299 = vpop.xlane.xlu0 %298
    %v300 = vrcp.pop 31.0
    %v301 = vmul.f32 %v296, %v300
    %v302 = vmul.f32 %v299, %v300
    %v304 = vlaneseq
    %v305 = vshrl.u32 %v304, 7
    %v306 = vsub.s32 0, %v305
    %v307 = vrot.slane %v278, %v306
    %v309 = vmul.f32 %v307, %v290
    %v310 = vmul.f32 %v307, %v291
    %v311 = vrsqrt.pop %v301
    %v312 = vmul.f32 %v301, %v311
    %vm313 = vcmp.eq.f32.partialorder %v301, inf
    %v314 = vsel %vm313, %v301, %v312
    %vm315 = vcmp.eq.f32.partialorder %v301, 0.0
    %v316 = vand.u32 %v301, 2147483648
    %v317 = vsel %vm315, %v316, %v314
    %v318 = vrsqrt.pop %v302
    %v319 = vmul.f32 %v302, %v318
    %vm320 = vcmp.eq.f32.partialorder %v302, inf
    %v321 = vsel %vm320, %v302, %v319
    %vm322 = vcmp.eq.f32.partialorder %v302, 0.0
    %v323 = vand.u32 %v302, 2147483648
    %v324 = vsel %vm322, %v323, %v321
    %v325 = vadd.f32 %v317, 1e-06
    %v326 = vadd.f32 %v324, 1e-06
    %v327 = vrcp.pop %v325
    %v328 = vmul.f32 %v309, %v327
    %v329 = vrcp.pop %v326
    %v330 = vmul.f32 %v310, %v329
    %v332 = vlaneseq
    %v333 = vshrl.u32 %v332, 7
    %v334 = vsub.s32 0, %v333
    %v335 = vrot.slane %v279, %v334
    %v337 = vadd.f32 %v328, %v335
    %v338 = vadd.f32 %v330, %v335
    %v339 = vld [vmem:[%s5] sm:$0xff]
    %v340 = vld [vmem:[%s5 + $0x8] sm:$0xff]
    %v341 = vld [vmem:[%s5 + $0x10] sm:$0xff]
    %v342 = vld [vmem:[%s5 + $0x18] sm:$0xff]
    %v343 = vld [vmem:[#allocation11] sm:$0x1]
    %v345 = vlaneseq
    %v346 = vshrl.u32 %v345, 7
    %v347 = vsub.s32 0, %v346
    %v348 = vrot.slane %v343, %v347
    %v351 = vsel %vm280, %v337, 0
    %v354 = vsel %vm280, %v338, 0
    %356 = vmatprep.subr.mxu0 0.0
    %357 = vmatpush1.msra.mxu0 %v339
    %358 = vmatprep.subr.mxu0 0.0
    %359 = vmatpush1.msra.mxu0 %v340
    %360 = vmatprep.subr.mxu0 0.0
    %361 = vmatpush1.msra.mxu0 %v341
    %362 = vmatprep.subr.mxu0 0.0
    %363 = vmatpush1.msra.mxu0 %v342
    %364 = vmatprep.subr.mxu0 0.0
    %365 = vmatpush1.msra.mxu0 0.0
    %366 = vmatprep.subr.mxu0 0.0
    %367 = vmatpush1.msra.mxu0 0.0
    %368 = vmatprep.subr.mxu0 0.0
    %369 = vmatpush1.msra.mxu0 0.0
    %370 = vmatprep.subr.mxu0 0.0
    %371 = vmatpush1.msra.mxu0 0.0
    %372 = vmatprep.subr.mxu0 0.0
    %373 = vmatpush1.msra.mxu0 0.0
    %374 = vmatprep.subr.mxu0 0.0
    %375 = vmatpush1.msra.mxu0 0.0
    %376 = vmatprep.subr.mxu0 0.0
    %377 = vmatpush1.msra.mxu0 0.0
    %378 = vmatprep.subr.mxu0 0.0
    %379 = vmatpush1.msra.mxu0 0.0
    %380 = vmatprep.subr.mxu0 0.0
    %381 = vmatpush1.msra.mxu0 0.0
    %382 = vmatprep.subr.mxu0 0.0
    %383 = vmatpush1.msra.mxu0 0.0
    %384 = vmatprep.subr.mxu0 0.0
    %385 = vmatpush1.msra.mxu0 0.0
    %386 = vmatprep.subr.mxu0 0.0
    %387 = vmatpush1.msra.mxu0 0.0
    %388 = vmatprep.subr.mxu0 0.0
    %389 = vmatpush1.msra.mxu0 0.0
    %390 = vmatprep.subr.mxu0 0.0
    %391 = vmatpush1.msra.mxu0 0.0
    %392 = vmatprep.subr.mxu0 0.0
    %393 = vmatpush1.msra.mxu0 0.0
    %394 = vmatprep.subr.mxu0 0.0
    %395 = vmatpush1.msra.mxu0 0.0
    %396 = vmatprep.subr.mxu0 0.0
    %397 = vmatpush1.msra.mxu0 0.0
    %398 = vmatprep.subr.mxu0 0.0
    %399 = vmatpush1.msra.mxu0 0.0
    %400 = vmatprep.subr.mxu0 0.0
    %401 = vmatpush1.msra.mxu0 0.0
    %402 = vmatprep.subr.mxu0 0.0
    %403 = vmatpush1.msra.mxu0 0.0
    %404 = vmatprep.subr.mxu0 0.0
    %405 = vmatpush1.msra.mxu0 0.0
    %406 = vmatprep.subr.mxu0 0.0
    %407 = vmatpush1.msra.mxu0 0.0
    %408 = vmatprep.subr.mxu0 0.0
    %409 = vmatpush1.msra.mxu0 0.0
    %410 = vmatprep.subr.mxu0 0.0
    %411 = vmatpush1.msra.mxu0 0.0
    %412 = vmatprep.subr.mxu0 0.0
    %413 = vmatpush1.msra.mxu0 0.0
    %414 = vmatprep.subr.mxu0 0.0
    %415 = vmatpush1.msra.mxu0 0.0
    %416 = vmatprep.subr.mxu0 0.0
    %417 = vmatpush1.msra.mxu0 0.0
    %418 = vmatprep.subr.mxu0 0.0
    %419 = vmatpush1.msra.mxu0 0.0
    %420 = vmatprep.mubr.f32.mxu0 0.0
    %421 = vmatmul.mubr.f32.gmra.mrb[0].mxu0 %v351
    %v422 = vpop.f32.mrb[0].mxu0
    %v423 = vadd.f32 %v348, %v422
    %v424 = vpop.f32.mrb[0].mxu0
    %425 = vmatprep.mubr.f32.mxu0 0.0
    %426 = vmatmul.mubr.f32.gmra.mrb[0].mxu0 %v354
    %v427 = vpop.f32.mrb[0].mxu0
    %v428 = vadd.f32 %v348, %v427
    %v429 = vpop.f32.mrb[0].mxu0
    %430 = vdwg.mxu0
    %432 = vrot.lane.b32.xlu0 %v423, 96
    %v433 = vpop.permute.xlu0 %432
    %v434 = vsel %vm280, %v433, 0
    %v436 = vsel %vm280, %v423, 0
    %438 = vmatprep.subr.mxu0 0.0
    %439 = vmatpush1.xpose.msra.mxu0 %v436
    %440 = vmatprep.subr.mxu0 0.0
    %441 = vmatpush1.xpose.msra.mxu0 0.0
    %442 = vmatprep.subr.mxu0 0.0
    %443 = vmatpush1.xpose.msra.mxu0 0.0
    %444 = vmatprep.subr.mxu0 0.0
    %445 = vmatpush1.xpose.msra.mxu0 0.0
    %446 = vmatprep.subr.mxu0 0.0
    %447 = vmatpush1.xpose.msra.mxu0 0.0
    %448 = vmatprep.subr.mxu0 0.0
    %449 = vmatpush1.xpose.msra.mxu0 0.0
    %450 = vmatprep.subr.mxu0 0.0
    %451 = vmatpush1.xpose.msra.mxu0 0.0
    %452 = vmatprep.subr.mxu0 0.0
    %453 = vmatpush1.xpose.msra.mxu0 0.0
    %454 = vmatprep.subr.mxu0 0.0
    %455 = vmatpush1.xpose.msra.mxu0 0.0
    %456 = vmatprep.subr.mxu0 0.0
    %457 = vmatpush1.xpose.msra.mxu0 0.0
    %458 = vmatprep.subr.mxu0 0.0
    %459 = vmatpush1.xpose.msra.mxu0 0.0
    %460 = vmatprep.subr.mxu0 0.0
    %461 = vmatpush1.xpose.msra.mxu0 0.0
    %462 = vmatprep.subr.mxu0 0.0
    %463 = vmatpush1.xpose.msra.mxu0 0.0
    %464 = vmatprep.subr.mxu0 0.0
    %465 = vmatpush1.xpose.msra.mxu0 0.0
    %466 = vmatprep.subr.mxu0 0.0
    %467 = vmatpush1.xpose.msra.mxu0 0.0
    %468 = vmatprep.subr.mxu0 0.0
    %469 = vmatpush1.xpose.msra.mxu0 0.0
    %470 = vmatprep.subr.mxu0 0.0
    %471 = vmatpush1.xpose.msra.mxu0 0.0
    %472 = vmatprep.subr.mxu0 0.0
    %473 = vmatpush1.xpose.msra.mxu0 0.0
    %474 = vmatprep.subr.mxu0 0.0
    %475 = vmatpush1.xpose.msra.mxu0 0.0
    %476 = vmatprep.subr.mxu0 0.0
    %477 = vmatpush1.xpose.msra.mxu0 0.0
    %478 = vmatprep.subr.mxu0 0.0
    %479 = vmatpush1.xpose.msra.mxu0 0.0
    %480 = vmatprep.subr.mxu0 0.0
    %481 = vmatpush1.xpose.msra.mxu0 0.0
    %482 = vmatprep.subr.mxu0 0.0
    %483 = vmatpush1.xpose.msra.mxu0 0.0
    %484 = vmatprep.subr.mxu0 0.0
    %485 = vmatpush1.xpose.msra.mxu0 0.0
    %486 = vmatprep.subr.mxu0 0.0
    %487 = vmatpush1.xpose.msra.mxu0 0.0
    %488 = vmatprep.subr.mxu0 0.0
    %489 = vmatpush1.xpose.msra.mxu0 0.0
    %490 = vmatprep.subr.mxu0 0.0
    %491 = vmatpush1.xpose.msra.mxu0 0.0
    %492 = vmatprep.subr.mxu0 0.0
    %493 = vmatpush1.xpose.msra.mxu0 0.0
    %494 = vmatprep.subr.mxu0 0.0
    %495 = vmatpush1.xpose.msra.mxu0 0.0
    %496 = vmatprep.subr.mxu0 0.0
    %497 = vmatpush1.xpose.msra.mxu0 0.0
    %498 = vmatprep.subr.mxu0 0.0
    %499 = vmatpush1.xpose.msra.mxu0 0.0
    %500 = vmatprep.subr.mxu0 0.0
    %501 = vmatpush1.xpose.msra.mxu0 0.0
    %502 = vmatprep.mubr.f32.mxu0 0.0
    %503 = vmatmul.mubr.f32.gmra.mrb[0].mxu0 %v434
    %v504 = vpop.f32.mrb[0].mxu0
    %v505 = vadd.f32 0.0, %v504
    %v506 = vpop.f32.mrb[0].mxu0
    %507 = vdwg.mxu0
    %509 = vrot.lane.b32.xlu0 %v428, 96
    %v510 = vpop.permute.xlu0 %509
    %v511 = vsel %vm280, %v510, 0
    %v513 = vsel %vm280, %v428, 0
    %515 = vmatprep.subr.mxu0 0.0
    %516 = vmatpush1.xpose.msra.mxu0 %v513
    %517 = vmatprep.subr.mxu0 0.0
    %518 = vmatpush1.xpose.msra.mxu0 0.0
    %519 = vmatprep.subr.mxu0 0.0
    %520 = vmatpush1.xpose.msra.mxu0 0.0
    %521 = vmatprep.subr.mxu0 0.0
    %522 = vmatpush1.xpose.msra.mxu0 0.0
    %523 = vmatprep.subr.mxu0 0.0
    %524 = vmatpush1.xpose.msra.mxu0 0.0
    %525 = vmatprep.subr.mxu0 0.0
    %526 = vmatpush1.xpose.msra.mxu0 0.0
    %527 = vmatprep.subr.mxu0 0.0
    %528 = vmatpush1.xpose.msra.mxu0 0.0
    %529 = vmatprep.subr.mxu0 0.0
    %530 = vmatpush1.xpose.msra.mxu0 0.0
    %531 = vmatprep.subr.mxu0 0.0
    %532 = vmatpush1.xpose.msra.mxu0 0.0
    %533 = vmatprep.subr.mxu0 0.0
    %534 = vmatpush1.xpose.msra.mxu0 0.0
    %535 = vmatprep.subr.mxu0 0.0
    %536 = vmatpush1.xpose.msra.mxu0 0.0
    %537 = vmatprep.subr.mxu0 0.0
    %538 = vmatpush1.xpose.msra.mxu0 0.0
    %539 = vmatprep.subr.mxu0 0.0
    %540 = vmatpush1.xpose.msra.mxu0 0.0
    %541 = vmatprep.subr.mxu0 0.0
    %542 = vmatpush1.xpose.msra.mxu0 0.0
    %543 = vmatprep.subr.mxu0 0.0
    %544 = vmatpush1.xpose.msra.mxu0 0.0
    %545 = vmatprep.subr.mxu0 0.0
    %546 = vmatpush1.xpose.msra.mxu0 0.0
    %547 = vmatprep.subr.mxu0 0.0
    %548 = vmatpush1.xpose.msra.mxu0 0.0
    %549 = vmatprep.subr.mxu0 0.0
    %550 = vmatpush1.xpose.msra.mxu0 0.0
    %551 = vmatprep.subr.mxu0 0.0
    %552 = vmatpush1.xpose.msra.mxu0 0.0
    %553 = vmatprep.subr.mxu0 0.0
    %554 = vmatpush1.xpose.msra.mxu0 0.0
    %555 = vmatprep.subr.mxu0 0.0
    %556 = vmatpush1.xpose.msra.mxu0 0.0
    %557 = vmatprep.subr.mxu0 0.0
    %558 = vmatpush1.xpose.msra.mxu0 0.0
    %559 = vmatprep.subr.mxu0 0.0
    %560 = vmatpush1.xpose.msra.mxu0 0.0
    %561 = vmatprep.subr.mxu0 0.0
    %562 = vmatpush1.xpose.msra.mxu0 0.0
    %563 = vmatprep.subr.mxu0 0.0
    %564 = vmatpush1.xpose.msra.mxu0 0.0
    %565 = vmatprep.subr.mxu0 0.0
    %566 = vmatpush1.xpose.msra.mxu0 0.0
    %567 = vmatprep.subr.mxu0 0.0
    %568 = vmatpush1.xpose.msra.mxu0 0.0
    %569 = vmatprep.subr.mxu0 0.0
    %570 = vmatpush1.xpose.msra.mxu0 0.0
    %571 = vmatprep.subr.mxu0 0.0
    %572 = vmatpush1.xpose.msra.mxu0 0.0
    %573 = vmatprep.subr.mxu0 0.0
    %574 = vmatpush1.xpose.msra.mxu0 0.0
    %575 = vmatprep.subr.mxu0 0.0
    %576 = vmatpush1.xpose.msra.mxu0 0.0
    %577 = vmatprep.subr.mxu0 0.0
    %578 = vmatpush1.xpose.msra.mxu0 0.0
    %579 = vmatprep.mubr.f32.mxu0 0.0
    %580 = vmatmul.mubr.f32.gmra.mrb[0].mxu0 %v511
    %v581 = vpop.f32.mrb[0].mxu0
    %v582 = vadd.f32 0.0, %v581
    %v583 = vpop.f32.mrb[0].mxu0
    %584 = vdwg.mxu0
    %v585 = vmul.f32 %v505, 0.00390625
    %v586 = vmul.f32 %v582, 0.00390625
    %vm587 = vmor %vm270, %vm272
    %v588 = vsel %vm587, 1, 0
    %vm589 = vcmp.eq.s32.totalorder %v588, 1
    %v590 = vsel %vm261, 1, 0
    %v591 = vsel %vm262, 1, 0
    %v592 = vlaneseq
    %v593 = vshrl.u32 %v592, 7
    %v594 = vsub.s32 0, %v593
    %v595 = vrot.slane %v590, %v594
    %v596 = vlaneseq
    %v597 = vshrl.u32 %v596, 7
    %v598 = vsub.s32 0, %v597
    %v599 = vrot.slane %v591, %v598
    %vm600 = vcmp.eq.s32.totalorder %v595, 1
    %vm601 = vcmp.eq.s32.totalorder %v599, 1
    %vm602 = vmand %vm589, %vm600
    %vm603 = vmand %vm589, %vm601
    %v604 = vsel %vm602, %v585, -1e+09
    %v605 = vsel %vm603, %v586, -1e+09
    %vm606 = vcmask 64512
    %v607 = vsel %vm606, %v604, -inf
    %608 = vmax.xlane.f32.xlu0 %v607
    %v609 = vpop.xlane.xlu0 %608
    %v610 = vsel %vm606, %v605, -inf
    %611 = vmax.xlane.f32.xlu0 %v610
    %v612 = vpop.xlane.xlu0 %611
    %v613 = vsub.f32 %v604, %v609
    %v614 = vsub.f32 %v605, %v612
    %v615 = vmul.f32 %v613, 1.442695
    %v616 = vpow.pop %v615
    %v617 = vmul.f32 %v614, 1.442695
    %v618 = vpow.pop %v617
    %v619 = vsel %vm606, %v616, 0.0
    %620 = vadd.xlane.f32.xlu0 %v619
    %v621 = vpop.xlane.xlu0 %620
    %v622 = vsel %vm606, %v618, 0.0
    %623 = vadd.xlane.f32.xlu0 %v622
    %v624 = vpop.xlane.xlu0 %623
    %v625 = vrcp.pop %v621
    %v626 = vrcp.pop %v624
    %v627 = vmul.f32 %v616, %v625
    %v628 = vmul.f32 %v618, %v626
    %629 = vxpose.xlu0.b32.start [1/16] %v627, 128
    %630 = vxpose.xlu0.b32.cont [2/16] 0.0, 128
    %631 = vxpose.xlu0.b32.cont [3/16] 0.0, 128
    %632 = vxpose.xlu0.b32.cont [4/16] 0.0, 128
    %633 = vxpose.xlu0.b32.cont [5/16] 0.0, 128
    %634 = vxpose.xlu0.b32.cont [6/16] 0.0, 128
    %635 = vxpose.xlu0.b32.cont [7/16] 0.0, 128
    %636 = vxpose.xlu0.b32.cont [8/16] 0.0, 128
    %637 = vxpose.xlu0.b32.cont [9/16] 0.0, 128
    %638 = vxpose.xlu0.b32.cont [10/16] 0.0, 128
    %639 = vxpose.xlu0.b32.cont [11/16] 0.0, 128
    %640 = vxpose.xlu0.b32.cont [12/16] 0.0, 128
    %641 = vxpose.xlu0.b32.cont [13/16] 0.0, 128
    %642 = vxpose.xlu0.b32.cont [14/16] 0.0, 128
    %643 = vxpose.xlu0.b32.cont [15/16] 0.0, 128
    %644 = vxpose.xlu0.b32.end [16/16] 0.0, 128
    %v645 = vpop.trf.xlu0
    %v646 = vpop.trf.xlu0
    %v647 = vpop.trf.xlu0
    %v648 = vpop.trf.xlu0
    %v649 = vpop.trf.xlu0
    %v650 = vpop.trf.xlu0
    %v651 = vpop.trf.xlu0
    %v652 = vpop.trf.xlu0
    %v653 = vpop.trf.xlu0
    %v654 = vpop.trf.xlu0
    %v655 = vpop.trf.xlu0
    %v656 = vpop.trf.xlu0
    %v657 = vpop.trf.xlu0
    %v658 = vpop.trf.xlu0
    %v659 = vpop.trf.xlu0
    %v660 = vpop.trf.xlu0
    %661 = vxpose.xlu0.b32.start [1/16] %v628, 128
    %662 = vxpose.xlu0.b32.cont [2/16] 0.0, 128
    %663 = vxpose.xlu0.b32.cont [3/16] 0.0, 128
    %664 = vxpose.xlu0.b32.cont [4/16] 0.0, 128
    %665 = vxpose.xlu0.b32.cont [5/16] 0.0, 128
    %666 = vxpose.xlu0.b32.cont [6/16] 0.0, 128
    %667 = vxpose.xlu0.b32.cont [7/16] 0.0, 128
    %668 = vxpose.xlu0.b32.cont [8/16] 0.0, 128
    %669 = vxpose.xlu0.b32.cont [9/16] 0.0, 128
    %670 = vxpose.xlu0.b32.cont [10/16] 0.0, 128
    %671 = vxpose.xlu0.b32.cont [11/16] 0.0, 128
    %672 = vxpose.xlu0.b32.cont [12/16] 0.0, 128
    %673 = vxpose.xlu0.b32.cont [13/16] 0.0, 128
    %674 = vxpose.xlu0.b32.cont [14/16] 0.0, 128
    %675 = vxpose.xlu0.b32.cont [15/16] 0.0, 128
    %676 = vxpose.xlu0.b32.end [16/16] 0.0, 128
    %v677 = vpop.trf.xlu0
    %v678 = vpop.trf.xlu0
    %v679 = vpop.trf.xlu0
    %v680 = vpop.trf.xlu0
    %v681 = vpop.trf.xlu0
    %v682 = vpop.trf.xlu0
    %v683 = vpop.trf.xlu0
    %v684 = vpop.trf.xlu0
    %v685 = vpop.trf.xlu0
    %v686 = vpop.trf.xlu0
    %v687 = vpop.trf.xlu0
    %v688 = vpop.trf.xlu0
    %v689 = vpop.trf.xlu0
    %v690 = vpop.trf.xlu0
    %v691 = vpop.trf.xlu0
    %v692 = vpop.trf.xlu0
    %v693 = vmul.f32 %v627, %v645
    %v694 = vmul.f32 %v628, %v677
    %v695 = vadd.f32 %v693, 1e-09
    %v696 = vadd.f32 %v694, 1e-09
    %v697 = vrsqrt.pop %v695
    %v698 = vmul.f32 %v695, %v697
    %vm699 = vcmp.eq.f32.partialorder %v695, inf
    %v700 = vsel %vm699, %v695, %v698
    %vm701 = vcmp.eq.f32.partialorder %v695, 0.0
    %v702 = vand.u32 %v695, 2147483648
    %v703 = vsel %vm701, %v702, %v700
    %v704 = vrsqrt.pop %v696
    %v705 = vmul.f32 %v696, %v704
    %vm706 = vcmp.eq.f32.partialorder %v696, inf
    %v707 = vsel %vm706, %v696, %v705
    %vm708 = vcmp.eq.f32.partialorder %v696, 0.0
    %v709 = vand.u32 %v696, 2147483648
    %v710 = vsel %vm708, %v709, %v707
    %v711 = vsub.f32 1.0, %v263
    %v712 = vsub.f32 1.0, %v264
    %v713 = vmul.f32 %v711, %v703
    %v714 = vmul.f32 %v712, %v710
    %v715 = vadd.f32 %v263, %v713
    %v716 = vadd.f32 %v264, %v714
    %v717 = vadd.f32 %v715, 1e-09
    %v718 = vadd.f32 %v716, 1e-09
    %v719 = vlog2.pop %v717
    %v720 = vmul.f32 %v719, 0.6931472
    %v721 = vlog2.pop %v718
    %v722 = vmul.f32 %v721, 0.6931472
    %v723 = vsel %vm270, 1, 0
    %vm724 = vcmp.eq.s32.totalorder %v723, 1
    %v725 = vsel %vm724, %v720, 0.0
    %v726 = vsel %vm724, %v722, 0.0
    %v728 = vsel %vm606, %v725, 0
    %730 = vmatprep.subr.mxu0 0.0
    %731 = vmatpush1.msra.mxu0 %v277
    %732 = vmatprep.subr.mxu0 0.0
    %733 = vmatpush1.msra.mxu0 0.0
    %734 = vmatprep.subr.mxu0 0.0
    %735 = vmatpush1.msra.mxu0 0.0
    %736 = vmatprep.subr.mxu0 0.0
    %737 = vmatpush1.msra.mxu0 0.0
    %738 = vmatprep.subr.mxu0 0.0
    %739 = vmatpush1.msra.mxu0 0.0
    %740 = vmatprep.subr.mxu0 0.0
    %741 = vmatpush1.msra.mxu0 0.0
    %742 = vmatprep.subr.mxu0 0.0
    %743 = vmatpush1.msra.mxu0 0.0
    %744 = vmatprep.subr.mxu0 0.0
    %745 = vmatpush1.msra.mxu0 0.0
    %746 = vmatprep.subr.mxu0 0.0
    %747 = vmatpush1.msra.mxu0 0.0
    %748 = vmatprep.subr.mxu0 0.0
    %749 = vmatpush1.msra.mxu0 0.0
    %750 = vmatprep.subr.mxu0 0.0
    %751 = vmatpush1.msra.mxu0 0.0
    %752 = vmatprep.subr.mxu0 0.0
    %753 = vmatpush1.msra.mxu0 0.0
    %754 = vmatprep.subr.mxu0 0.0
    %755 = vmatpush1.msra.mxu0 0.0
    %756 = vmatprep.subr.mxu0 0.0
    %757 = vmatpush1.msra.mxu0 0.0
    %758 = vmatprep.subr.mxu0 0.0
    %759 = vmatpush1.msra.mxu0 0.0
    %760 = vmatprep.subr.mxu0 0.0
    %761 = vmatpush1.msra.mxu0 0.0
    %762 = vmatprep.subr.mxu0 0.0
    %763 = vmatpush1.msra.mxu0 0.0
    %764 = vmatprep.subr.mxu0 0.0
    %765 = vmatpush1.msra.mxu0 0.0
    %766 = vmatprep.subr.mxu0 0.0
    %767 = vmatpush1.msra.mxu0 0.0
    %768 = vmatprep.subr.mxu0 0.0
    %769 = vmatpush1.msra.mxu0 0.0
    %770 = vmatprep.subr.mxu0 0.0
    %771 = vmatpush1.msra.mxu0 0.0
    %772 = vmatprep.subr.mxu0 0.0
    %773 = vmatpush1.msra.mxu0 0.0
    %774 = vmatprep.subr.mxu0 0.0
    %775 = vmatpush1.msra.mxu0 0.0
    %776 = vmatprep.subr.mxu0 0.0
    %777 = vmatpush1.msra.mxu0 0.0
    %778 = vmatprep.subr.mxu0 0.0
    %779 = vmatpush1.msra.mxu0 0.0
    %780 = vmatprep.subr.mxu0 0.0
    %781 = vmatpush1.msra.mxu0 0.0
    %782 = vmatprep.subr.mxu0 0.0
    %783 = vmatpush1.msra.mxu0 0.0
    %784 = vmatprep.subr.mxu0 0.0
    %785 = vmatpush1.msra.mxu0 0.0
    %786 = vmatprep.subr.mxu0 0.0
    %787 = vmatpush1.msra.mxu0 0.0
    %788 = vmatprep.subr.mxu0 0.0
    %789 = vmatpush1.msra.mxu0 0.0
    %790 = vmatprep.subr.mxu0 0.0
    %791 = vmatpush1.msra.mxu0 0.0
    %792 = vmatprep.subr.mxu0 0.0
    %793 = vmatpush1.msra.mxu0 0.0
    %794 = vmatprep.mubr.f32.mxu0 0.0
    %795 = vmatmul.mubr.f32.gmra.mrb[0].mxu0 %v728
    %v796 = vpop.f32.mrb[0].mxu0
    %v797 = vadd.f32 0.0, %v796
    %v798 = vpop.f32.mrb[0].mxu0
    %799 = vdwg.mxu0
    %v801 = vsel %vm606, %v726, 0
    %803 = vmatprep.subr.mxu0 0.0
    %804 = vmatpush1.msra.mxu0 %v277
    %805 = vmatprep.subr.mxu0 0.0
    %806 = vmatpush1.msra.mxu0 0.0
    %807 = vmatprep.subr.mxu0 0.0
    %808 = vmatpush1.msra.mxu0 0.0
    %809 = vmatprep.subr.mxu0 0.0
    %810 = vmatpush1.msra.mxu0 0.0
    %811 = vmatprep.subr.mxu0 0.0
    %812 = vmatpush1.msra.mxu0 0.0
    %813 = vmatprep.subr.mxu0 0.0
    %814 = vmatpush1.msra.mxu0 0.0
    %815 = vmatprep.subr.mxu0 0.0
    %816 = vmatpush1.msra.mxu0 0.0
    %817 = vmatprep.subr.mxu0 0.0
    %818 = vmatpush1.msra.mxu0 0.0
    %819 = vmatprep.subr.mxu0 0.0
    %820 = vmatpush1.msra.mxu0 0.0
    %821 = vmatprep.subr.mxu0 0.0
    %822 = vmatpush1.msra.mxu0 0.0
    %823 = vmatprep.subr.mxu0 0.0
    %824 = vmatpush1.msra.mxu0 0.0
    %825 = vmatprep.subr.mxu0 0.0
    %826 = vmatpush1.msra.mxu0 0.0
    %827 = vmatprep.subr.mxu0 0.0
    %828 = vmatpush1.msra.mxu0 0.0
    %829 = vmatprep.subr.mxu0 0.0
    %830 = vmatpush1.msra.mxu0 0.0
    %831 = vmatprep.subr.mxu0 0.0
    %832 = vmatpush1.msra.mxu0 0.0
    %833 = vmatprep.subr.mxu0 0.0
    %834 = vmatpush1.msra.mxu0 0.0
    %835 = vmatprep.subr.mxu0 0.0
    %836 = vmatpush1.msra.mxu0 0.0
    %837 = vmatprep.subr.mxu0 0.0
    %838 = vmatpush1.msra.mxu0 0.0
    %839 = vmatprep.subr.mxu0 0.0
    %840 = vmatpush1.msra.mxu0 0.0
    %841 = vmatprep.subr.mxu0 0.0
    %842 = vmatpush1.msra.mxu0 0.0
    %843 = vmatprep.subr.mxu0 0.0
    %844 = vmatpush1.msra.mxu0 0.0
    %845 = vmatprep.subr.mxu0 0.0
    %846 = vmatpush1.msra.mxu0 0.0
    %847 = vmatprep.subr.mxu0 0.0
    %848 = vmatpush1.msra.mxu0 0.0
    %849 = vmatprep.subr.mxu0 0.0
    %850 = vmatpush1.msra.mxu0 0.0
    %851 = vmatprep.subr.mxu0 0.0
    %852 = vmatpush1.msra.mxu0 0.0
    %853 = vmatprep.subr.mxu0 0.0
    %854 = vmatpush1.msra.mxu0 0.0
    %855 = vmatprep.subr.mxu0 0.0
    %856 = vmatpush1.msra.mxu0 0.0
    %857 = vmatprep.subr.mxu0 0.0
    %858 = vmatpush1.msra.mxu0 0.0
    %859 = vmatprep.subr.mxu0 0.0
    %860 = vmatpush1.msra.mxu0 0.0
    %861 = vmatprep.subr.mxu0 0.0
    %862 = vmatpush1.msra.mxu0 0.0
    %863 = vmatprep.subr.mxu0 0.0
    %864 = vmatpush1.msra.mxu0 0.0
    %865 = vmatprep.subr.mxu0 0.0
    %866 = vmatpush1.msra.mxu0 0.0
    %867 = vmatprep.mubr.f32.mxu0 0.0
    %868 = vmatmul.mubr.f32.gmra.mrb[0].mxu0 %v801
    %v869 = vpop.f32.mrb[0].mxu0
    %v870 = vadd.f32 0.0, %v869
    %v871 = vpop.f32.mrb[0].mxu0
    %872 = vdwg.mxu0
    %v874 = vsel %vm606, %v277, 0
    %876 = vmatprep.subr.mxu0 0.0
    %877 = vmatpush1.msra.mxu0 %v797
    %878 = vmatprep.subr.mxu0 0.0
    %879 = vmatpush1.msra.mxu0 0.0
    %880 = vmatprep.subr.mxu0 0.0
    %881 = vmatpush1.msra.mxu0 0.0
    %882 = vmatprep.subr.mxu0 0.0
    %883 = vmatpush1.msra.mxu0 0.0
    %884 = vmatprep.subr.mxu0 0.0
    %885 = vmatpush1.msra.mxu0 0.0
    %886 = vmatprep.subr.mxu0 0.0
    %887 = vmatpush1.msra.mxu0 0.0
    %888 = vmatprep.subr.mxu0 0.0
    %889 = vmatpush1.msra.mxu0 0.0
    %890 = vmatprep.subr.mxu0 0.0
    %891 = vmatpush1.msra.mxu0 0.0
    %892 = vmatprep.subr.mxu0 0.0
    %893 = vmatpush1.msra.mxu0 0.0
    %894 = vmatprep.subr.mxu0 0.0
    %895 = vmatpush1.msra.mxu0 0.0
    %896 = vmatprep.subr.mxu0 0.0
    %897 = vmatpush1.msra.mxu0 0.0
    %898 = vmatprep.subr.mxu0 0.0
    %899 = vmatpush1.msra.mxu0 0.0
    %900 = vmatprep.subr.mxu0 0.0
    %901 = vmatpush1.msra.mxu0 0.0
    %902 = vmatprep.subr.mxu0 0.0
    %903 = vmatpush1.msra.mxu0 0.0
    %904 = vmatprep.subr.mxu0 0.0
    %905 = vmatpush1.msra.mxu0 0.0
    %906 = vmatprep.subr.mxu0 0.0
    %907 = vmatpush1.msra.mxu0 0.0
    %908 = vmatprep.subr.mxu0 0.0
    %909 = vmatpush1.msra.mxu0 0.0
    %910 = vmatprep.subr.mxu0 0.0
    %911 = vmatpush1.msra.mxu0 0.0
    %912 = vmatprep.subr.mxu0 0.0
    %913 = vmatpush1.msra.mxu0 0.0
    %914 = vmatprep.subr.mxu0 0.0
    %915 = vmatpush1.msra.mxu0 0.0
    %916 = vmatprep.subr.mxu0 0.0
    %917 = vmatpush1.msra.mxu0 0.0
    %918 = vmatprep.subr.mxu0 0.0
    %919 = vmatpush1.msra.mxu0 0.0
    %920 = vmatprep.subr.mxu0 0.0
    %921 = vmatpush1.msra.mxu0 0.0
    %922 = vmatprep.subr.mxu0 0.0
    %923 = vmatpush1.msra.mxu0 0.0
    %924 = vmatprep.subr.mxu0 0.0
    %925 = vmatpush1.msra.mxu0 0.0
    %926 = vmatprep.subr.mxu0 0.0
    %927 = vmatpush1.msra.mxu0 0.0
    %928 = vmatprep.subr.mxu0 0.0
    %929 = vmatpush1.msra.mxu0 0.0
    %930 = vmatprep.subr.mxu0 0.0
    %931 = vmatpush1.msra.mxu0 0.0
    %932 = vmatprep.subr.mxu0 0.0
    %933 = vmatpush1.msra.mxu0 0.0
    %934 = vmatprep.subr.mxu0 0.0
    %935 = vmatpush1.msra.mxu0 0.0
    %936 = vmatprep.subr.mxu0 0.0
    %937 = vmatpush1.msra.mxu0 0.0
    %938 = vmatprep.subr.mxu0 0.0
    %939 = vmatpush1.msra.mxu0 0.0
    %940 = vmatprep.mubr.f32.mxu0 0.0
    %941 = vmatmul.mubr.f32.gmra.mrb[0].mxu0 %v874
    %v942 = vpop.f32.mrb[0].mxu0
    %v943 = vadd.f32 0.0, %v942
    %v944 = vpop.f32.mrb[0].mxu0
    %945 = vdwg.mxu0
    %946 = vmatprep.subr.mxu0 0.0
    %947 = vmatpush1.msra.mxu0 %v870
    %948 = vmatprep.subr.mxu0 0.0
    %949 = vmatpush1.msra.mxu0 0.0
    %950 = vmatprep.subr.mxu0 0.0
    %951 = vmatpush1.msra.mxu0 0.0
    %952 = vmatprep.subr.mxu0 0.0
    %953 = vmatpush1.msra.mxu0 0.0
    %954 = vmatprep.subr.mxu0 0.0
    %955 = vmatpush1.msra.mxu0 0.0
    %956 = vmatprep.subr.mxu0 0.0
    %957 = vmatpush1.msra.mxu0 0.0
    %958 = vmatprep.subr.mxu0 0.0
    %959 = vmatpush1.msra.mxu0 0.0
    %960 = vmatprep.subr.mxu0 0.0
    %961 = vmatpush1.msra.mxu0 0.0
    %962 = vmatprep.subr.mxu0 0.0
    %963 = vmatpush1.msra.mxu0 0.0
    %964 = vmatprep.subr.mxu0 0.0
    %965 = vmatpush1.msra.mxu0 0.0
    %966 = vmatprep.subr.mxu0 0.0
    %967 = vmatpush1.msra.mxu0 0.0
    %968 = vmatprep.subr.mxu0 0.0
    %969 = vmatpush1.msra.mxu0 0.0
    %970 = vmatprep.subr.mxu0 0.0
    %971 = vmatpush1.msra.mxu0 0.0
    %972 = vmatprep.subr.mxu0 0.0
    %973 = vmatpush1.msra.mxu0 0.0
    %974 = vmatprep.subr.mxu0 0.0
    %975 = vmatpush1.msra.mxu0 0.0
    %976 = vmatprep.subr.mxu0 0.0
    %977 = vmatpush1.msra.mxu0 0.0
    %978 = vmatprep.subr.mxu0 0.0
    %979 = vmatpush1.msra.mxu0 0.0
    %980 = vmatprep.subr.mxu0 0.0
    %981 = vmatpush1.msra.mxu0 0.0
    %982 = vmatprep.subr.mxu0 0.0
    %983 = vmatpush1.msra.mxu0 0.0
    %984 = vmatprep.subr.mxu0 0.0
    %985 = vmatpush1.msra.mxu0 0.0
    %986 = vmatprep.subr.mxu0 0.0
    %987 = vmatpush1.msra.mxu0 0.0
    %988 = vmatprep.subr.mxu0 0.0
    %989 = vmatpush1.msra.mxu0 0.0
    %990 = vmatprep.subr.mxu0 0.0
    %991 = vmatpush1.msra.mxu0 0.0
    %992 = vmatprep.subr.mxu0 0.0
    %993 = vmatpush1.msra.mxu0 0.0
    %994 = vmatprep.subr.mxu0 0.0
    %995 = vmatpush1.msra.mxu0 0.0
    %996 = vmatprep.subr.mxu0 0.0
    %997 = vmatpush1.msra.mxu0 0.0
    %998 = vmatprep.subr.mxu0 0.0
    %999 = vmatpush1.msra.mxu0 0.0
    %1000 = vmatprep.subr.mxu0 0.0
    %1001 = vmatpush1.msra.mxu0 0.0
    %1002 = vmatprep.subr.mxu0 0.0
    %1003 = vmatpush1.msra.mxu0 0.0
    %1004 = vmatprep.subr.mxu0 0.0
    %1005 = vmatpush1.msra.mxu0 0.0
    %1006 = vmatprep.subr.mxu0 0.0
    %1007 = vmatpush1.msra.mxu0 0.0
    %1008 = vmatprep.subr.mxu0 0.0
    %1009 = vmatpush1.msra.mxu0 0.0
    %1010 = vmatprep.mubr.f32.mxu0 0.0
    %1011 = vmatmul.mubr.f32.gmra.mrb[0].mxu0 %v874
    %v1012 = vpop.f32.mrb[0].mxu0
    %v1013 = vadd.f32 0.0, %v1012
    %v1014 = vpop.f32.mrb[0].mxu0
    %1015 = vdwg.mxu0
    %v1016 = vmul.f32 %v943, 1.442695
    %v1017 = vpow.pop %v1016
    %v1018 = vmul.f32 %v1013, 1.442695
    %v1019 = vpow.pop %v1018
    %v1020 = vsel %vm274, 1, 0
    %vm1021 = vcmp.eq.s32.totalorder %v1020, 1
    %v1022 = vsel %vm1021, %v1017, 0.0
    %v1023 = vsel %vm1021, %v1019, 0.0
    %1024 = vxpose.xlu0.b32.start [1/16] %v1022, 128
    %1025 = vxpose.xlu0.b32.cont [2/16] 0.0, 128
    %1026 = vxpose.xlu0.b32.cont [3/16] 0.0, 128
    %1027 = vxpose.xlu0.b32.cont [4/16] 0.0, 128
    %1028 = vxpose.xlu0.b32.cont [5/16] 0.0, 128
    %1029 = vxpose.xlu0.b32.cont [6/16] 0.0, 128
    %1030 = vxpose.xlu0.b32.cont [7/16] 0.0, 128
    %1031 = vxpose.xlu0.b32.cont [8/16] 0.0, 128
    %1032 = vxpose.xlu0.b32.cont [9/16] 0.0, 128
    %1033 = vxpose.xlu0.b32.cont [10/16] 0.0, 128
    %1034 = vxpose.xlu0.b32.cont [11/16] 0.0, 128
    %1035 = vxpose.xlu0.b32.cont [12/16] 0.0, 128
    %1036 = vxpose.xlu0.b32.cont [13/16] 0.0, 128
    %1037 = vxpose.xlu0.b32.cont [14/16] 0.0, 128
    %1038 = vxpose.xlu0.b32.cont [15/16] 0.0, 128
    %1039 = vxpose.xlu0.b32.end [16/16] 0.0, 128
    %v1040 = vpop.trf.xlu0
    %v1041 = vpop.trf.xlu0
    %v1042 = vpop.trf.xlu0
    %v1043 = vpop.trf.xlu0
    %v1044 = vpop.trf.xlu0
    %v1045 = vpop.trf.xlu0
    %v1046 = vpop.trf.xlu0
    %v1047 = vpop.trf.xlu0
    %v1048 = vpop.trf.xlu0
    %v1049 = vpop.trf.xlu0
    %v1050 = vpop.trf.xlu0
    %v1051 = vpop.trf.xlu0
    %v1052 = vpop.trf.xlu0
    %v1053 = vpop.trf.xlu0
    %v1054 = vpop.trf.xlu0
    %v1055 = vpop.trf.xlu0
    %1056 = vxpose.xlu0.b32.start [1/16] %v1023, 128
    %1057 = vxpose.xlu0.b32.cont [2/16] 0.0, 128
    %1058 = vxpose.xlu0.b32.cont [3/16] 0.0, 128
    %1059 = vxpose.xlu0.b32.cont [4/16] 0.0, 128
    %1060 = vxpose.xlu0.b32.cont [5/16] 0.0, 128
    %1061 = vxpose.xlu0.b32.cont [6/16] 0.0, 128
    %1062 = vxpose.xlu0.b32.cont [7/16] 0.0, 128
    %1063 = vxpose.xlu0.b32.cont [8/16] 0.0, 128
    %1064 = vxpose.xlu0.b32.cont [9/16] 0.0, 128
    %1065 = vxpose.xlu0.b32.cont [10/16] 0.0, 128
    %1066 = vxpose.xlu0.b32.cont [11/16] 0.0, 128
    %1067 = vxpose.xlu0.b32.cont [12/16] 0.0, 128
    %1068 = vxpose.xlu0.b32.cont [13/16] 0.0, 128
    %1069 = vxpose.xlu0.b32.cont [14/16] 0.0, 128
    %1070 = vxpose.xlu0.b32.cont [15/16] 0.0, 128
    %1071 = vxpose.xlu0.b32.end [16/16] 0.0, 128
    %v1072 = vpop.trf.xlu0
    %v1073 = vpop.trf.xlu0
    %v1074 = vpop.trf.xlu0
    %v1075 = vpop.trf.xlu0
    %v1076 = vpop.trf.xlu0
    %v1077 = vpop.trf.xlu0
    %v1078 = vpop.trf.xlu0
    %v1079 = vpop.trf.xlu0
    %v1080 = vpop.trf.xlu0
    %v1081 = vpop.trf.xlu0
    %v1082 = vpop.trf.xlu0
    %v1083 = vpop.trf.xlu0
    %v1084 = vpop.trf.xlu0
    %v1085 = vpop.trf.xlu0
    %v1086 = vpop.trf.xlu0
    %v1087 = vpop.trf.xlu0
    %v1088 = vadd.f32 %v1022, %v1040
    %v1089 = vadd.f32 %v1023, %v1072
    %v1090 = vsel %vm273, 1, 0
    %vm1091 = vcmp.eq.s32.totalorder %v1090, 1
    %v1092 = vsel %vm1091, %v715, 1e-09
    %v1093 = vsel %vm1091, %v716, 1e-09
    %v1094 = vadd.f32 %v1088, %v1092
    %v1095 = vadd.f32 %v1089, %v1093
    %1096 = vst.msk [vmem:[#allocation26] sm:$0xff] %vm606, %v1094
    %1097 = vst.msk [vmem:[#allocation26 + $0x8] sm:$0xff] %vm606, %v1095
    %1098 = vst.msk [vmem:[#allocation28] sm:$0xff] %vm606, %v715
    %1099 = vst.msk [vmem:[#allocation28 + $0x8] sm:$0xff] %vm606, %v716
    %v1100 = vld [vmem:[#allocation13] sm:$0x1]
    %v1101 = vld [vmem:[#allocation14] sm:$0x1]
    %v1103 = vlaneseq
    %v1104 = vshrl.u32 %v1103, 7
    %v1105 = vsub.s32 0, %v1104
    %v1106 = vrot.slane %v1100, %v1105
    %v1108 = vmul.f32 %v1106, %v290
    %v1109 = vmul.f32 %v1106, %v291
    %v1110 = vmul.f32 %v1108, %v327
    %v1111 = vmul.f32 %v1109, %v329
    %v1113 = vlaneseq
    %v1114 = vshrl.u32 %v1113, 7
    %v1115 = vsub.s32 0, %v1114
    %v1116 = vrot.slane %v1101, %v1115
    %v1118 = vadd.f32 %v1110, %v1116
    %v1119 = vadd.f32 %v1111, %v1116
    %v1120 = vld [vmem:[%s9] sm:$0xff]
    %v1121 = vld [vmem:[%s9 + $0x8] sm:$0xff]
    %v1122 = vld [vmem:[%s9 + $0x10] sm:$0xff]
    %v1123 = vld [vmem:[%s9 + $0x18] sm:$0xff]
    %v1124 = vld [vmem:[#allocation16] sm:$0x1]
    %v1126 = vlaneseq
    %v1127 = vshrl.u32 %v1126, 7
    %v1128 = vsub.s32 0, %v1127
    %v1129 = vrot.slane %v1124, %v1128
    %v1132 = vsel %vm280, %v1118, 0
    %v1135 = vsel %vm280, %v1119, 0
    %1137 = vmatprep.subr.mxu0 0.0
    %1138 = vmatpush1.msra.mxu0 %v1120
    %1139 = vmatprep.subr.mxu0 0.0
    %1140 = vmatpush1.msra.mxu0 %v1121
    %1141 = vmatprep.subr.mxu0 0.0
    %1142 = vmatpush1.msra.mxu0 %v1122
    %1143 = vmatprep.subr.mxu0 0.0
    %1144 = vmatpush1.msra.mxu0 %v1123
    %1145 = vmatprep.subr.mxu0 0.0
    %1146 = vmatpush1.msra.mxu0 0.0
    %1147 = vmatprep.subr.mxu0 0.0
    %1148 = vmatpush1.msra.mxu0 0.0
    %1149 = vmatprep.subr.mxu0 0.0
    %1150 = vmatpush1.msra.mxu0 0.0
    %1151 = vmatprep.subr.mxu0 0.0
    %1152 = vmatpush1.msra.mxu0 0.0
    %1153 = vmatprep.subr.mxu0 0.0
    %1154 = vmatpush1.msra.mxu0 0.0
    %1155 = vmatprep.subr.mxu0 0.0
    %1156 = vmatpush1.msra.mxu0 0.0
    %1157 = vmatprep.subr.mxu0 0.0
    %1158 = vmatpush1.msra.mxu0 0.0
    %1159 = vmatprep.subr.mxu0 0.0
    %1160 = vmatpush1.msra.mxu0 0.0
    %1161 = vmatprep.subr.mxu0 0.0
    %1162 = vmatpush1.msra.mxu0 0.0
    %1163 = vmatprep.subr.mxu0 0.0
    %1164 = vmatpush1.msra.mxu0 0.0
    %1165 = vmatprep.subr.mxu0 0.0
    %1166 = vmatpush1.msra.mxu0 0.0
    %1167 = vmatprep.subr.mxu0 0.0
    %1168 = vmatpush1.msra.mxu0 0.0
    %1169 = vmatprep.subr.mxu0 0.0
    %1170 = vmatpush1.msra.mxu0 0.0
    %1171 = vmatprep.subr.mxu0 0.0
    %1172 = vmatpush1.msra.mxu0 0.0
    %1173 = vmatprep.subr.mxu0 0.0
    %1174 = vmatpush1.msra.mxu0 0.0
    %1175 = vmatprep.subr.mxu0 0.0
    %1176 = vmatpush1.msra.mxu0 0.0
    %1177 = vmatprep.subr.mxu0 0.0
    %1178 = vmatpush1.msra.mxu0 0.0
    %1179 = vmatprep.subr.mxu0 0.0
    %1180 = vmatpush1.msra.mxu0 0.0
    %1181 = vmatprep.subr.mxu0 0.0
    %1182 = vmatpush1.msra.mxu0 0.0
    %1183 = vmatprep.subr.mxu0 0.0
    %1184 = vmatpush1.msra.mxu0 0.0
    %1185 = vmatprep.subr.mxu0 0.0
    %1186 = vmatpush1.msra.mxu0 0.0
    %1187 = vmatprep.subr.mxu0 0.0
    %1188 = vmatpush1.msra.mxu0 0.0
    %1189 = vmatprep.subr.mxu0 0.0
    %1190 = vmatpush1.msra.mxu0 0.0
    %1191 = vmatprep.subr.mxu0 0.0
    %1192 = vmatpush1.msra.mxu0 0.0
    %1193 = vmatprep.subr.mxu0 0.0
    %1194 = vmatpush1.msra.mxu0 0.0
    %1195 = vmatprep.subr.mxu0 0.0
    %1196 = vmatpush1.msra.mxu0 0.0
    %1197 = vmatprep.subr.mxu0 0.0
    %1198 = vmatpush1.msra.mxu0 0.0
    %1199 = vmatprep.subr.mxu0 0.0
    %1200 = vmatpush1.msra.mxu0 0.0
    %1201 = vmatprep.mubr.f32.mxu0 0.0
    %1202 = vmatmul.mubr.f32.gmra.mrb[0].mxu0 %v1132
    %v1203 = vpop.f32.mrb[0].mxu0
    %v1204 = vadd.f32 %v1129, %v1203
    %v1205 = vpop.f32.mrb[0].mxu0
    %1206 = vmatprep.mubr.f32.mxu0 0.0
    %1207 = vmatmul.mubr.f32.gmra.mrb[0].mxu0 %v1135
    %v1208 = vpop.f32.mrb[0].mxu0
    %v1209 = vadd.f32 %v1129, %v1208
    %v1210 = vpop.f32.mrb[0].mxu0
    %1211 = vdwg.mxu0
    %1213 = vrot.lane.b32.xlu0 %v1204, 96
    %v1214 = vpop.permute.xlu0 %1213
    %v1215 = vsel %vm606, %v1204, 0
    %v1217 = vsel %vm606, %v1214, 0
    %1219 = vmatprep.subr.mxu0 0.0
    %1220 = vmatpush1.xpose.msra.mxu0 %v1217
    %1221 = vmatprep.subr.mxu0 0.0
    %1222 = vmatpush1.xpose.msra.mxu0 0.0
    %1223 = vmatprep.subr.mxu0 0.0
    %1224 = vmatpush1.xpose.msra.mxu0 0.0
    %1225 = vmatprep.subr.mxu0 0.0
    %1226 = vmatpush1.xpose.msra.mxu0 0.0
    %1227 = vmatprep.subr.mxu0 0.0
    %1228 = vmatpush1.xpose.msra.mxu0 0.0
    %1229 = vmatprep.subr.mxu0 0.0
    %1230 = vmatpush1.xpose.msra.mxu0 0.0
    %1231 = vmatprep.subr.mxu0 0.0
    %1232 = vmatpush1.xpose.msra.mxu0 0.0
    %1233 = vmatprep.subr.mxu0 0.0
    %1234 = vmatpush1.xpose.msra.mxu0 0.0
    %1235 = vmatprep.subr.mxu0 0.0
    %1236 = vmatpush1.xpose.msra.mxu0 0.0
    %1237 = vmatprep.subr.mxu0 0.0
    %1238 = vmatpush1.xpose.msra.mxu0 0.0
    %1239 = vmatprep.subr.mxu0 0.0
    %1240 = vmatpush1.xpose.msra.mxu0 0.0
    %1241 = vmatprep.subr.mxu0 0.0
    %1242 = vmatpush1.xpose.msra.mxu0 0.0
    %1243 = vmatprep.subr.mxu0 0.0
    %1244 = vmatpush1.xpose.msra.mxu0 0.0
    %1245 = vmatprep.subr.mxu0 0.0
    %1246 = vmatpush1.xpose.msra.mxu0 0.0
    %1247 = vmatprep.subr.mxu0 0.0
    %1248 = vmatpush1.xpose.msra.mxu0 0.0
    %1249 = vmatprep.subr.mxu0 0.0
    %1250 = vmatpush1.xpose.msra.mxu0 0.0
    %1251 = vmatprep.subr.mxu0 0.0
    %1252 = vmatpush1.xpose.msra.mxu0 0.0
    %1253 = vmatprep.subr.mxu0 0.0
    %1254 = vmatpush1.xpose.msra.mxu0 0.0
    %1255 = vmatprep.subr.mxu0 0.0
    %1256 = vmatpush1.xpose.msra.mxu0 0.0
    %1257 = vmatprep.subr.mxu0 0.0
    %1258 = vmatpush1.xpose.msra.mxu0 0.0
    %1259 = vmatprep.subr.mxu0 0.0
    %1260 = vmatpush1.xpose.msra.mxu0 0.0
    %1261 = vmatprep.subr.mxu0 0.0
    %1262 = vmatpush1.xpose.msra.mxu0 0.0
    %1263 = vmatprep.subr.mxu0 0.0
    %1264 = vmatpush1.xpose.msra.mxu0 0.0
    %1265 = vmatprep.subr.mxu0 0.0
    %1266 = vmatpush1.xpose.msra.mxu0 0.0
    %1267 = vmatprep.subr.mxu0 0.0
    %1268 = vmatpush1.xpose.msra.mxu0 0.0
    %1269 = vmatprep.subr.mxu0 0.0
    %1270 = vmatpush1.xpose.msra.mxu0 0.0
    %1271 = vmatprep.subr.mxu0 0.0
    %1272 = vmatpush1.xpose.msra.mxu0 0.0
    %1273 = vmatprep.subr.mxu0 0.0
    %1274 = vmatpush1.xpose.msra.mxu0 0.0
    %1275 = vmatprep.subr.mxu0 0.0
    %1276 = vmatpush1.xpose.msra.mxu0 0.0
    %1277 = vmatprep.subr.mxu0 0.0
    %1278 = vmatpush1.xpose.msra.mxu0 0.0
    %1279 = vmatprep.subr.mxu0 0.0
    %1280 = vmatpush1.xpose.msra.mxu0 0.0
    %1281 = vmatprep.subr.mxu0 0.0
    %1282 = vmatpush1.xpose.msra.mxu0 0.0
    %1283 = vmatprep.mubr.f32.mxu0 0.0
    %1284 = vmatmul.mubr.f32.gmra.mrb[0].mxu0 %v1215
    %v1285 = vpop.f32.mrb[0].mxu0
    %v1286 = vadd.f32 0.0, %v1285
    %v1287 = vpop.f32.mrb[0].mxu0
    %1288 = vdwg.mxu0
    %1290 = vrot.lane.b32.xlu0 %v1209, 96
    %v1291 = vpop.permute.xlu0 %1290
    %v1292 = vsel %vm606, %v1209, 0
    %v1294 = vsel %vm606, %v1291, 0
    %1296 = vmatprep.subr.mxu0 0.0
    %1297 = vmatpush1.xpose.msra.mxu0 %v1294
    %1298 = vmatprep.subr.mxu0 0.0
    %1299 = vmatpush1.xpose.msra.mxu0 0.0
    %1300 = vmatprep.subr.mxu0 0.0
    %1301 = vmatpush1.xpose.msra.mxu0 0.0
    %1302 = vmatprep.subr.mxu0 0.0
    %1303 = vmatpush1.xpose.msra.mxu0 0.0
    %1304 = vmatprep.subr.mxu0 0.0
    %1305 = vmatpush1.xpose.msra.mxu0 0.0
    %1306 = vmatprep.subr.mxu0 0.0
    %1307 = vmatpush1.xpose.msra.mxu0 0.0
    %1308 = vmatprep.subr.mxu0 0.0
    %1309 = vmatpush1.xpose.msra.mxu0 0.0
    %1310 = vmatprep.subr.mxu0 0.0
    %1311 = vmatpush1.xpose.msra.mxu0 0.0
    %1312 = vmatprep.subr.mxu0 0.0
    %1313 = vmatpush1.xpose.msra.mxu0 0.0
    %1314 = vmatprep.subr.mxu0 0.0
    %1315 = vmatpush1.xpose.msra.mxu0 0.0
    %1316 = vmatprep.subr.mxu0 0.0
    %1317 = vmatpush1.xpose.msra.mxu0 0.0
    %1318 = vmatprep.subr.mxu0 0.0
    %1319 = vmatpush1.xpose.msra.mxu0 0.0
    %1320 = vmatprep.subr.mxu0 0.0
    %1321 = vmatpush1.xpose.msra.mxu0 0.0
    %1322 = vmatprep.subr.mxu0 0.0
    %1323 = vmatpush1.xpose.msra.mxu0 0.0
    %1324 = vmatprep.subr.mxu0 0.0
    %1325 = vmatpush1.xpose.msra.mxu0 0.0
    %1326 = vmatprep.subr.mxu0 0.0
    %1327 = vmatpush1.xpose.msra.mxu0 0.0
    %1328 = vmatprep.subr.mxu0 0.0
    %1329 = vmatpush1.xpose.msra.mxu0 0.0
    %1330 = vmatprep.subr.mxu0 0.0
    %1331 = vmatpush1.xpose.msra.mxu0 0.0
    %1332 = vmatprep.subr.mxu0 0.0
    %1333 = vmatpush1.xpose.msra.mxu0 0.0
    %1334 = vmatprep.subr.mxu0 0.0
    %1335 = vmatpush1.xpose.msra.mxu0 0.0
    %1336 = vmatprep.subr.mxu0 0.0
    %1337 = vmatpush1.xpose.msra.mxu0 0.0
    %1338 = vmatprep.subr.mxu0 0.0
    %1339 = vmatpush1.xpose.msra.mxu0 0.0
    %1340 = vmatprep.subr.mxu0 0.0
    %1341 = vmatpush1.xpose.msra.mxu0 0.0
    %1342 = vmatprep.subr.mxu0 0.0
    %1343 = vmatpush1.xpose.msra.mxu0 0.0
    %1344 = vmatprep.subr.mxu0 0.0
    %1345 = vmatpush1.xpose.msra.mxu0 0.0
    %1346 = vmatprep.subr.mxu0 0.0
    %1347 = vmatpush1.xpose.msra.mxu0 0.0
    %1348 = vmatprep.subr.mxu0 0.0
    %1349 = vmatpush1.xpose.msra.mxu0 0.0
    %1350 = vmatprep.subr.mxu0 0.0
    %1351 = vmatpush1.xpose.msra.mxu0 0.0
    %1352 = vmatprep.subr.mxu0 0.0
    %1353 = vmatpush1.xpose.msra.mxu0 0.0
    %1354 = vmatprep.subr.mxu0 0.0
    %1355 = vmatpush1.xpose.msra.mxu0 0.0
    %1356 = vmatprep.subr.mxu0 0.0
    %1357 = vmatpush1.xpose.msra.mxu0 0.0
    %1358 = vmatprep.subr.mxu0 0.0
    %1359 = vmatpush1.xpose.msra.mxu0 0.0
    %1360 = vmatprep.mubr.f32.mxu0 0.0
    %1361 = vmatmul.mubr.f32.gmra.mrb[0].mxu0 %v1292
    %v1362 = vpop.f32.mrb[0].mxu0
    %v1363 = vadd.f32 0.0, %v1362
    %v1364 = vpop.f32.mrb[0].mxu0
    %1365 = vdwg.mxu0
    %v1366 = vmul.f32 %v1286, 0.35355338
    %v1367 = vmul.f32 %v1363, 0.35355338
    %v1368 = vsel %vm600, %v1366, -1e+09
    %v1369 = vsel %vm601, %v1367, -1e+09
    %v1370 = vsel %vm606, %v1368, -inf
    %1371 = vmax.xlane.f32.xlu0 %v1370
    %v1372 = vpop.xlane.xlu0 %1371
    %v1373 = vsel %vm606, %v1369, -inf
    %1374 = vmax.xlane.f32.xlu0 %v1373
    %v1375 = vpop.xlane.xlu0 %1374
    %v1376 = vsub.f32 %v1368, %v1372
    %v1377 = vsub.f32 %v1369, %v1375
    %v1378 = vmul.f32 %v1376, 1.442695
    %v1379 = vpow.pop %v1378
    %v1380 = vmul.f32 %v1377, 1.442695
    %v1381 = vpow.pop %v1380
    %v1382 = vsel %vm606, %v1379, 0.0
    %1383 = vadd.xlane.f32.xlu0 %v1382
    %v1384 = vpop.xlane.xlu0 %1383
    %v1385 = vsel %vm606, %v1381, 0.0
    %1386 = vadd.xlane.f32.xlu0 %v1385
    %v1387 = vpop.xlane.xlu0 %1386
    %v1388 = vrcp.pop %v1384
    %v1389 = vrcp.pop %v1387
    %v1390 = vmul.f32 %v1379, %v1388
    %v1391 = vmul.f32 %v1381, %v1389
    %v1392 = vmul.f32 %v1390, %v1094
    %v1393 = vmul.f32 %v1391, %v1095
    %1394 = vrot.lane.b32.xlu0 %v1204, 64
    %v1395 = vpop.permute.xlu0 %1394
    %v1398 = vsel %vm606, %v1392, 0
    %1400 = vmatprep.subr.mxu0 0.0
    %1401 = vmatpush1.msra.mxu0 %v1395
    %1402 = vmatprep.subr.mxu0 0.0
    %1403 = vmatpush1.msra.mxu0 0.0
    %1404 = vmatprep.subr.mxu0 0.0
    %1405 = vmatpush1.msra.mxu0 0.0
    %1406 = vmatprep.subr.mxu0 0.0
    %1407 = vmatpush1.msra.mxu0 0.0
    %1408 = vmatprep.subr.mxu0 0.0
    %1409 = vmatpush1.msra.mxu0 0.0
    %1410 = vmatprep.subr.mxu0 0.0
    %1411 = vmatpush1.msra.mxu0 0.0
    %1412 = vmatprep.subr.mxu0 0.0
    %1413 = vmatpush1.msra.mxu0 0.0
    %1414 = vmatprep.subr.mxu0 0.0
    %1415 = vmatpush1.msra.mxu0 0.0
    %1416 = vmatprep.subr.mxu0 0.0
    %1417 = vmatpush1.msra.mxu0 0.0
    %1418 = vmatprep.subr.mxu0 0.0
    %1419 = vmatpush1.msra.mxu0 0.0
    %1420 = vmatprep.subr.mxu0 0.0
    %1421 = vmatpush1.msra.mxu0 0.0
    %1422 = vmatprep.subr.mxu0 0.0
    %1423 = vmatpush1.msra.mxu0 0.0
    %1424 = vmatprep.subr.mxu0 0.0
    %1425 = vmatpush1.msra.mxu0 0.0
    %1426 = vmatprep.subr.mxu0 0.0
    %1427 = vmatpush1.msra.mxu0 0.0
    %1428 = vmatprep.subr.mxu0 0.0
    %1429 = vmatpush1.msra.mxu0 0.0
    %1430 = vmatprep.subr.mxu0 0.0
    %1431 = vmatpush1.msra.mxu0 0.0
    %1432 = vmatprep.subr.mxu0 0.0
    %1433 = vmatpush1.msra.mxu0 0.0
    %1434 = vmatprep.subr.mxu0 0.0
    %1435 = vmatpush1.msra.mxu0 0.0
    %1436 = vmatprep.subr.mxu0 0.0
    %1437 = vmatpush1.msra.mxu0 0.0
    %1438 = vmatprep.subr.mxu0 0.0
    %1439 = vmatpush1.msra.mxu0 0.0
    %1440 = vmatprep.subr.mxu0 0.0
    %1441 = vmatpush1.msra.mxu0 0.0
    %1442 = vmatprep.subr.mxu0 0.0
    %1443 = vmatpush1.msra.mxu0 0.0
    %1444 = vmatprep.subr.mxu0 0.0
    %1445 = vmatpush1.msra.mxu0 0.0
    %1446 = vmatprep.subr.mxu0 0.0
    %1447 = vmatpush1.msra.mxu0 0.0
    %1448 = vmatprep.subr.mxu0 0.0
    %1449 = vmatpush1.msra.mxu0 0.0
    %1450 = vmatprep.subr.mxu0 0.0
    %1451 = vmatpush1.msra.mxu0 0.0
    %1452 = vmatprep.subr.mxu0 0.0
    %1453 = vmatpush1.msra.mxu0 0.0
    %1454 = vmatprep.subr.mxu0 0.0
    %1455 = vmatpush1.msra.mxu0 0.0
    %1456 = vmatprep.subr.mxu0 0.0
    %1457 = vmatpush1.msra.mxu0 0.0
    %1458 = vmatprep.subr.mxu0 0.0
    %1459 = vmatpush1.msra.mxu0 0.0
    %1460 = vmatprep.subr.mxu0 0.0
    %1461 = vmatpush1.msra.mxu0 0.0
    %1462 = vmatprep.subr.mxu0 0.0
    %1463 = vmatpush1.msra.mxu0 0.0
    %1464 = vmatprep.mubr.f32.mxu0 0.0
    %1465 = vmatmul.mubr.f32.gmra.mrb[0].mxu0 %v1398
    %v1466 = vpop.f32.mrb[0].mxu0
    %v1467 = vadd.f32 0.0, %v1466
    %v1468 = vpop.f32.mrb[0].mxu0
    %1469 = vdwg.mxu0
    %1470 = vrot.lane.b32.xlu0 %v1209, 64
    %v1471 = vpop.permute.xlu0 %1470
    %v1474 = vsel %vm606, %v1393, 0
    %1476 = vmatprep.subr.mxu0 0.0
    %1477 = vmatpush1.msra.mxu0 %v1471
    %1478 = vmatprep.subr.mxu0 0.0
    %1479 = vmatpush1.msra.mxu0 0.0
    %1480 = vmatprep.subr.mxu0 0.0
    %1481 = vmatpush1.msra.mxu0 0.0
    %1482 = vmatprep.subr.mxu0 0.0
    %1483 = vmatpush1.msra.mxu0 0.0
    %1484 = vmatprep.subr.mxu0 0.0
    %1485 = vmatpush1.msra.mxu0 0.0
    %1486 = vmatprep.subr.mxu0 0.0
    %1487 = vmatpush1.msra.mxu0 0.0
    %1488 = vmatprep.subr.mxu0 0.0
    %1489 = vmatpush1.msra.mxu0 0.0
    %1490 = vmatprep.subr.mxu0 0.0
    %1491 = vmatpush1.msra.mxu0 0.0
    %1492 = vmatprep.subr.mxu0 0.0
    %1493 = vmatpush1.msra.mxu0 0.0
    %1494 = vmatprep.subr.mxu0 0.0
    %1495 = vmatpush1.msra.mxu0 0.0
    %1496 = vmatprep.subr.mxu0 0.0
    %1497 = vmatpush1.msra.mxu0 0.0
    %1498 = vmatprep.subr.mxu0 0.0
    %1499 = vmatpush1.msra.mxu0 0.0
    %1500 = vmatprep.subr.mxu0 0.0
    %1501 = vmatpush1.msra.mxu0 0.0
    %1502 = vmatprep.subr.mxu0 0.0
    %1503 = vmatpush1.msra.mxu0 0.0
    %1504 = vmatprep.subr.mxu0 0.0
    %1505 = vmatpush1.msra.mxu0 0.0
    %1506 = vmatprep.subr.mxu0 0.0
    %1507 = vmatpush1.msra.mxu0 0.0
    %1508 = vmatprep.subr.mxu0 0.0
    %1509 = vmatpush1.msra.mxu0 0.0
    %1510 = vmatprep.subr.mxu0 0.0
    %1511 = vmatpush1.msra.mxu0 0.0
    %1512 = vmatprep.subr.mxu0 0.0
    %1513 = vmatpush1.msra.mxu0 0.0
    %1514 = vmatprep.subr.mxu0 0.0
    %1515 = vmatpush1.msra.mxu0 0.0
    %1516 = vmatprep.subr.mxu0 0.0
    %1517 = vmatpush1.msra.mxu0 0.0
    %1518 = vmatprep.subr.mxu0 0.0
    %1519 = vmatpush1.msra.mxu0 0.0
    %1520 = vmatprep.subr.mxu0 0.0
    %1521 = vmatpush1.msra.mxu0 0.0
    %1522 = vmatprep.subr.mxu0 0.0
    %1523 = vmatpush1.msra.mxu0 0.0
    %1524 = vmatprep.subr.mxu0 0.0
    %1525 = vmatpush1.msra.mxu0 0.0
    %1526 = vmatprep.subr.mxu0 0.0
    %1527 = vmatpush1.msra.mxu0 0.0
    %1528 = vmatprep.subr.mxu0 0.0
    %1529 = vmatpush1.msra.mxu0 0.0
    %1530 = vmatprep.subr.mxu0 0.0
    %1531 = vmatpush1.msra.mxu0 0.0
    %1532 = vmatprep.subr.mxu0 0.0
    %1533 = vmatpush1.msra.mxu0 0.0
    %1534 = vmatprep.subr.mxu0 0.0
    %1535 = vmatpush1.msra.mxu0 0.0
    %1536 = vmatprep.subr.mxu0 0.0
    %1537 = vmatpush1.msra.mxu0 0.0
    %1538 = vmatprep.subr.mxu0 0.0
    %1539 = vmatpush1.msra.mxu0 0.0
    %1540 = vmatprep.mubr.f32.mxu0 0.0
    %1541 = vmatmul.mubr.f32.gmra.mrb[0].mxu0 %v1474
    %v1542 = vpop.f32.mrb[0].mxu0
    %v1543 = vadd.f32 0.0, %v1542
    %v1544 = vpop.f32.mrb[0].mxu0
    %1545 = vdwg.mxu0
    %1546 = vrot.lane.b32.xlu0 %v1204, 120
    %v1547 = vpop.permute.xlu0 %1546
    %1548 = vrot.lane.b32.xlu0 %v1204, 88
    %v1549 = vpop.permute.xlu0 %1548
    %v1550 = vsel %vm606, %v1547, 0
    %v1552 = vsel %vm606, %v1549, 0
    %1554 = vmatprep.subr.mxu0 0.0
    %1555 = vmatpush1.xpose.msra.mxu0 %v1552
    %1556 = vmatprep.subr.mxu0 0.0
    %1557 = vmatpush1.xpose.msra.mxu0 0.0
    %1558 = vmatprep.subr.mxu0 0.0
    %1559 = vmatpush1.xpose.msra.mxu0 0.0
    %1560 = vmatprep.subr.mxu0 0.0
    %1561 = vmatpush1.xpose.msra.mxu0 0.0
    %1562 = vmatprep.subr.mxu0 0.0
    %1563 = vmatpush1.xpose.msra.mxu0 0.0
    %1564 = vmatprep.subr.mxu0 0.0
    %1565 = vmatpush1.xpose.msra.mxu0 0.0
    %1566 = vmatprep.subr.mxu0 0.0
    %1567 = vmatpush1.xpose.msra.mxu0 0.0
    %1568 = vmatprep.subr.mxu0 0.0
    %1569 = vmatpush1.xpose.msra.mxu0 0.0
    %1570 = vmatprep.subr.mxu0 0.0
    %1571 = vmatpush1.xpose.msra.mxu0 0.0
    %1572 = vmatprep.subr.mxu0 0.0
    %1573 = vmatpush1.xpose.msra.mxu0 0.0
    %1574 = vmatprep.subr.mxu0 0.0
    %1575 = vmatpush1.xpose.msra.mxu0 0.0
    %1576 = vmatprep.subr.mxu0 0.0
    %1577 = vmatpush1.xpose.msra.mxu0 0.0
    %1578 = vmatprep.subr.mxu0 0.0
    %1579 = vmatpush1.xpose.msra.mxu0 0.0
    %1580 = vmatprep.subr.mxu0 0.0
    %1581 = vmatpush1.xpose.msra.mxu0 0.0
    %1582 = vmatprep.subr.mxu0 0.0
    %1583 = vmatpush1.xpose.msra.mxu0 0.0
    %1584 = vmatprep.subr.mxu0 0.0
    %1585 = vmatpush1.xpose.msra.mxu0 0.0
    %1586 = vmatprep.subr.mxu0 0.0
    %1587 = vmatpush1.xpose.msra.mxu0 0.0
    %1588 = vmatprep.subr.mxu0 0.0
    %1589 = vmatpush1.xpose.msra.mxu0 0.0
    %1590 = vmatprep.subr.mxu0 0.0
    %1591 = vmatpush1.xpose.msra.mxu0 0.0
    %1592 = vmatprep.subr.mxu0 0.0
    %1593 = vmatpush1.xpose.msra.mxu0 0.0
    %1594 = vmatprep.subr.mxu0 0.0
    %1595 = vmatpush1.xpose.msra.mxu0 0.0
    %1596 = vmatprep.subr.mxu0 0.0
    %1597 = vmatpush1.xpose.msra.mxu0 0.0
    %1598 = vmatprep.subr.mxu0 0.0
    %1599 = vmatpush1.xpose.msra.mxu0 0.0
    %1600 = vmatprep.subr.mxu0 0.0
    %1601 = vmatpush1.xpose.msra.mxu0 0.0
    %1602 = vmatprep.subr.mxu0 0.0
    %1603 = vmatpush1.xpose.msra.mxu0 0.0
    %1604 = vmatprep.subr.mxu0 0.0
    %1605 = vmatpush1.xpose.msra.mxu0 0.0
    %1606 = vmatprep.subr.mxu0 0.0
    %1607 = vmatpush1.xpose.msra.mxu0 0.0
    %1608 = vmatprep.subr.mxu0 0.0
    %1609 = vmatpush1.xpose.msra.mxu0 0.0
    %1610 = vmatprep.subr.mxu0 0.0
    %1611 = vmatpush1.xpose.msra.mxu0 0.0
    %1612 = vmatprep.subr.mxu0 0.0
    %1613 = vmatpush1.xpose.msra.mxu0 0.0
    %1614 = vmatprep.subr.mxu0 0.0
    %1615 = vmatpush1.xpose.msra.mxu0 0.0
    %1616 = vmatprep.subr.mxu0 0.0
    %1617 = vmatpush1.xpose.msra.mxu0 0.0
    %1618 = vmatprep.mubr.f32.mxu0 0.0
    %1619 = vmatmul.mubr.f32.gmra.mrb[0].mxu0 %v1550
    %v1620 = vpop.f32.mrb[0].mxu0
    %v1621 = vadd.f32 0.0, %v1620
    %v1622 = vpop.f32.mrb[0].mxu0
    %1623 = vdwg.mxu0
    %1624 = vrot.lane.b32.xlu0 %v1209, 120
    %v1625 = vpop.permute.xlu0 %1624
    %1626 = vrot.lane.b32.xlu0 %v1209, 88
    %v1627 = vpop.permute.xlu0 %1626
    %v1628 = vsel %vm606, %v1625, 0
    %v1630 = vsel %vm606, %v1627, 0
    %1632 = vmatprep.subr.mxu0 0.0
    %1633 = vmatpush1.xpose.msra.mxu0 %v1630
    %1634 = vmatprep.subr.mxu0 0.0
    %1635 = vmatpush1.xpose.msra.mxu0 0.0
    %1636 = vmatprep.subr.mxu0 0.0
    %1637 = vmatpush1.xpose.msra.mxu0 0.0
    %1638 = vmatprep.subr.mxu0 0.0
    %1639 = vmatpush1.xpose.msra.mxu0 0.0
    %1640 = vmatprep.subr.mxu0 0.0
    %1641 = vmatpush1.xpose.msra.mxu0 0.0
    %1642 = vmatprep.subr.mxu0 0.0
    %1643 = vmatpush1.xpose.msra.mxu0 0.0
    %1644 = vmatprep.subr.mxu0 0.0
    %1645 = vmatpush1.xpose.msra.mxu0 0.0
    %1646 = vmatprep.subr.mxu0 0.0
    %1647 = vmatpush1.xpose.msra.mxu0 0.0
    %1648 = vmatprep.subr.mxu0 0.0
    %1649 = vmatpush1.xpose.msra.mxu0 0.0
    %1650 = vmatprep.subr.mxu0 0.0
    %1651 = vmatpush1.xpose.msra.mxu0 0.0
    %1652 = vmatprep.subr.mxu0 0.0
    %1653 = vmatpush1.xpose.msra.mxu0 0.0
    %1654 = vmatprep.subr.mxu0 0.0
    %1655 = vmatpush1.xpose.msra.mxu0 0.0
    %1656 = vmatprep.subr.mxu0 0.0
    %1657 = vmatpush1.xpose.msra.mxu0 0.0
    %1658 = vmatprep.subr.mxu0 0.0
    %1659 = vmatpush1.xpose.msra.mxu0 0.0
    %1660 = vmatprep.subr.mxu0 0.0
    %1661 = vmatpush1.xpose.msra.mxu0 0.0
    %1662 = vmatprep.subr.mxu0 0.0
    %1663 = vmatpush1.xpose.msra.mxu0 0.0
    %1664 = vmatprep.subr.mxu0 0.0
    %1665 = vmatpush1.xpose.msra.mxu0 0.0
    %1666 = vmatprep.subr.mxu0 0.0
    %1667 = vmatpush1.xpose.msra.mxu0 0.0
    %1668 = vmatprep.subr.mxu0 0.0
    %1669 = vmatpush1.xpose.msra.mxu0 0.0
    %1670 = vmatprep.subr.mxu0 0.0
    %1671 = vmatpush1.xpose.msra.mxu0 0.0
    %1672 = vmatprep.subr.mxu0 0.0
    %1673 = vmatpush1.xpose.msra.mxu0 0.0
    %1674 = vmatprep.subr.mxu0 0.0
    %1675 = vmatpush1.xpose.msra.mxu0 0.0
    %1676 = vmatprep.subr.mxu0 0.0
    %1677 = vmatpush1.xpose.msra.mxu0 0.0
    %1678 = vmatprep.subr.mxu0 0.0
    %1679 = vmatpush1.xpose.msra.mxu0 0.0
    %1680 = vmatprep.subr.mxu0 0.0
    %1681 = vmatpush1.xpose.msra.mxu0 0.0
    %1682 = vmatprep.subr.mxu0 0.0
    %1683 = vmatpush1.xpose.msra.mxu0 0.0
    %1684 = vmatprep.subr.mxu0 0.0
    %1685 = vmatpush1.xpose.msra.mxu0 0.0
    %1686 = vmatprep.subr.mxu0 0.0
    %1687 = vmatpush1.xpose.msra.mxu0 0.0
    %1688 = vmatprep.subr.mxu0 0.0
    %1689 = vmatpush1.xpose.msra.mxu0 0.0
    %1690 = vmatprep.subr.mxu0 0.0
    %1691 = vmatpush1.xpose.msra.mxu0 0.0
    %1692 = vmatprep.subr.mxu0 0.0
    %1693 = vmatpush1.xpose.msra.mxu0 0.0
    %1694 = vmatprep.subr.mxu0 0.0
    %1695 = vmatpush1.xpose.msra.mxu0 0.0
    %1696 = vmatprep.mubr.f32.mxu0 0.0
    %1697 = vmatmul.mubr.f32.gmra.mrb[0].mxu0 %v1628
    %v1698 = vpop.f32.mrb[0].mxu0
    %v1699 = vadd.f32 0.0, %v1698
    %v1700 = vpop.f32.mrb[0].mxu0
    %1701 = vdwg.mxu0
    %v1702 = vmul.f32 %v1621, 0.35355338
    %v1703 = vmul.f32 %v1699, 0.35355338
    %v1704 = vsel %vm600, %v1702, -1e+09
    %v1705 = vsel %vm601, %v1703, -1e+09
    %v1706 = vsel %vm606, %v1704, -inf
    %1707 = vmax.xlane.f32.xlu0 %v1706
    %v1708 = vpop.xlane.xlu0 %1707
    %v1709 = vsel %vm606, %v1705, -inf
    %1710 = vmax.xlane.f32.xlu0 %v1709
    %v1711 = vpop.xlane.xlu0 %1710
    %v1712 = vsub.f32 %v1704, %v1708
    %v1713 = vsub.f32 %v1705, %v1711
    %v1714 = vmul.f32 %v1712, 1.442695
    %v1715 = vpow.pop %v1714
    %v1716 = vmul.f32 %v1713, 1.442695
    %v1717 = vpow.pop %v1716
    %v1718 = vsel %vm606, %v1715, 0.0
    %1719 = vadd.xlane.f32.xlu0 %v1718
    %v1720 = vpop.xlane.xlu0 %1719
    %v1721 = vsel %vm606, %v1717, 0.0
    %1722 = vadd.xlane.f32.xlu0 %v1721
    %v1723 = vpop.xlane.xlu0 %1722
    %v1724 = vrcp.pop %v1720
    %v1725 = vrcp.pop %v1723
    %v1726 = vmul.f32 %v1715, %v1724
    %v1727 = vmul.f32 %v1717, %v1725
    %v1728 = vmul.f32 %v1726, %v1094
    %v1729 = vmul.f32 %v1727, %v1095
    %1730 = vrot.lane.b32.xlu0 %v1204, 56
    %v1731 = vpop.permute.xlu0 %1730
    %v1734 = vsel %vm606, %v1728, 0
    %1736 = vmatprep.subr.mxu0 0.0
    %1737 = vmatpush1.msra.mxu0 %v1731
    %1738 = vmatprep.subr.mxu0 0.0
    %1739 = vmatpush1.msra.mxu0 0.0
    %1740 = vmatprep.subr.mxu0 0.0
    %1741 = vmatpush1.msra.mxu0 0.0
    %1742 = vmatprep.subr.mxu0 0.0
    %1743 = vmatpush1.msra.mxu0 0.0
    %1744 = vmatprep.subr.mxu0 0.0
    %1745 = vmatpush1.msra.mxu0 0.0
    %1746 = vmatprep.subr.mxu0 0.0
    %1747 = vmatpush1.msra.mxu0 0.0
    %1748 = vmatprep.subr.mxu0 0.0
    %1749 = vmatpush1.msra.mxu0 0.0
    %1750 = vmatprep.subr.mxu0 0.0
    %1751 = vmatpush1.msra.mxu0 0.0
    %1752 = vmatprep.subr.mxu0 0.0
    %1753 = vmatpush1.msra.mxu0 0.0
    %1754 = vmatprep.subr.mxu0 0.0
    %1755 = vmatpush1.msra.mxu0 0.0
    %1756 = vmatprep.subr.mxu0 0.0
    %1757 = vmatpush1.msra.mxu0 0.0
    %1758 = vmatprep.subr.mxu0 0.0
    %1759 = vmatpush1.msra.mxu0 0.0
    %1760 = vmatprep.subr.mxu0 0.0
    %1761 = vmatpush1.msra.mxu0 0.0
    %1762 = vmatprep.subr.mxu0 0.0
    %1763 = vmatpush1.msra.mxu0 0.0
    %1764 = vmatprep.subr.mxu0 0.0
    %1765 = vmatpush1.msra.mxu0 0.0
    %1766 = vmatprep.subr.mxu0 0.0
    %1767 = vmatpush1.msra.mxu0 0.0
    %1768 = vmatprep.subr.mxu0 0.0
    %1769 = vmatpush1.msra.mxu0 0.0
    %1770 = vmatprep.subr.mxu0 0.0
    %1771 = vmatpush1.msra.mxu0 0.0
    %1772 = vmatprep.subr.mxu0 0.0
    %1773 = vmatpush1.msra.mxu0 0.0
    %1774 = vmatprep.subr.mxu0 0.0
    %1775 = vmatpush1.msra.mxu0 0.0
    %1776 = vmatprep.subr.mxu0 0.0
    %1777 = vmatpush1.msra.mxu0 0.0
    %1778 = vmatprep.subr.mxu0 0.0
    %1779 = vmatpush1.msra.mxu0 0.0
    %1780 = vmatprep.subr.mxu0 0.0
    %1781 = vmatpush1.msra.mxu0 0.0
    %1782 = vmatprep.subr.mxu0 0.0
    %1783 = vmatpush1.msra.mxu0 0.0
    %1784 = vmatprep.subr.mxu0 0.0
    %1785 = vmatpush1.msra.mxu0 0.0
    %1786 = vmatprep.subr.mxu0 0.0
    %1787 = vmatpush1.msra.mxu0 0.0
    %1788 = vmatprep.subr.mxu0 0.0
    %1789 = vmatpush1.msra.mxu0 0.0
    %1790 = vmatprep.subr.mxu0 0.0
    %1791 = vmatpush1.msra.mxu0 0.0
    %1792 = vmatprep.subr.mxu0 0.0
    %1793 = vmatpush1.msra.mxu0 0.0
    %1794 = vmatprep.subr.mxu0 0.0
    %1795 = vmatpush1.msra.mxu0 0.0
    %1796 = vmatprep.subr.mxu0 0.0
    %1797 = vmatpush1.msra.mxu0 0.0
    %1798 = vmatprep.subr.mxu0 0.0
    %1799 = vmatpush1.msra.mxu0 0.0
    %1800 = vmatprep.mubr.f32.mxu0 0.0
    %1801 = vmatmul.mubr.f32.gmra.mrb[0].mxu0 %v1734
    %v1802 = vpop.f32.mrb[0].mxu0
    %v1803 = vadd.f32 0.0, %v1802
    %v1804 = vpop.f32.mrb[0].mxu0
    %1805 = vdwg.mxu0
    %1806 = vrot.lane.b32.xlu0 %v1209, 56
    %v1807 = vpop.permute.xlu0 %1806
    %v1810 = vsel %vm606, %v1729, 0
    %1812 = vmatprep.subr.mxu0 0.0
    %1813 = vmatpush1.msra.mxu0 %v1807
    %1814 = vmatprep.subr.mxu0 0.0
    %1815 = vmatpush1.msra.mxu0 0.0
    %1816 = vmatprep.subr.mxu0 0.0
    %1817 = vmatpush1.msra.mxu0 0.0
    %1818 = vmatprep.subr.mxu0 0.0
    %1819 = vmatpush1.msra.mxu0 0.0
    %1820 = vmatprep.subr.mxu0 0.0
    %1821 = vmatpush1.msra.mxu0 0.0
    %1822 = vmatprep.subr.mxu0 0.0
    %1823 = vmatpush1.msra.mxu0 0.0
    %1824 = vmatprep.subr.mxu0 0.0
    %1825 = vmatpush1.msra.mxu0 0.0
    %1826 = vmatprep.subr.mxu0 0.0
    %1827 = vmatpush1.msra.mxu0 0.0
    %1828 = vmatprep.subr.mxu0 0.0
    %1829 = vmatpush1.msra.mxu0 0.0
    %1830 = vmatprep.subr.mxu0 0.0
    %1831 = vmatpush1.msra.mxu0 0.0
    %1832 = vmatprep.subr.mxu0 0.0
    %1833 = vmatpush1.msra.mxu0 0.0
    %1834 = vmatprep.subr.mxu0 0.0
    %1835 = vmatpush1.msra.mxu0 0.0
    %1836 = vmatprep.subr.mxu0 0.0
    %1837 = vmatpush1.msra.mxu0 0.0
    %1838 = vmatprep.subr.mxu0 0.0
    %1839 = vmatpush1.msra.mxu0 0.0
    %1840 = vmatprep.subr.mxu0 0.0
    %1841 = vmatpush1.msra.mxu0 0.0
    %1842 = vmatprep.subr.mxu0 0.0
    %1843 = vmatpush1.msra.mxu0 0.0
    %1844 = vmatprep.subr.mxu0 0.0
    %1845 = vmatpush1.msra.mxu0 0.0
    %1846 = vmatprep.subr.mxu0 0.0
    %1847 = vmatpush1.msra.mxu0 0.0
    %1848 = vmatprep.subr.mxu0 0.0
    %1849 = vmatpush1.msra.mxu0 0.0
    %1850 = vmatprep.subr.mxu0 0.0
    %1851 = vmatpush1.msra.mxu0 0.0
    %1852 = vmatprep.subr.mxu0 0.0
    %1853 = vmatpush1.msra.mxu0 0.0
    %1854 = vmatprep.subr.mxu0 0.0
    %1855 = vmatpush1.msra.mxu0 0.0
    %1856 = vmatprep.subr.mxu0 0.0
    %1857 = vmatpush1.msra.mxu0 0.0
    %1858 = vmatprep.subr.mxu0 0.0
    %1859 = vmatpush1.msra.mxu0 0.0
    %1860 = vmatprep.subr.mxu0 0.0
    %1861 = vmatpush1.msra.mxu0 0.0
    %1862 = vmatprep.subr.mxu0 0.0
    %1863 = vmatpush1.msra.mxu0 0.0
    %1864 = vmatprep.subr.mxu0 0.0
    %1865 = vmatpush1.msra.mxu0 0.0
    %1866 = vmatprep.subr.mxu0 0.0
    %1867 = vmatpush1.msra.mxu0 0.0
    %1868 = vmatprep.subr.mxu0 0.0
    %1869 = vmatpush1.msra.mxu0 0.0
    %1870 = vmatprep.subr.mxu0 0.0
    %1871 = vmatpush1.msra.mxu0 0.0
    %1872 = vmatprep.subr.mxu0 0.0
    %1873 = vmatpush1.msra.mxu0 0.0
    %1874 = vmatprep.subr.mxu0 0.0
    %1875 = vmatpush1.msra.mxu0 0.0
    %1876 = vmatprep.mubr.f32.mxu0 0.0
    %1877 = vmatmul.mubr.f32.gmra.mrb[0].mxu0 %v1810
    %v1878 = vpop.f32.mrb[0].mxu0
    %v1879 = vadd.f32 0.0, %v1878
    %v1880 = vpop.f32.mrb[0].mxu0
    %1881 = vdwg.mxu0
    %1882 = vrot.lane.b32.xlu0 %v1204, 112
    %v1883 = vpop.permute.xlu0 %1882
    %1884 = vrot.lane.b32.xlu0 %v1204, 80
    %v1885 = vpop.permute.xlu0 %1884
    %v1886 = vsel %vm606, %v1883, 0
    %v1888 = vsel %vm606, %v1885, 0
    %1890 = vmatprep.subr.mxu0 0.0
    %1891 = vmatpush1.xpose.msra.mxu0 %v1888
    %1892 = vmatprep.subr.mxu0 0.0
    %1893 = vmatpush1.xpose.msra.mxu0 0.0
    %1894 = vmatprep.subr.mxu0 0.0
    %1895 = vmatpush1.xpose.msra.mxu0 0.0
    %1896 = vmatprep.subr.mxu0 0.0
    %1897 = vmatpush1.xpose.msra.mxu0 0.0
    %1898 = vmatprep.subr.mxu0 0.0
    %1899 = vmatpush1.xpose.msra.mxu0 0.0
    %1900 = vmatprep.subr.mxu0 0.0
    %1901 = vmatpush1.xpose.msra.mxu0 0.0
    %1902 = vmatprep.subr.mxu0 0.0
    %1903 = vmatpush1.xpose.msra.mxu0 0.0
    %1904 = vmatprep.subr.mxu0 0.0
    %1905 = vmatpush1.xpose.msra.mxu0 0.0
    %1906 = vmatprep.subr.mxu0 0.0
    %1907 = vmatpush1.xpose.msra.mxu0 0.0
    %1908 = vmatprep.subr.mxu0 0.0
    %1909 = vmatpush1.xpose.msra.mxu0 0.0
    %1910 = vmatprep.subr.mxu0 0.0
    %1911 = vmatpush1.xpose.msra.mxu0 0.0
    %1912 = vmatprep.subr.mxu0 0.0
    %1913 = vmatpush1.xpose.msra.mxu0 0.0
    %1914 = vmatprep.subr.mxu0 0.0
    %1915 = vmatpush1.xpose.msra.mxu0 0.0
    %1916 = vmatprep.subr.mxu0 0.0
    %1917 = vmatpush1.xpose.msra.mxu0 0.0
    %1918 = vmatprep.subr.mxu0 0.0
    %1919 = vmatpush1.xpose.msra.mxu0 0.0
    %1920 = vmatprep.subr.mxu0 0.0
    %1921 = vmatpush1.xpose.msra.mxu0 0.0
    %1922 = vmatprep.subr.mxu0 0.0
    %1923 = vmatpush1.xpose.msra.mxu0 0.0
    %1924 = vmatprep.subr.mxu0 0.0
    %1925 = vmatpush1.xpose.msra.mxu0 0.0
    %1926 = vmatprep.subr.mxu0 0.0
    %1927 = vmatpush1.xpose.msra.mxu0 0.0
    %1928 = vmatprep.subr.mxu0 0.0
    %1929 = vmatpush1.xpose.msra.mxu0 0.0
    %1930 = vmatprep.subr.mxu0 0.0
    %1931 = vmatpush1.xpose.msra.mxu0 0.0
    %1932 = vmatprep.subr.mxu0 0.0
    %1933 = vmatpush1.xpose.msra.mxu0 0.0
    %1934 = vmatprep.subr.mxu0 0.0
    %1935 = vmatpush1.xpose.msra.mxu0 0.0
    %1936 = vmatprep.subr.mxu0 0.0
    %1937 = vmatpush1.xpose.msra.mxu0 0.0
    %1938 = vmatprep.subr.mxu0 0.0
    %1939 = vmatpush1.xpose.msra.mxu0 0.0
    %1940 = vmatprep.subr.mxu0 0.0
    %1941 = vmatpush1.xpose.msra.mxu0 0.0
    %1942 = vmatprep.subr.mxu0 0.0
    %1943 = vmatpush1.xpose.msra.mxu0 0.0
    %1944 = vmatprep.subr.mxu0 0.0
    %1945 = vmatpush1.xpose.msra.mxu0 0.0
    %1946 = vmatprep.subr.mxu0 0.0
    %1947 = vmatpush1.xpose.msra.mxu0 0.0
    %1948 = vmatprep.subr.mxu0 0.0
    %1949 = vmatpush1.xpose.msra.mxu0 0.0
    %1950 = vmatprep.subr.mxu0 0.0
    %1951 = vmatpush1.xpose.msra.mxu0 0.0
    %1952 = vmatprep.subr.mxu0 0.0
    %1953 = vmatpush1.xpose.msra.mxu0 0.0
    %1954 = vmatprep.mubr.f32.mxu0 0.0
    %1955 = vmatmul.mubr.f32.gmra.mrb[0].mxu0 %v1886
    %v1956 = vpop.f32.mrb[0].mxu0
    %v1957 = vadd.f32 0.0, %v1956
    %v1958 = vpop.f32.mrb[0].mxu0
    %1959 = vdwg.mxu0
    %1960 = vrot.lane.b32.xlu0 %v1209, 112
    %v1961 = vpop.permute.xlu0 %1960
    %1962 = vrot.lane.b32.xlu0 %v1209, 80
    %v1963 = vpop.permute.xlu0 %1962
    %v1964 = vsel %vm606, %v1961, 0
    %v1966 = vsel %vm606, %v1963, 0
    %1968 = vmatprep.subr.mxu0 0.0
    %1969 = vmatpush1.xpose.msra.mxu0 %v1966
    %1970 = vmatprep.subr.mxu0 0.0
    %1971 = vmatpush1.xpose.msra.mxu0 0.0
    %1972 = vmatprep.subr.mxu0 0.0
    %1973 = vmatpush1.xpose.msra.mxu0 0.0
    %1974 = vmatprep.subr.mxu0 0.0
    %1975 = vmatpush1.xpose.msra.mxu0 0.0
    %1976 = vmatprep.subr.mxu0 0.0
    %1977 = vmatpush1.xpose.msra.mxu0 0.0
    %1978 = vmatprep.subr.mxu0 0.0
    %1979 = vmatpush1.xpose.msra.mxu0 0.0
    %1980 = vmatprep.subr.mxu0 0.0
    %1981 = vmatpush1.xpose.msra.mxu0 0.0
    %1982 = vmatprep.subr.mxu0 0.0
    %1983 = vmatpush1.xpose.msra.mxu0 0.0
    %1984 = vmatprep.subr.mxu0 0.0
    %1985 = vmatpush1.xpose.msra.mxu0 0.0
    %1986 = vmatprep.subr.mxu0 0.0
    %1987 = vmatpush1.xpose.msra.mxu0 0.0
    %1988 = vmatprep.subr.mxu0 0.0
    %1989 = vmatpush1.xpose.msra.mxu0 0.0
    %1990 = vmatprep.subr.mxu0 0.0
    %1991 = vmatpush1.xpose.msra.mxu0 0.0
    %1992 = vmatprep.subr.mxu0 0.0
    %1993 = vmatpush1.xpose.msra.mxu0 0.0
    %1994 = vmatprep.subr.mxu0 0.0
    %1995 = vmatpush1.xpose.msra.mxu0 0.0
    %1996 = vmatprep.subr.mxu0 0.0
    %1997 = vmatpush1.xpose.msra.mxu0 0.0
    %1998 = vmatprep.subr.mxu0 0.0
    %1999 = vmatpush1.xpose.msra.mxu0 0.0
    %2000 = vmatprep.subr.mxu0 0.0
    %2001 = vmatpush1.xpose.msra.mxu0 0.0
    %2002 = vmatprep.subr.mxu0 0.0
    %2003 = vmatpush1.xpose.msra.mxu0 0.0
    %2004 = vmatprep.subr.mxu0 0.0
    %2005 = vmatpush1.xpose.msra.mxu0 0.0
    %2006 = vmatprep.subr.mxu0 0.0
    %2007 = vmatpush1.xpose.msra.mxu0 0.0
    %2008 = vmatprep.subr.mxu0 0.0
    %2009 = vmatpush1.xpose.msra.mxu0 0.0
    %2010 = vmatprep.subr.mxu0 0.0
    %2011 = vmatpush1.xpose.msra.mxu0 0.0
    %2012 = vmatprep.subr.mxu0 0.0
    %2013 = vmatpush1.xpose.msra.mxu0 0.0
    %2014 = vmatprep.subr.mxu0 0.0
    %2015 = vmatpush1.xpose.msra.mxu0 0.0
    %2016 = vmatprep.subr.mxu0 0.0
    %2017 = vmatpush1.xpose.msra.mxu0 0.0
    %2018 = vmatprep.subr.mxu0 0.0
    %2019 = vmatpush1.xpose.msra.mxu0 0.0
    %2020 = vmatprep.subr.mxu0 0.0
    %2021 = vmatpush1.xpose.msra.mxu0 0.0
    %2022 = vmatprep.subr.mxu0 0.0
    %2023 = vmatpush1.xpose.msra.mxu0 0.0
    %2024 = vmatprep.subr.mxu0 0.0
    %2025 = vmatpush1.xpose.msra.mxu0 0.0
    %2026 = vmatprep.subr.mxu0 0.0
    %2027 = vmatpush1.xpose.msra.mxu0 0.0
    %2028 = vmatprep.subr.mxu0 0.0
    %2029 = vmatpush1.xpose.msra.mxu0 0.0
    %2030 = vmatprep.subr.mxu0 0.0
    %2031 = vmatpush1.xpose.msra.mxu0 0.0
    %2032 = vmatprep.mubr.f32.mxu0 0.0
    %2033 = vmatmul.mubr.f32.gmra.mrb[0].mxu0 %v1964
    %v2034 = vpop.f32.mrb[0].mxu0
    %v2035 = vadd.f32 0.0, %v2034
    %v2036 = vpop.f32.mrb[0].mxu0
    %2037 = vdwg.mxu0
    %v2038 = vmul.f32 %v1957, 0.35355338
    %v2039 = vmul.f32 %v2035, 0.35355338
    %v2040 = vsel %vm600, %v2038, -1e+09
    %v2041 = vsel %vm601, %v2039, -1e+09
    %v2042 = vsel %vm606, %v2040, -inf
    %2043 = vmax.xlane.f32.xlu0 %v2042
    %v2044 = vpop.xlane.xlu0 %2043
    %v2045 = vsel %vm606, %v2041, -inf
    %2046 = vmax.xlane.f32.xlu0 %v2045
    %v2047 = vpop.xlane.xlu0 %2046
    %v2048 = vsub.f32 %v2040, %v2044
    %v2049 = vsub.f32 %v2041, %v2047
    %v2050 = vmul.f32 %v2048, 1.442695
    %v2051 = vpow.pop %v2050
    %v2052 = vmul.f32 %v2049, 1.442695
    %v2053 = vpow.pop %v2052
    %v2054 = vsel %vm606, %v2051, 0.0
    %2055 = vadd.xlane.f32.xlu0 %v2054
    %v2056 = vpop.xlane.xlu0 %2055
    %v2057 = vsel %vm606, %v2053, 0.0
    %2058 = vadd.xlane.f32.xlu0 %v2057
    %v2059 = vpop.xlane.xlu0 %2058
    %v2060 = vrcp.pop %v2056
    %v2061 = vrcp.pop %v2059
    %v2062 = vmul.f32 %v2051, %v2060
    %v2063 = vmul.f32 %v2053, %v2061
    %v2064 = vmul.f32 %v2062, %v1094
    %v2065 = vmul.f32 %v2063, %v1095
    %2066 = vrot.lane.b32.xlu0 %v1204, 48
    %v2067 = vpop.permute.xlu0 %2066
    %v2070 = vsel %vm606, %v2064, 0
    %2072 = vmatprep.subr.mxu0 0.0
    %2073 = vmatpush1.msra.mxu0 %v2067
    %2074 = vmatprep.subr.mxu0 0.0
    %2075 = vmatpush1.msra.mxu0 0.0
    %2076 = vmatprep.subr.mxu0 0.0
    %2077 = vmatpush1.msra.mxu0 0.0
    %2078 = vmatprep.subr.mxu0 0.0
    %2079 = vmatpush1.msra.mxu0 0.0
    %2080 = vmatprep.subr.mxu0 0.0
    %2081 = vmatpush1.msra.mxu0 0.0
    %2082 = vmatprep.subr.mxu0 0.0
    %2083 = vmatpush1.msra.mxu0 0.0
    %2084 = vmatprep.subr.mxu0 0.0
    %2085 = vmatpush1.msra.mxu0 0.0
    %2086 = vmatprep.subr.mxu0 0.0
    %2087 = vmatpush1.msra.mxu0 0.0
    %2088 = vmatprep.subr.mxu0 0.0
    %2089 = vmatpush1.msra.mxu0 0.0
    %2090 = vmatprep.subr.mxu0 0.0
    %2091 = vmatpush1.msra.mxu0 0.0
    %2092 = vmatprep.subr.mxu0 0.0
    %2093 = vmatpush1.msra.mxu0 0.0
    %2094 = vmatprep.subr.mxu0 0.0
    %2095 = vmatpush1.msra.mxu0 0.0
    %2096 = vmatprep.subr.mxu0 0.0
    %2097 = vmatpush1.msra.mxu0 0.0
    %2098 = vmatprep.subr.mxu0 0.0
    %2099 = vmatpush1.msra.mxu0 0.0
    %2100 = vmatprep.subr.mxu0 0.0
    %2101 = vmatpush1.msra.mxu0 0.0
    %2102 = vmatprep.subr.mxu0 0.0
    %2103 = vmatpush1.msra.mxu0 0.0
    %2104 = vmatprep.subr.mxu0 0.0
    %2105 = vmatpush1.msra.mxu0 0.0
    %2106 = vmatprep.subr.mxu0 0.0
    %2107 = vmatpush1.msra.mxu0 0.0
    %2108 = vmatprep.subr.mxu0 0.0
    %2109 = vmatpush1.msra.mxu0 0.0
    %2110 = vmatprep.subr.mxu0 0.0
    %2111 = vmatpush1.msra.mxu0 0.0
    %2112 = vmatprep.subr.mxu0 0.0
    %2113 = vmatpush1.msra.mxu0 0.0
    %2114 = vmatprep.subr.mxu0 0.0
    %2115 = vmatpush1.msra.mxu0 0.0
    %2116 = vmatprep.subr.mxu0 0.0
    %2117 = vmatpush1.msra.mxu0 0.0
    %2118 = vmatprep.subr.mxu0 0.0
    %2119 = vmatpush1.msra.mxu0 0.0
    %2120 = vmatprep.subr.mxu0 0.0
    %2121 = vmatpush1.msra.mxu0 0.0
    %2122 = vmatprep.subr.mxu0 0.0
    %2123 = vmatpush1.msra.mxu0 0.0
    %2124 = vmatprep.subr.mxu0 0.0
    %2125 = vmatpush1.msra.mxu0 0.0
    %2126 = vmatprep.subr.mxu0 0.0
    %2127 = vmatpush1.msra.mxu0 0.0
    %2128 = vmatprep.subr.mxu0 0.0
    %2129 = vmatpush1.msra.mxu0 0.0
    %2130 = vmatprep.subr.mxu0 0.0
    %2131 = vmatpush1.msra.mxu0 0.0
    %2132 = vmatprep.subr.mxu0 0.0
    %2133 = vmatpush1.msra.mxu0 0.0
    %2134 = vmatprep.subr.mxu0 0.0
    %2135 = vmatpush1.msra.mxu0 0.0
    %2136 = vmatprep.mubr.f32.mxu0 0.0
    %2137 = vmatmul.mubr.f32.gmra.mrb[0].mxu0 %v2070
    %v2138 = vpop.f32.mrb[0].mxu0
    %v2139 = vadd.f32 0.0, %v2138
    %v2140 = vpop.f32.mrb[0].mxu0
    %2141 = vdwg.mxu0
    %2142 = vrot.lane.b32.xlu0 %v1209, 48
    %v2143 = vpop.permute.xlu0 %2142
    %v2146 = vsel %vm606, %v2065, 0
    %2148 = vmatprep.subr.mxu0 0.0
    %2149 = vmatpush1.msra.mxu0 %v2143
    %2150 = vmatprep.subr.mxu0 0.0
    %2151 = vmatpush1.msra.mxu0 0.0
    %2152 = vmatprep.subr.mxu0 0.0
    %2153 = vmatpush1.msra.mxu0 0.0
    %2154 = vmatprep.subr.mxu0 0.0
    %2155 = vmatpush1.msra.mxu0 0.0
    %2156 = vmatprep.subr.mxu0 0.0
    %2157 = vmatpush1.msra.mxu0 0.0
    %2158 = vmatprep.subr.mxu0 0.0
    %2159 = vmatpush1.msra.mxu0 0.0
    %2160 = vmatprep.subr.mxu0 0.0
    %2161 = vmatpush1.msra.mxu0 0.0
    %2162 = vmatprep.subr.mxu0 0.0
    %2163 = vmatpush1.msra.mxu0 0.0
    %2164 = vmatprep.subr.mxu0 0.0
    %2165 = vmatpush1.msra.mxu0 0.0
    %2166 = vmatprep.subr.mxu0 0.0
    %2167 = vmatpush1.msra.mxu0 0.0
    %2168 = vmatprep.subr.mxu0 0.0
    %2169 = vmatpush1.msra.mxu0 0.0
    %2170 = vmatprep.subr.mxu0 0.0
    %2171 = vmatpush1.msra.mxu0 0.0
    %2172 = vmatprep.subr.mxu0 0.0
    %2173 = vmatpush1.msra.mxu0 0.0
    %2174 = vmatprep.subr.mxu0 0.0
    %2175 = vmatpush1.msra.mxu0 0.0
    %2176 = vmatprep.subr.mxu0 0.0
    %2177 = vmatpush1.msra.mxu0 0.0
    %2178 = vmatprep.subr.mxu0 0.0
    %2179 = vmatpush1.msra.mxu0 0.0
    %2180 = vmatprep.subr.mxu0 0.0
    %2181 = vmatpush1.msra.mxu0 0.0
    %2182 = vmatprep.subr.mxu0 0.0
    %2183 = vmatpush1.msra.mxu0 0.0
    %2184 = vmatprep.subr.mxu0 0.0
    %2185 = vmatpush1.msra.mxu0 0.0
    %2186 = vmatprep.subr.mxu0 0.0
    %2187 = vmatpush1.msra.mxu0 0.0
    %2188 = vmatprep.subr.mxu0 0.0
    %2189 = vmatpush1.msra.mxu0 0.0
    %2190 = vmatprep.subr.mxu0 0.0
    %2191 = vmatpush1.msra.mxu0 0.0
    %2192 = vmatprep.subr.mxu0 0.0
    %2193 = vmatpush1.msra.mxu0 0.0
    %2194 = vmatprep.subr.mxu0 0.0
    %2195 = vmatpush1.msra.mxu0 0.0
    %2196 = vmatprep.subr.mxu0 0.0
    %2197 = vmatpush1.msra.mxu0 0.0
    %2198 = vmatprep.subr.mxu0 0.0
    %2199 = vmatpush1.msra.mxu0 0.0
    %2200 = vmatprep.subr.mxu0 0.0
    %2201 = vmatpush1.msra.mxu0 0.0
    %2202 = vmatprep.subr.mxu0 0.0
    %2203 = vmatpush1.msra.mxu0 0.0
    %2204 = vmatprep.subr.mxu0 0.0
    %2205 = vmatpush1.msra.mxu0 0.0
    %2206 = vmatprep.subr.mxu0 0.0
    %2207 = vmatpush1.msra.mxu0 0.0
    %2208 = vmatprep.subr.mxu0 0.0
    %2209 = vmatpush1.msra.mxu0 0.0
    %2210 = vmatprep.subr.mxu0 0.0
    %2211 = vmatpush1.msra.mxu0 0.0
    %2212 = vmatprep.mubr.f32.mxu0 0.0
    %2213 = vmatmul.mubr.f32.gmra.mrb[0].mxu0 %v2146
    %v2214 = vpop.f32.mrb[0].mxu0
    %v2215 = vadd.f32 0.0, %v2214
    %v2216 = vpop.f32.mrb[0].mxu0
    %2217 = vdwg.mxu0
    %2218 = vrot.lane.b32.xlu0 %v1204, 104
    %v2219 = vpop.permute.xlu0 %2218
    %2220 = vrot.lane.b32.xlu0 %v1204, 72
    %v2221 = vpop.permute.xlu0 %2220
    %v2222 = vsel %vm606, %v2219, 0
    %v2224 = vsel %vm606, %v2221, 0
    %2226 = vmatprep.subr.mxu0 0.0
    %2227 = vmatpush1.xpose.msra.mxu0 %v2224
    %2228 = vmatprep.subr.mxu0 0.0
    %2229 = vmatpush1.xpose.msra.mxu0 0.0
    %2230 = vmatprep.subr.mxu0 0.0
    %2231 = vmatpush1.xpose.msra.mxu0 0.0
    %2232 = vmatprep.subr.mxu0 0.0
    %2233 = vmatpush1.xpose.msra.mxu0 0.0
    %2234 = vmatprep.subr.mxu0 0.0
    %2235 = vmatpush1.xpose.msra.mxu0 0.0
    %2236 = vmatprep.subr.mxu0 0.0
    %2237 = vmatpush1.xpose.msra.mxu0 0.0
    %2238 = vmatprep.subr.mxu0 0.0
    %2239 = vmatpush1.xpose.msra.mxu0 0.0
    %2240 = vmatprep.subr.mxu0 0.0
    %2241 = vmatpush1.xpose.msra.mxu0 0.0
    %2242 = vmatprep.subr.mxu0 0.0
    %2243 = vmatpush1.xpose.msra.mxu0 0.0
    %2244 = vmatprep.subr.mxu0 0.0
    %2245 = vmatpush1.xpose.msra.mxu0 0.0
    %2246 = vmatprep.subr.mxu0 0.0
    %2247 = vmatpush1.xpose.msra.mxu0 0.0
    %2248 = vmatprep.subr.mxu0 0.0
    %2249 = vmatpush1.xpose.msra.mxu0 0.0
    %2250 = vmatprep.subr.mxu0 0.0
    %2251 = vmatpush1.xpose.msra.mxu0 0.0
    %2252 = vmatprep.subr.mxu0 0.0
    %2253 = vmatpush1.xpose.msra.mxu0 0.0
    %2254 = vmatprep.subr.mxu0 0.0
    %2255 = vmatpush1.xpose.msra.mxu0 0.0
    %2256 = vmatprep.subr.mxu0 0.0
    %2257 = vmatpush1.xpose.msra.mxu0 0.0
    %2258 = vmatprep.subr.mxu0 0.0
    %2259 = vmatpush1.xpose.msra.mxu0 0.0
    %2260 = vmatprep.subr.mxu0 0.0
    %2261 = vmatpush1.xpose.msra.mxu0 0.0
    %2262 = vmatprep.subr.mxu0 0.0
    %2263 = vmatpush1.xpose.msra.mxu0 0.0
    %2264 = vmatprep.subr.mxu0 0.0
    %2265 = vmatpush1.xpose.msra.mxu0 0.0
    %2266 = vmatprep.subr.mxu0 0.0
    %2267 = vmatpush1.xpose.msra.mxu0 0.0
    %2268 = vmatprep.subr.mxu0 0.0
    %2269 = vmatpush1.xpose.msra.mxu0 0.0
    %2270 = vmatprep.subr.mxu0 0.0
    %2271 = vmatpush1.xpose.msra.mxu0 0.0
    %2272 = vmatprep.subr.mxu0 0.0
    %2273 = vmatpush1.xpose.msra.mxu0 0.0
    %2274 = vmatprep.subr.mxu0 0.0
    %2275 = vmatpush1.xpose.msra.mxu0 0.0
    %2276 = vmatprep.subr.mxu0 0.0
    %2277 = vmatpush1.xpose.msra.mxu0 0.0
    %2278 = vmatprep.subr.mxu0 0.0
    %2279 = vmatpush1.xpose.msra.mxu0 0.0
    %2280 = vmatprep.subr.mxu0 0.0
    %2281 = vmatpush1.xpose.msra.mxu0 0.0
    %2282 = vmatprep.subr.mxu0 0.0
    %2283 = vmatpush1.xpose.msra.mxu0 0.0
    %2284 = vmatprep.subr.mxu0 0.0
    %2285 = vmatpush1.xpose.msra.mxu0 0.0
    %2286 = vmatprep.subr.mxu0 0.0
    %2287 = vmatpush1.xpose.msra.mxu0 0.0
    %2288 = vmatprep.subr.mxu0 0.0
    %2289 = vmatpush1.xpose.msra.mxu0 0.0
    %2290 = vmatprep.mubr.f32.mxu0 0.0
    %2291 = vmatmul.mubr.f32.gmra.mrb[0].mxu0 %v2222
    %v2292 = vpop.f32.mrb[0].mxu0
    %v2293 = vadd.f32 0.0, %v2292
    %v2294 = vpop.f32.mrb[0].mxu0
    %2295 = vdwg.mxu0
    %2296 = vrot.lane.b32.xlu0 %v1209, 104
    %v2297 = vpop.permute.xlu0 %2296
    %2298 = vrot.lane.b32.xlu0 %v1209, 72
    %v2299 = vpop.permute.xlu0 %2298
    %v2300 = vsel %vm606, %v2297, 0
    %v2302 = vsel %vm606, %v2299, 0
    %2304 = vmatprep.subr.mxu0 0.0
    %2305 = vmatpush1.xpose.msra.mxu0 %v2302
    %2306 = vmatprep.subr.mxu0 0.0
    %2307 = vmatpush1.xpose.msra.mxu0 0.0
    %2308 = vmatprep.subr.mxu0 0.0
    %2309 = vmatpush1.xpose.msra.mxu0 0.0
    %2310 = vmatprep.subr.mxu0 0.0
    %2311 = vmatpush1.xpose.msra.mxu0 0.0
    %2312 = vmatprep.subr.mxu0 0.0
    %2313 = vmatpush1.xpose.msra.mxu0 0.0
    %2314 = vmatprep.subr.mxu0 0.0
    %2315 = vmatpush1.xpose.msra.mxu0 0.0
    %2316 = vmatprep.subr.mxu0 0.0
    %2317 = vmatpush1.xpose.msra.mxu0 0.0
    %2318 = vmatprep.subr.mxu0 0.0
    %2319 = vmatpush1.xpose.msra.mxu0 0.0
    %2320 = vmatprep.subr.mxu0 0.0
    %2321 = vmatpush1.xpose.msra.mxu0 0.0
    %2322 = vmatprep.subr.mxu0 0.0
    %2323 = vmatpush1.xpose.msra.mxu0 0.0
    %2324 = vmatprep.subr.mxu0 0.0
    %2325 = vmatpush1.xpose.msra.mxu0 0.0
    %2326 = vmatprep.subr.mxu0 0.0
    %2327 = vmatpush1.xpose.msra.mxu0 0.0
    %2328 = vmatprep.subr.mxu0 0.0
    %2329 = vmatpush1.xpose.msra.mxu0 0.0
    %2330 = vmatprep.subr.mxu0 0.0
    %2331 = vmatpush1.xpose.msra.mxu0 0.0
    %2332 = vmatprep.subr.mxu0 0.0
    %2333 = vmatpush1.xpose.msra.mxu0 0.0
    %2334 = vmatprep.subr.mxu0 0.0
    %2335 = vmatpush1.xpose.msra.mxu0 0.0
    %2336 = vmatprep.subr.mxu0 0.0
    %2337 = vmatpush1.xpose.msra.mxu0 0.0
    %2338 = vmatprep.subr.mxu0 0.0
    %2339 = vmatpush1.xpose.msra.mxu0 0.0
    %2340 = vmatprep.subr.mxu0 0.0
    %2341 = vmatpush1.xpose.msra.mxu0 0.0
    %2342 = vmatprep.subr.mxu0 0.0
    %2343 = vmatpush1.xpose.msra.mxu0 0.0
    %2344 = vmatprep.subr.mxu0 0.0
    %2345 = vmatpush1.xpose.msra.mxu0 0.0
    %2346 = vmatprep.subr.mxu0 0.0
    %2347 = vmatpush1.xpose.msra.mxu0 0.0
    %2348 = vmatprep.subr.mxu0 0.0
    %2349 = vmatpush1.xpose.msra.mxu0 0.0
    %2350 = vmatprep.subr.mxu0 0.0
    %2351 = vmatpush1.xpose.msra.mxu0 0.0
    %2352 = vmatprep.subr.mxu0 0.0
    %2353 = vmatpush1.xpose.msra.mxu0 0.0
    %2354 = vmatprep.subr.mxu0 0.0
    %2355 = vmatpush1.xpose.msra.mxu0 0.0
    %2356 = vmatprep.subr.mxu0 0.0
    %2357 = vmatpush1.xpose.msra.mxu0 0.0
    %2358 = vmatprep.subr.mxu0 0.0
    %2359 = vmatpush1.xpose.msra.mxu0 0.0
    %2360 = vmatprep.subr.mxu0 0.0
    %2361 = vmatpush1.xpose.msra.mxu0 0.0
    %2362 = vmatprep.subr.mxu0 0.0
    %2363 = vmatpush1.xpose.msra.mxu0 0.0
    %2364 = vmatprep.subr.mxu0 0.0
    %2365 = vmatpush1.xpose.msra.mxu0 0.0
    %2366 = vmatprep.subr.mxu0 0.0
    %2367 = vmatpush1.xpose.msra.mxu0 0.0
    %2368 = vmatprep.mubr.f32.mxu0 0.0
    %2369 = vmatmul.mubr.f32.gmra.mrb[0].mxu0 %v2300
    %v2370 = vpop.f32.mrb[0].mxu0
    %v2371 = vadd.f32 0.0, %v2370
    %v2372 = vpop.f32.mrb[0].mxu0
    %2373 = vdwg.mxu0
    %v2374 = vmul.f32 %v2293, 0.35355338
    %v2375 = vmul.f32 %v2371, 0.35355338
    %v2376 = vsel %vm600, %v2374, -1e+09
    %v2377 = vsel %vm601, %v2375, -1e+09
    %v2378 = vsel %vm606, %v2376, -inf
    %2379 = vmax.xlane.f32.xlu0 %v2378
    %v2380 = vpop.xlane.xlu0 %2379
    %v2381 = vsel %vm606, %v2377, -inf
    %2382 = vmax.xlane.f32.xlu0 %v2381
    %v2383 = vpop.xlane.xlu0 %2382
    %v2384 = vsub.f32 %v2376, %v2380
    %v2385 = vsub.f32 %v2377, %v2383
    %v2386 = vmul.f32 %v2384, 1.442695
    %v2387 = vpow.pop %v2386
    %v2388 = vmul.f32 %v2385, 1.442695
    %v2389 = vpow.pop %v2388
    %v2390 = vsel %vm606, %v2387, 0.0
    %2391 = vadd.xlane.f32.xlu0 %v2390
    %v2392 = vpop.xlane.xlu0 %2391
    %v2393 = vsel %vm606, %v2389, 0.0
    %2394 = vadd.xlane.f32.xlu0 %v2393
    %v2395 = vpop.xlane.xlu0 %2394
    %v2396 = vrcp.pop %v2392
    %v2397 = vrcp.pop %v2395
    %v2398 = vmul.f32 %v2387, %v2396
    %v2399 = vmul.f32 %v2389, %v2397
    %v2400 = vmul.f32 %v2398, %v1094
    %v2401 = vmul.f32 %v2399, %v1095
    %2402 = vrot.lane.b32.xlu0 %v1204, 40
    %v2403 = vpop.permute.xlu0 %2402
    %v2406 = vsel %vm606, %v2400, 0
    %2408 = vmatprep.subr.mxu0 0.0
    %2409 = vmatpush1.msra.mxu0 %v2403
    %2410 = vmatprep.subr.mxu0 0.0
    %2411 = vmatpush1.msra.mxu0 0.0
    %2412 = vmatprep.subr.mxu0 0.0
    %2413 = vmatpush1.msra.mxu0 0.0
    %2414 = vmatprep.subr.mxu0 0.0
    %2415 = vmatpush1.msra.mxu0 0.0
    %2416 = vmatprep.subr.mxu0 0.0
    %2417 = vmatpush1.msra.mxu0 0.0
    %2418 = vmatprep.subr.mxu0 0.0
    %2419 = vmatpush1.msra.mxu0 0.0
    %2420 = vmatprep.subr.mxu0 0.0
    %2421 = vmatpush1.msra.mxu0 0.0
    %2422 = vmatprep.subr.mxu0 0.0
    %2423 = vmatpush1.msra.mxu0 0.0
    %2424 = vmatprep.subr.mxu0 0.0
    %2425 = vmatpush1.msra.mxu0 0.0
    %2426 = vmatprep.subr.mxu0 0.0
    %2427 = vmatpush1.msra.mxu0 0.0
    %2428 = vmatprep.subr.mxu0 0.0
    %2429 = vmatpush1.msra.mxu0 0.0
    %2430 = vmatprep.subr.mxu0 0.0
    %2431 = vmatpush1.msra.mxu0 0.0
    %2432 = vmatprep.subr.mxu0 0.0
    %2433 = vmatpush1.msra.mxu0 0.0
    %2434 = vmatprep.subr.mxu0 0.0
    %2435 = vmatpush1.msra.mxu0 0.0
    %2436 = vmatprep.subr.mxu0 0.0
    %2437 = vmatpush1.msra.mxu0 0.0
    %2438 = vmatprep.subr.mxu0 0.0
    %2439 = vmatpush1.msra.mxu0 0.0
    %2440 = vmatprep.subr.mxu0 0.0
    %2441 = vmatpush1.msra.mxu0 0.0
    %2442 = vmatprep.subr.mxu0 0.0
    %2443 = vmatpush1.msra.mxu0 0.0
    %2444 = vmatprep.subr.mxu0 0.0
    %2445 = vmatpush1.msra.mxu0 0.0
    %2446 = vmatprep.subr.mxu0 0.0
    %2447 = vmatpush1.msra.mxu0 0.0
    %2448 = vmatprep.subr.mxu0 0.0
    %2449 = vmatpush1.msra.mxu0 0.0
    %2450 = vmatprep.subr.mxu0 0.0
    %2451 = vmatpush1.msra.mxu0 0.0
    %2452 = vmatprep.subr.mxu0 0.0
    %2453 = vmatpush1.msra.mxu0 0.0
    %2454 = vmatprep.subr.mxu0 0.0
    %2455 = vmatpush1.msra.mxu0 0.0
    %2456 = vmatprep.subr.mxu0 0.0
    %2457 = vmatpush1.msra.mxu0 0.0
    %2458 = vmatprep.subr.mxu0 0.0
    %2459 = vmatpush1.msra.mxu0 0.0
    %2460 = vmatprep.subr.mxu0 0.0
    %2461 = vmatpush1.msra.mxu0 0.0
    %2462 = vmatprep.subr.mxu0 0.0
    %2463 = vmatpush1.msra.mxu0 0.0
    %2464 = vmatprep.subr.mxu0 0.0
    %2465 = vmatpush1.msra.mxu0 0.0
    %2466 = vmatprep.subr.mxu0 0.0
    %2467 = vmatpush1.msra.mxu0 0.0
    %2468 = vmatprep.subr.mxu0 0.0
    %2469 = vmatpush1.msra.mxu0 0.0
    %2470 = vmatprep.subr.mxu0 0.0
    %2471 = vmatpush1.msra.mxu0 0.0
    %2472 = vmatprep.mubr.f32.mxu0 0.0
    %2473 = vmatmul.mubr.f32.gmra.mrb[0].mxu0 %v2406
    %v2474 = vpop.f32.mrb[0].mxu0
    %v2475 = vadd.f32 0.0, %v2474
    %v2476 = vpop.f32.mrb[0].mxu0
    %2477 = vdwg.mxu0
    %2478 = vrot.lane.b32.xlu0 %v1209, 40
    %v2479 = vpop.permute.xlu0 %2478
    %v2482 = vsel %vm606, %v2401, 0
    %2484 = vmatprep.subr.mxu0 0.0
    %2485 = vmatpush1.msra.mxu0 %v2479
    %2486 = vmatprep.subr.mxu0 0.0
    %2487 = vmatpush1.msra.mxu0 0.0
    %2488 = vmatprep.subr.mxu0 0.0
    %2489 = vmatpush1.msra.mxu0 0.0
    %2490 = vmatprep.subr.mxu0 0.0
    %2491 = vmatpush1.msra.mxu0 0.0
    %2492 = vmatprep.subr.mxu0 0.0
    %2493 = vmatpush1.msra.mxu0 0.0
    %2494 = vmatprep.subr.mxu0 0.0
    %2495 = vmatpush1.msra.mxu0 0.0
    %2496 = vmatprep.subr.mxu0 0.0
    %2497 = vmatpush1.msra.mxu0 0.0
    %2498 = vmatprep.subr.mxu0 0.0
    %2499 = vmatpush1.msra.mxu0 0.0
    %2500 = vmatprep.subr.mxu0 0.0
    %2501 = vmatpush1.msra.mxu0 0.0
    %2502 = vmatprep.subr.mxu0 0.0
    %2503 = vmatpush1.msra.mxu0 0.0
    %2504 = vmatprep.subr.mxu0 0.0
    %2505 = vmatpush1.msra.mxu0 0.0
    %2506 = vmatprep.subr.mxu0 0.0
    %2507 = vmatpush1.msra.mxu0 0.0
    %2508 = vmatprep.subr.mxu0 0.0
    %2509 = vmatpush1.msra.mxu0 0.0
    %2510 = vmatprep.subr.mxu0 0.0
    %2511 = vmatpush1.msra.mxu0 0.0
    %2512 = vmatprep.subr.mxu0 0.0
    %2513 = vmatpush1.msra.mxu0 0.0
    %2514 = vmatprep.subr.mxu0 0.0
    %2515 = vmatpush1.msra.mxu0 0.0
    %2516 = vmatprep.subr.mxu0 0.0
    %2517 = vmatpush1.msra.mxu0 0.0
    %2518 = vmatprep.subr.mxu0 0.0
    %2519 = vmatpush1.msra.mxu0 0.0
    %2520 = vmatprep.subr.mxu0 0.0
    %2521 = vmatpush1.msra.mxu0 0.0
    %2522 = vmatprep.subr.mxu0 0.0
    %2523 = vmatpush1.msra.mxu0 0.0
    %2524 = vmatprep.subr.mxu0 0.0
    %2525 = vmatpush1.msra.mxu0 0.0
    %2526 = vmatprep.subr.mxu0 0.0
    %2527 = vmatpush1.msra.mxu0 0.0
    %2528 = vmatprep.subr.mxu0 0.0
    %2529 = vmatpush1.msra.mxu0 0.0
    %2530 = vmatprep.subr.mxu0 0.0
    %2531 = vmatpush1.msra.mxu0 0.0
    %2532 = vmatprep.subr.mxu0 0.0
    %2533 = vmatpush1.msra.mxu0 0.0
    %2534 = vmatprep.subr.mxu0 0.0
    %2535 = vmatpush1.msra.mxu0 0.0
    %2536 = vmatprep.subr.mxu0 0.0
    %2537 = vmatpush1.msra.mxu0 0.0
    %2538 = vmatprep.subr.mxu0 0.0
    %2539 = vmatpush1.msra.mxu0 0.0
    %2540 = vmatprep.subr.mxu0 0.0
    %2541 = vmatpush1.msra.mxu0 0.0
    %2542 = vmatprep.subr.mxu0 0.0
    %2543 = vmatpush1.msra.mxu0 0.0
    %2544 = vmatprep.subr.mxu0 0.0
    %2545 = vmatpush1.msra.mxu0 0.0
    %2546 = vmatprep.subr.mxu0 0.0
    %2547 = vmatpush1.msra.mxu0 0.0
    %2548 = vmatprep.mubr.f32.mxu0 0.0
    %2549 = vmatmul.mubr.f32.gmra.mrb[0].mxu0 %v2482
    %v2550 = vpop.f32.mrb[0].mxu0
    %v2551 = vadd.f32 0.0, %v2550
    %v2552 = vpop.f32.mrb[0].mxu0
    %2553 = vdwg.mxu0
    %2556 = vrot.lane.b32.xlu0 %v1803, 8
    %v2557 = vpop.permute.xlu0 %2556
    %2558 = vrot.lane.b32.xlu0 %v1879, 8
    %v2559 = vpop.permute.xlu0 %2558
    %2564 = vrot.lane.b32.xlu0 %v2139, 16
    %v2565 = vpop.permute.xlu0 %2564
    %2566 = vrot.lane.b32.xlu0 %v2215, 16
    %v2567 = vpop.permute.xlu0 %2566
    %2572 = vrot.lane.b32.xlu0 %v2475, 24
    %v2573 = vpop.permute.xlu0 %2572
    %2574 = vrot.lane.b32.xlu0 %v2551, 24
    %v2575 = vpop.permute.xlu0 %2574
    %v2578 = vsel %vm606, %v1467, %v2557
    %v2579 = vsel %vm606, %v1543, %v2559
    %vm2580 = vcmask 130048
    %v2581 = vsel %vm2580, %v2578, %v2565
    %v2582 = vsel %vm2580, %v2579, %v2567
    %vm2583 = vcmask 195584
    %v2584 = vsel %vm2583, %v2581, %v2573
    %v2585 = vsel %vm2583, %v2582, %v2575
    %v2586 = vld [vmem:[%s11] sm:$0xff]
    %v2587 = vld [vmem:[%s11 + $0x8] sm:$0xff]
    %v2588 = vld [vmem:[%s11 + $0x10] sm:$0xff]
    %v2589 = vld [vmem:[%s11 + $0x18] sm:$0xff]
    %v2590 = vld [vmem:[#allocation17] sm:$0x1]
    %v2592 = vlaneseq
    %v2593 = vshrl.u32 %v2592, 7
    %v2594 = vsub.s32 0, %v2593
    %v2595 = vrot.slane %v2590, %v2594
    %v2598 = vsel %vm280, %v2584, 0
    %v2601 = vsel %vm280, %v2585, 0
    %2603 = vmatprep.subr.mxu0 0.0
    %2604 = vmatpush1.msra.mxu0 %v2586
    %2605 = vmatprep.subr.mxu0 0.0
    %2606 = vmatpush1.msra.mxu0 %v2587
    %2607 = vmatprep.subr.mxu0 0.0
    %2608 = vmatpush1.msra.mxu0 %v2588
    %2609 = vmatprep.subr.mxu0 0.0
    %2610 = vmatpush1.msra.mxu0 %v2589
    %2611 = vmatprep.subr.mxu0 0.0
    %2612 = vmatpush1.msra.mxu0 0.0
    %2613 = vmatprep.subr.mxu0 0.0
    %2614 = vmatpush1.msra.mxu0 0.0
    %2615 = vmatprep.subr.mxu0 0.0
    %2616 = vmatpush1.msra.mxu0 0.0
    %2617 = vmatprep.subr.mxu0 0.0
    %2618 = vmatpush1.msra.mxu0 0.0
    %2619 = vmatprep.subr.mxu0 0.0
    %2620 = vmatpush1.msra.mxu0 0.0
    %2621 = vmatprep.subr.mxu0 0.0
    %2622 = vmatpush1.msra.mxu0 0.0
    %2623 = vmatprep.subr.mxu0 0.0
    %2624 = vmatpush1.msra.mxu0 0.0
    %2625 = vmatprep.subr.mxu0 0.0
    %2626 = vmatpush1.msra.mxu0 0.0
    %2627 = vmatprep.subr.mxu0 0.0
    %2628 = vmatpush1.msra.mxu0 0.0
    %2629 = vmatprep.subr.mxu0 0.0
    %2630 = vmatpush1.msra.mxu0 0.0
    %2631 = vmatprep.subr.mxu0 0.0
    %2632 = vmatpush1.msra.mxu0 0.0
    %2633 = vmatprep.subr.mxu0 0.0
    %2634 = vmatpush1.msra.mxu0 0.0
    %2635 = vmatprep.subr.mxu0 0.0
    %2636 = vmatpush1.msra.mxu0 0.0
    %2637 = vmatprep.subr.mxu0 0.0
    %2638 = vmatpush1.msra.mxu0 0.0
    %2639 = vmatprep.subr.mxu0 0.0
    %2640 = vmatpush1.msra.mxu0 0.0
    %2641 = vmatprep.subr.mxu0 0.0
    %2642 = vmatpush1.msra.mxu0 0.0
    %2643 = vmatprep.subr.mxu0 0.0
    %2644 = vmatpush1.msra.mxu0 0.0
    %2645 = vmatprep.subr.mxu0 0.0
    %2646 = vmatpush1.msra.mxu0 0.0
    %2647 = vmatprep.subr.mxu0 0.0
    %2648 = vmatpush1.msra.mxu0 0.0
    %2649 = vmatprep.subr.mxu0 0.0
    %2650 = vmatpush1.msra.mxu0 0.0
    %2651 = vmatprep.subr.mxu0 0.0
    %2652 = vmatpush1.msra.mxu0 0.0
    %2653 = vmatprep.subr.mxu0 0.0
    %2654 = vmatpush1.msra.mxu0 0.0
    %2655 = vmatprep.subr.mxu0 0.0
    %2656 = vmatpush1.msra.mxu0 0.0
    %2657 = vmatprep.subr.mxu0 0.0
    %2658 = vmatpush1.msra.mxu0 0.0
    %2659 = vmatprep.subr.mxu0 0.0
    %2660 = vmatpush1.msra.mxu0 0.0
    %2661 = vmatprep.subr.mxu0 0.0
    %2662 = vmatpush1.msra.mxu0 0.0
    %2663 = vmatprep.subr.mxu0 0.0
    %2664 = vmatpush1.msra.mxu0 0.0
    %2665 = vmatprep.subr.mxu0 0.0
    %2666 = vmatpush1.msra.mxu0 0.0
    %2667 = vmatprep.mubr.f32.mxu0 0.0
    %2668 = vmatmul.mubr.f32.gmra.mrb[0].mxu0 %v2598
    %v2669 = vpop.f32.mrb[0].mxu0
    %v2670 = vadd.f32 %v2595, %v2669
    %v2671 = vpop.f32.mrb[0].mxu0
    %2672 = vmatprep.mubr.f32.mxu0 0.0
    %2673 = vmatmul.mubr.f32.gmra.mrb[0].mxu0 %v2601
    %v2674 = vpop.f32.mrb[0].mxu0
    %v2675 = vadd.f32 %v2595, %v2674
    %v2676 = vpop.f32.mrb[0].mxu0
    %2677 = vdwg.mxu0
    %v2678 = vadd.f32 %v233, %v2670
    %v2679 = vadd.f32 %v234, %v2675
    %v2680 = vld [vmem:[#allocation19] sm:$0x1]
    %v2681 = vld [vmem:[#allocation20] sm:$0x1]
    %v2682 = vsel %vm280, %v2678, 0.0
    %2683 = vadd.xlane.f32.xlu0 %v2682
    %v2684 = vpop.xlane.xlu0 %2683
    %v2685 = vsel %vm280, %v2679, 0.0
    %2686 = vadd.xlane.f32.xlu0 %v2685
    %v2687 = vpop.xlane.xlu0 %2686
    %v2688 = vmul.f32 %v2684, %v287
    %v2689 = vmul.f32 %v2687, %v287
    %v2690 = vsub.f32 %v2678, %v2688
    %v2691 = vsub.f32 %v2679, %v2689
    %v2692 = vmul.f32 %v2690, %v2690
    %v2693 = vmul.f32 %v2691, %v2691
    %v2694 = vsel %vm280, %v2692, 0.0
    %2695 = vadd.xlane.f32.xlu0 %v2694
    %v2696 = vpop.xlane.xlu0 %2695
    %v2697 = vsel %vm280, %v2693, 0.0
    %2698 = vadd.xlane.f32.xlu0 %v2697
    %v2699 = vpop.xlane.xlu0 %2698
    %v2700 = vmul.f32 %v2696, %v300
    %v2701 = vmul.f32 %v2699, %v300
    %v2703 = vlaneseq
    %v2704 = vshrl.u32 %v2703, 7
    %v2705 = vsub.s32 0, %v2704
    %v2706 = vrot.slane %v2680, %v2705
    %v2708 = vmul.f32 %v2706, %v2690
    %v2709 = vmul.f32 %v2706, %v2691
    %v2710 = vrsqrt.pop %v2700
    %v2711 = vmul.f32 %v2700, %v2710
    %vm2712 = vcmp.eq.f32.partialorder %v2700, inf
    %v2713 = vsel %vm2712, %v2700, %v2711
    %vm2714 = vcmp.eq.f32.partialorder %v2700, 0.0
    %v2715 = vand.u32 %v2700, 2147483648
    %v2716 = vsel %vm2714, %v2715, %v2713
    %v2717 = vrsqrt.pop %v2701
    %v2718 = vmul.f32 %v2701, %v2717
    %vm2719 = vcmp.eq.f32.partialorder %v2701, inf
    %v2720 = vsel %vm2719, %v2701, %v2718
    %vm2721 = vcmp.eq.f32.partialorder %v2701, 0.0
    %v2722 = vand.u32 %v2701, 2147483648
    %v2723 = vsel %vm2721, %v2722, %v2720
    %v2724 = vadd.f32 %v2716, 1e-06
    %v2725 = vadd.f32 %v2723, 1e-06
    %v2726 = vrcp.pop %v2724
    %v2727 = vmul.f32 %v2708, %v2726
    %v2728 = vrcp.pop %v2725
    %v2729 = vmul.f32 %v2709, %v2728
    %v2731 = vlaneseq
    %v2732 = vshrl.u32 %v2731, 7
    %v2733 = vsub.s32 0, %v2732
    %v2734 = vrot.slane %v2681, %v2733
    %v2736 = vadd.f32 %v2727, %v2734
    %v2737 = vadd.f32 %v2729, %v2734
    %v2738 = vld [vmem:[%s15] sm:$0xff]
    %v2739 = vld [vmem:[%s15 + $0x8] sm:$0xff]
    %v2740 = vld [vmem:[%s15 + $0x10] sm:$0xff]
    %v2741 = vld [vmem:[%s15 + $0x18] sm:$0xff]
    %v2742 = vld [vmem:[#allocation22] sm:$0x1]
    %v2744 = vlaneseq
    %v2745 = vshrl.u32 %v2744, 7
    %v2746 = vsub.s32 0, %v2745
    %v2747 = vrot.slane %v2742, %v2746
    %v2750 = vsel %vm280, %v2736, 0
    %v2753 = vsel %vm280, %v2737, 0
    %2755 = vmatprep.subr.mxu0 0.0
    %2756 = vmatpush1.msra.mxu0 %v2738
    %2757 = vmatprep.subr.mxu0 0.0
    %2758 = vmatpush1.msra.mxu0 %v2739
    %2759 = vmatprep.subr.mxu0 0.0
    %2760 = vmatpush1.msra.mxu0 %v2740
    %2761 = vmatprep.subr.mxu0 0.0
    %2762 = vmatpush1.msra.mxu0 %v2741
    %2763 = vmatprep.subr.mxu0 0.0
    %2764 = vmatpush1.msra.mxu0 0.0
    %2765 = vmatprep.subr.mxu0 0.0
    %2766 = vmatpush1.msra.mxu0 0.0
    %2767 = vmatprep.subr.mxu0 0.0
    %2768 = vmatpush1.msra.mxu0 0.0
    %2769 = vmatprep.subr.mxu0 0.0
    %2770 = vmatpush1.msra.mxu0 0.0
    %2771 = vmatprep.subr.mxu0 0.0
    %2772 = vmatpush1.msra.mxu0 0.0
    %2773 = vmatprep.subr.mxu0 0.0
    %2774 = vmatpush1.msra.mxu0 0.0
    %2775 = vmatprep.subr.mxu0 0.0
    %2776 = vmatpush1.msra.mxu0 0.0
    %2777 = vmatprep.subr.mxu0 0.0
    %2778 = vmatpush1.msra.mxu0 0.0
    %2779 = vmatprep.subr.mxu0 0.0
    %2780 = vmatpush1.msra.mxu0 0.0
    %2781 = vmatprep.subr.mxu0 0.0
    %2782 = vmatpush1.msra.mxu0 0.0
    %2783 = vmatprep.subr.mxu0 0.0
    %2784 = vmatpush1.msra.mxu0 0.0
    %2785 = vmatprep.subr.mxu0 0.0
    %2786 = vmatpush1.msra.mxu0 0.0
    %2787 = vmatprep.subr.mxu0 0.0
    %2788 = vmatpush1.msra.mxu0 0.0
    %2789 = vmatprep.subr.mxu0 0.0
    %2790 = vmatpush1.msra.mxu0 0.0
    %2791 = vmatprep.subr.mxu0 0.0
    %2792 = vmatpush1.msra.mxu0 0.0
    %2793 = vmatprep.subr.mxu0 0.0
    %2794 = vmatpush1.msra.mxu0 0.0
    %2795 = vmatprep.subr.mxu0 0.0
    %2796 = vmatpush1.msra.mxu0 0.0
    %2797 = vmatprep.subr.mxu0 0.0
    %2798 = vmatpush1.msra.mxu0 0.0
    %2799 = vmatprep.subr.mxu0 0.0
    %2800 = vmatpush1.msra.mxu0 0.0
    %2801 = vmatprep.subr.mxu0 0.0
    %2802 = vmatpush1.msra.mxu0 0.0
    %2803 = vmatprep.subr.mxu0 0.0
    %2804 = vmatpush1.msra.mxu0 0.0
    %2805 = vmatprep.subr.mxu0 0.0
    %2806 = vmatpush1.msra.mxu0 0.0
    %2807 = vmatprep.subr.mxu0 0.0
    %2808 = vmatpush1.msra.mxu0 0.0
    %2809 = vmatprep.subr.mxu0 0.0
    %2810 = vmatpush1.msra.mxu0 0.0
    %2811 = vmatprep.subr.mxu0 0.0
    %2812 = vmatpush1.msra.mxu0 0.0
    %2813 = vmatprep.subr.mxu0 0.0
    %2814 = vmatpush1.msra.mxu0 0.0
    %2815 = vmatprep.subr.mxu0 0.0
    %2816 = vmatpush1.msra.mxu0 0.0
    %2817 = vmatprep.subr.mxu0 0.0
    %2818 = vmatpush1.msra.mxu0 0.0
    %2819 = vmatprep.mubr.f32.mxu0 0.0
    %2820 = vmatmul.mubr.f32.gmra.mrb[0].mxu0 %v2750
    %v2821 = vpop.f32.mrb[0].mxu0
    %v2822 = vadd.f32 %v2747, %v2821
    %v2823 = vpop.f32.mrb[0].mxu0
    %2824 = vmatprep.mubr.f32.mxu0 0.0
    %2825 = vmatmul.mubr.f32.gmra.mrb[0].mxu0 %v2753
    %v2826 = vpop.f32.mrb[0].mxu0
    %v2827 = vadd.f32 %v2747, %v2826
    %v2828 = vpop.f32.mrb[0].mxu0
    %2829 = vdwg.mxu0
    %v2830 = vmax.f32 %v2822, 0.0
    %v2831 = vmax.f32 %v2827, 0.0
    %v2832 = vld [vmem:[%s17] sm:$0xff]
    %v2833 = vld [vmem:[%s17 + $0x8] sm:$0xff]
    %v2834 = vld [vmem:[%s17 + $0x10] sm:$0xff]
    %v2835 = vld [vmem:[%s17 + $0x18] sm:$0xff]
    %v2836 = vld [vmem:[%s17 + $0x20] sm:$0xff]
    %v2837 = vld [vmem:[%s17 + $0x28] sm:$0xff]
    %v2838 = vld [vmem:[%s17 + $0x30] sm:$0xff]
    %v2839 = vld [vmem:[%s17 + $0x38] sm:$0xff]
    %v2840 = vld [vmem:[#allocation23] sm:$0x1]
    %v2842 = vlaneseq
    %v2843 = vshrl.u32 %v2842, 7
    %v2844 = vsub.s32 0, %v2843
    %v2845 = vrot.slane %v2840, %v2844
    %vm2847 = vcmask 523264
    %v2849 = vsel %vm2847, %v2830, 0
    %v2852 = vsel %vm2847, %v2831, 0
    %2854 = vmatprep.subr.mxu0 0.0
    %2855 = vmatpush1.msra.mxu0 %v2832
    %2856 = vmatprep.subr.mxu0 0.0
    %2857 = vmatpush1.msra.mxu0 %v2833
    %2858 = vmatprep.subr.mxu0 0.0
    %2859 = vmatpush1.msra.mxu0 %v2834
    %2860 = vmatprep.subr.mxu0 0.0
    %2861 = vmatpush1.msra.mxu0 %v2835
    %2862 = vmatprep.subr.mxu0 0.0
    %2863 = vmatpush1.msra.mxu0 %v2836
    %2864 = vmatprep.subr.mxu0 0.0
    %2865 = vmatpush1.msra.mxu0 %v2837
    %2866 = vmatprep.subr.mxu0 0.0
    %2867 = vmatpush1.msra.mxu0 %v2838
    %2868 = vmatprep.subr.mxu0 0.0
    %2869 = vmatpush1.msra.mxu0 %v2839
    %2870 = vmatprep.subr.mxu0 0.0
    %2871 = vmatpush1.msra.mxu0 0.0
    %2872 = vmatprep.subr.mxu0 0.0
    %2873 = vmatpush1.msra.mxu0 0.0
    %2874 = vmatprep.subr.mxu0 0.0
    %2875 = vmatpush1.msra.mxu0 0.0
    %2876 = vmatprep.subr.mxu0 0.0
    %2877 = vmatpush1.msra.mxu0 0.0
    %2878 = vmatprep.subr.mxu0 0.0
    %2879 = vmatpush1.msra.mxu0 0.0
    %2880 = vmatprep.subr.mxu0 0.0
    %2881 = vmatpush1.msra.mxu0 0.0
    %2882 = vmatprep.subr.mxu0 0.0
    %2883 = vmatpush1.msra.mxu0 0.0
    %2884 = vmatprep.subr.mxu0 0.0
    %2885 = vmatpush1.msra.mxu0 0.0
    %2886 = vmatprep.subr.mxu0 0.0
    %2887 = vmatpush1.msra.mxu0 0.0
    %2888 = vmatprep.subr.mxu0 0.0
    %2889 = vmatpush1.msra.mxu0 0.0
    %2890 = vmatprep.subr.mxu0 0.0
    %2891 = vmatpush1.msra.mxu0 0.0
    %2892 = vmatprep.subr.mxu0 0.0
    %2893 = vmatpush1.msra.mxu0 0.0
    %2894 = vmatprep.subr.mxu0 0.0
    %2895 = vmatpush1.msra.mxu0 0.0
    %2896 = vmatprep.subr.mxu0 0.0
    %2897 = vmatpush1.msra.mxu0 0.0
    %2898 = vmatprep.subr.mxu0 0.0
    %2899 = vmatpush1.msra.mxu0 0.0
    %2900 = vmatprep.subr.mxu0 0.0
    %2901 = vmatpush1.msra.mxu0 0.0
    %2902 = vmatprep.subr.mxu0 0.0
    %2903 = vmatpush1.msra.mxu0 0.0
    %2904 = vmatprep.subr.mxu0 0.0
    %2905 = vmatpush1.msra.mxu0 0.0
    %2906 = vmatprep.subr.mxu0 0.0
    %2907 = vmatpush1.msra.mxu0 0.0
    %2908 = vmatprep.subr.mxu0 0.0
    %2909 = vmatpush1.msra.mxu0 0.0
    %2910 = vmatprep.subr.mxu0 0.0
    %2911 = vmatpush1.msra.mxu0 0.0
    %2912 = vmatprep.subr.mxu0 0.0
    %2913 = vmatpush1.msra.mxu0 0.0
    %2914 = vmatprep.subr.mxu0 0.0
    %2915 = vmatpush1.msra.mxu0 0.0
    %2916 = vmatprep.subr.mxu0 0.0
    %2917 = vmatpush1.msra.mxu0 0.0
    %2918 = vmatprep.mubr.f32.mxu0 0.0
    %2919 = vmatmul.mubr.f32.gmra.mrb[0].mxu0 %v2849
    %v2920 = vpop.f32.mrb[0].mxu0
    %v2921 = vadd.f32 %v2845, %v2920
    %v2922 = vpop.f32.mrb[0].mxu0
    %2923 = vmatprep.mubr.f32.mxu0 0.0
    %2924 = vmatmul.mubr.f32.gmra.mrb[0].mxu0 %v2852
    %v2925 = vpop.f32.mrb[0].mxu0
    %v2926 = vadd.f32 %v2845, %v2925
    %v2927 = vpop.f32.mrb[0].mxu0
    %2928 = vdwg.mxu0
    %v2929 = vadd.f32 %v2678, %v2921
    %v2930 = vadd.f32 %v2679, %v2926
    %2931 = vst.msk [vmem:[#allocation25] sm:$0xff] %vm280, %v2929
    %2932 = vst.msk [vmem:[#allocation25 + $0x8] sm:$0xff] %vm280, %v2930
    // Predicated region
    $region134: #{encoder_layer_forward.1} parent=1 // pred_check
      _
    $region135: #{encoder_layer_forward.1} parent=1 // pred_check_branch
      %2934 = sbr.rel (0) target = $region137
    $region136: #{encoder_layer_forward.1} parent=1 // pred_region
      %s2936 = ssub.s32 256, 256
      %2937 = vsyncadd [#allocation4], %s2936
      %s2938 = sshll.u32 [#allocation25], 4
      %s2939 = int_to_ptr.vmem [resolvable:$true] %s2938
      %2944 = dma.vmem_to_hbm [thread:$0]  %s2939, 256, %s19, [#allocation4], 128, 128, 8
    $region137: #{encoder_layer_forward.1} parent=1 // pred_fallthru
      _
    // Predicated region
    $region138: #{encoder_layer_forward.1} parent=1 // pred_check
      _
    $region139: #{encoder_layer_forward.1} parent=1 // pred_check_branch
      %2946 = sbr.rel (0) target = $region141
    $region140: #{encoder_layer_forward.1} parent=1 // pred_region
      %s2948 = ssub.s32 256, 256
      %2949 = vsyncadd [#allocation27], %s2948
      %s2950 = sshll.u32 [#allocation26], 4
      %s2951 = int_to_ptr.vmem [resolvable:$true] %s2950
      %2956 = dma.vmem_to_hbm [thread:$0]  %s2951, 256, %s20, [#allocation27], 128, 128, 8
    $region141: #{encoder_layer_forward.1} parent=1 // pred_fallthru
      _
    // Predicated region
    $region142: #{encoder_layer_forward.1} parent=1 // pred_check
      _
    $region143: #{encoder_layer_forward.1} parent=1 // pred_check_branch
      %2958 = sbr.rel (0) target = $region145
    $region144: #{encoder_layer_forward.1} parent=1 // pred_region
      %s2960 = ssub.s32 256, 256
      %2961 = vsyncadd [#allocation27], %s2960
      %s2962 = sshll.u32 [#allocation28], 4
      %s2963 = int_to_ptr.vmem [resolvable:$true] %s2962
      %2968 = dma.vmem_to_hbm [thread:$0]  %s2963, 256, %s21, [#allocation27], 128, 128, 8
    $region145: #{encoder_layer_forward.1} parent=1 // pred_fallthru
      _
    // Predicated region
    $region146: #{encoder_layer_forward.1} parent=1 // pred_check
      _
    $region147: #{encoder_layer_forward.1} parent=1 // pred_check_branch
      %2970 = sbr.rel (0) target = $region149
    $region148: #{encoder_layer_forward.1} parent=1 // pred_region
      %2971 = dma.done [#allocation4], 256
    $region149: #{encoder_layer_forward.1} parent=1 // pred_fallthru
      _
    // Predicated region
    $region150: #{encoder_layer_forward.1} parent=1 // pred_check
      _
    $region151: #{encoder_layer_forward.1} parent=1 // pred_check_branch
      %2973 = sbr.rel (0) target = $region153
    $region152: #{encoder_layer_forward.1} parent=1 // pred_region
      %2974 = dma.done [#allocation27], 256
    $region153: #{encoder_layer_forward.1} parent=1 // pred_fallthru
      _
    // Predicated region
    $region154: #{encoder_layer_forward.1} parent=1 // pred_check
      _
    $region155: #{encoder_layer_forward.1} parent=1 // pred_check_branch
      %2976 = sbr.rel (0) target = $region157
    $region156: #{encoder_layer_forward.1} parent=1 // pred_region
      %2977 = dma.done [#allocation27], 256
    $region157: #{encoder_layer_forward.1} parent=1 // pred_fallthru
      _
    %2978 = vsyncpa [#allocation3], 1
    %2979 = vsyncpa [#allocation6], 1
    %2980 = vsyncpa [#allocation9], 1
    %2981 = vsyncpa [#allocation12], 1
    %2982 = vsyncpa [#allocation15], 1
    %2983 = vsyncpa [#allocation18], 1
    %2984 = vsyncpa [#allocation21], 1
    %2985 = vsyncpa [#allocation24], 1
    %2986 = vsyncpa [#allocation4], 1
    %2987 = vsyncpa [#allocation27], 1

</llo_original>
